<compile_context>
chip_gen: v5e
topology: v5e:2x2
jax: 0.10.0
libtpu: 0.0.40
codegen_flags: <defaults>
</compile_context>

<pallas_src>
import jax
import jax.numpy as jnp
from jax.experimental import pallas as pl
from jax.experimental.pallas import tpu as pltpu


def _neural_prior_kernel(x_ref, w1_ref, wh_ref, wl_ref, b_ref, o_ref):
    f32 = jnp.float32
    dim_x = x_ref.shape[0]              # 3
    n_hidden = wh_ref.shape[0]          # 7 stacked (F, F) hidden weights (W^T)
    F = wh_ref.shape[1]                 # filter_size (128)
    out_dim = o_ref.shape[0]            # 3
    out_sub = wl_ref.shape[0]           # sublane-padded output rows (8)

    x = x_ref[...].astype(f32)          # (dim_x, tile_m) f32, lane-dense
    w1 = w1_ref[...].astype(f32)        # (F, dim_x) f32 (VPU path)

    # ---- Layer 1: K = dim_x is tiny -> VPU broadcast-FMAs, full f32 --------
    h = b_ref[:, 0:1]                   # (F, 1), broadcasts over lanes
    for d in range(dim_x):
        h = h + w1[:, d:d + 1] * x[d:d + 1, :]
    h = jnp.maximum(h, 0.0)             # (F, tile_m) f32

    # ---- Layers 2..8: bf16 MXU matmuls (W^T @ h), f32 acc, f32 bias+ReLU ---
    for li in range(n_hidden):
        w = wh_ref[li]                  # (F, F) bf16, already transposed
        h = jnp.dot(w, h.astype(jnp.bfloat16), preferred_element_type=f32)
        h = jnp.maximum(h + b_ref[:, li + 1:li + 2], 0.0)

    # ---- Layer 9: sublane-padded W^T (out_sub, F), no activation -----------
    out = jnp.dot(wl_ref[...], h.astype(jnp.bfloat16),
                  preferred_element_type=f32)            # (out_sub, tile_m)
    out = out + b_ref[0:out_sub, n_hidden + 1:n_hidden + 2]
    o_ref[...] = out[0:out_dim, :].astype(o_ref.dtype)   # lane-dense store


def neural_prior_forward(x, params, *, tile_m=2048):
    """x: (N, dim_x) float32.  params: list of 9 (W, b), W shape (in, out)."""
    N, dim_x = x.shape
    n_layers = len(params)
    F = params[1][0].shape[0]            # filter_size
    out_dim = params[-1][0].shape[1]     # 3
    out_sub = 8                          # sublane-rounded last-layer rows
    assert F % 128 == 0, "filter_size must be a multiple of 128"

    # ---- consolidate parameters (feature-major / transposed) ---------------
    w1_t = params[0][0].T.astype(jnp.float32)                       # (F, dim_x)
    wh_t = jnp.stack([params[i][0].T for i in range(1, n_layers - 1)],
                     axis=0).astype(jnp.bfloat16)                   # (7, F, F)
    wl_t = jnp.zeros((out_sub, F), jnp.float32)
    wl_t = wl_t.at[:out_dim, :].set(params[-1][0].T).astype(jnp.bfloat16)

    biases = jnp.zeros((F, n_layers), jnp.float32)                  # (F, 9)
    for i, (_, b) in enumerate(params):
        biases = biases.at[:b.shape[0], i].set(b.astype(jnp.float32))

    # ---- tile / grid: big tiles, but keep >= 2 grid steps when possible ----
    tile_m = max(256, (int(tile_m) // 256) * 256)
    cap = max(256, pl.cdiv(pl.cdiv(N, 2), 256) * 256)   # >=2 steps for v7x TCs
    tile_m = min(tile_m, cap)
    n_pad = pl.cdiv(N, tile_m) * tile_m
    grid = (n_pad // tile_m,)

    x_t = x.T                                                        # (dim_x, N)
    if n_pad != N:
        x_t = jnp.pad(x_t, ((0, 0), (0, n_pad - N)))

    in_specs = [
        pl.BlockSpec((dim_x, tile_m), lambda i: (0, i)),    # x^T tile (lane-dense)
        pl.BlockSpec(w1_t.shape, lambda i: (0, 0)),         # (F, dim_x)
        pl.BlockSpec(wh_t.shape, lambda i: (0, 0, 0)),      # (7, F, F)
        pl.BlockSpec(wl_t.shape, lambda i: (0, 0)),         # (out_sub, F)
        pl.BlockSpec(biases.shape, lambda i: (0, 0)),       # (F, 9)
    ]
    out_spec = pl.BlockSpec((out_dim, tile_m), lambda i: (0, i))

    n_hidden = n_layers - 2
    flops = 2 * n_pad * (dim_x * F + n_hidden * F * F + F * out_dim)
    bytes_accessed = (n_pad * (dim_x + out_dim) * 4
                      + w1_t.size * 4 + wh_t.size * 2
                      + wl_t.size * 2 + biases.size * 4)

    out_t = pl.pallas_call(
        _neural_prior_kernel,
        out_shape=jax.ShapeDtypeStruct((out_dim, n_pad), x.dtype),
        grid_spec=pltpu.PrefetchScalarGridSpec(
            num_scalar_prefetch=0,
            grid=grid,
            in_specs=in_specs,
            out_specs=out_spec,
        ),
        compiler_params=pltpu.CompilerParams(
            dimension_semantics=("parallel",),
            vmem_limit_bytes=32 * 1024 * 1024,
        ),
        cost_estimate=pl.CostEstimate(
            flops=flops, transcendentals=0, bytes_accessed=bytes_accessed),
    )(x_t, w1_t, wh_t, wl_t, biases)

    return out_t[:, :N].T                                            # (N, out_dim)


def init_neural_prior_params(key, dim_x=3, filter_size=128, out_dim=3,
                             dtype=jnp.float32):
    """Deterministic init mimicking nn.Linear's U(-1/sqrt(fan_in), 1/sqrt(fan_in))."""
    sizes = [(dim_x, filter_size)] + \
            [(filter_size, filter_size)] * 7 + \
            [(filter_size, out_dim)]
    params = []
    for (fan_in, fan_out) in sizes:
        key, kw, kb = jax.random.split(key, 3)
        bound = 1.0 / jnp.sqrt(jnp.asarray(fan_in, dtype))
        w = jax.random.uniform(kw, (fan_in, fan_out), dtype, -bound, bound)
        b = jax.random.uniform(kb, (fan_out,), dtype, -bound, bound)
        params.append((w, b))
    return params


def neural_prior_reference(x, params):
    """Pure-JAX f32 reference of the PyTorch forward pass."""
    h = x
    for (w, b) in params[:-1]:
        h = jax.nn.relu(h @ w + b)
    w, b = params[-1]
    return h @ w + b


if __name__ == "__main__":
    key = jax.random.PRNGKey(0)
    k_params, k_x = jax.random.split(key)

    dim_x = 3
    filter_size = 128
    N = 1000  # not a multiple of tile_m: exercises padding and a 2-step grid

    params = init_neural_prior_params(k_params, dim_x=dim_x,
                                      filter_size=filter_size, out_dim=3)
    x = jax.random.normal(k_x, (N, dim_x), dtype=jnp.float32)

    out = neural_prior_forward(x, params)
    out = jax.block_until_ready(out)

    ref = neural_prior_reference(x, params)
    assert out.shape == (N, 3)
    # bf16 matmul operands (f32 accumulation) over 8 layers -> compare with a
    # bf16-level tolerance against the f32 reference (documented accuracy
    # trade-off; see header comment).
    max_err = jnp.max(jnp.abs(out - ref))
    assert jnp.allclose(out, ref, atol=1e-2, rtol=5e-2), f"max err {max_err}"

    print("KERNEL_OK")
</pallas_src>

<mosaic_0001>
module attributes {stable_mosaic.version = 11 : i64} {
  func.func @_neural_prior_kernel(%arg0: i32, %arg1: memref<3x512xf32, #tpu.memory_space<vmem>>, %arg2: memref<128x3xf32, #tpu.memory_space<vmem>>, %arg3: memref<7x128x128xbf16, #tpu.memory_space<vmem>>, %arg4: memref<8x128xbf16, #tpu.memory_space<vmem>>, %arg5: memref<128x9xf32, #tpu.memory_space<vmem>>, %arg6: memref<3x512xf32, #tpu.memory_space<vmem>>) attributes {dimension_semantics = [#tpu.dimension_semantics<parallel>], iteration_bounds = array<i64: 2>, scalar_prefetch = 0 : i64, scratch_operands = 0 : i64, tpu.core_type = #tpu.core_type<tc>, window_params = [{transform_indices = @transform_0, window_bounds = array<i64: 3, 512>}, {pipeline_mode = #tpu.pipeline_mode<synchronous>, transform_indices = @transform_1, window_bounds = array<i64: 128, 3>}, {pipeline_mode = #tpu.pipeline_mode<synchronous>, transform_indices = @transform_2, window_bounds = array<i64: 7, 128, 128>}, {pipeline_mode = #tpu.pipeline_mode<synchronous>, transform_indices = @transform_3, window_bounds = array<i64: 8, 128>}, {pipeline_mode = #tpu.pipeline_mode<synchronous>, transform_indices = @transform_4, window_bounds = array<i64: 128, 9>}, {transform_indices = @transform_5, window_bounds = array<i64: 3, 512>}]} {
    %c0 = arith.constant 0 : index
    %c0_0 = arith.constant 0 : index
    %0 = vector.load %arg1[%c0, %c0_0] : memref<3x512xf32, #tpu.memory_space<vmem>>, vector<3x512xf32>
    %c0_1 = arith.constant 0 : index
    %c0_2 = arith.constant 0 : index
    %1 = vector.load %arg2[%c0_1, %c0_2] : memref<128x3xf32, #tpu.memory_space<vmem>>, vector<128x3xf32>
    %c0_3 = arith.constant 0 : index
    %c0_4 = arith.constant 0 : index
    %2 = vector.load %arg5[%c0_3, %c0_4] : memref<128x9xf32, #tpu.memory_space<vmem>>, vector<128x1xf32>
    %3 = vector.extract_strided_slice %1 {offsets = [0, 0], sizes = [128, 1], strides = [1, 1]} : vector<128x3xf32> to vector<128x1xf32>
    %4 = vector.extract_strided_slice %0 {offsets = [0, 0], sizes = [1, 512], strides = [1, 1]} : vector<3x512xf32> to vector<1x512xf32>
    %5 = vector.broadcast %3 : vector<128x1xf32> to vector<128x512xf32>
    %6 = vector.broadcast %4 : vector<1x512xf32> to vector<128x512xf32>
    %7 = arith.mulf %5, %6 : vector<128x512xf32>
    %8 = vector.broadcast %2 : vector<128x1xf32> to vector<128x512xf32>
    %9 = arith.addf %8, %7 : vector<128x512xf32>
    %10 = vector.extract_strided_slice %1 {offsets = [0, 1], sizes = [128, 1], strides = [1, 1]} : vector<128x3xf32> to vector<128x1xf32>
    %11 = vector.extract_strided_slice %0 {offsets = [1, 0], sizes = [1, 512], strides = [1, 1]} : vector<3x512xf32> to vector<1x512xf32>
    %12 = vector.broadcast %10 : vector<128x1xf32> to vector<128x512xf32>
    %13 = vector.broadcast %11 : vector<1x512xf32> to vector<128x512xf32>
    %14 = arith.mulf %12, %13 : vector<128x512xf32>
    %15 = arith.addf %9, %14 : vector<128x512xf32>
    %16 = vector.extract_strided_slice %1 {offsets = [0, 2], sizes = [128, 1], strides = [1, 1]} : vector<128x3xf32> to vector<128x1xf32>
    %17 = vector.extract_strided_slice %0 {offsets = [2, 0], sizes = [1, 512], strides = [1, 1]} : vector<3x512xf32> to vector<1x512xf32>
    %18 = vector.broadcast %16 : vector<128x1xf32> to vector<128x512xf32>
    %19 = vector.broadcast %17 : vector<1x512xf32> to vector<128x512xf32>
    %20 = arith.mulf %18, %19 : vector<128x512xf32>
    %21 = arith.addf %15, %20 : vector<128x512xf32>
    %cst = arith.constant 0.000000e+00 : f32
    %22 = vector.broadcast %cst : f32 to vector<128x512xf32>
    %23 = arith.maximumf %21, %22 : vector<128x512xf32>
    %c0_5 = arith.constant 0 : index
    %c0_6 = arith.constant 0 : index
    %c0_7 = arith.constant 0 : index
    %24 = vector.load %arg3[%c0_5, %c0_6, %c0_7] : memref<7x128x128xbf16, #tpu.memory_space<vmem>>, vector<1x128x128xbf16>
    %25 = vector.shape_cast %24 : vector<1x128x128xbf16> to vector<128x128xbf16>
    %26 = arith.truncf %23 : vector<128x512xf32> to vector<128x512xbf16>
    %cst_8 = arith.constant dense<0.000000e+00> : vector<128x512xf32>
    %27 = tpu.matmul %25, %26, %cst_8 {dimension_numbers = #tpu.dot_dimension_numbers<[1], [0], [0], [1], [0, 0, 1, 1], [], []>} : vector<128x128xbf16>, vector<128x512xbf16>, vector<128x512xf32> -> vector<128x512xf32>
    %c0_9 = arith.constant 0 : index
    %c1 = arith.constant 1 : index
    %28 = vector.load %arg5[%c0_9, %c1] : memref<128x9xf32, #tpu.memory_space<vmem>>, vector<128x1xf32>
    %29 = vector.broadcast %28 : vector<128x1xf32> to vector<128x512xf32>
    %30 = arith.addf %27, %29 : vector<128x512xf32>
    %cst_10 = arith.constant 0.000000e+00 : f32
    %31 = vector.broadcast %cst_10 : f32 to vector<128x512xf32>
    %32 = arith.maximumf %30, %31 : vector<128x512xf32>
    %c1_11 = arith.constant 1 : index
    %c0_12 = arith.constant 0 : index
    %c0_13 = arith.constant 0 : index
    %33 = vector.load %arg3[%c1_11, %c0_12, %c0_13] : memref<7x128x128xbf16, #tpu.memory_space<vmem>>, vector<1x128x128xbf16>
    %34 = vector.shape_cast %33 : vector<1x128x128xbf16> to vector<128x128xbf16>
    %35 = arith.truncf %32 : vector<128x512xf32> to vector<128x512xbf16>
    %cst_14 = arith.constant dense<0.000000e+00> : vector<128x512xf32>
    %36 = tpu.matmul %34, %35, %cst_14 {dimension_numbers = #tpu.dot_dimension_numbers<[1], [0], [0], [1], [0, 0, 1, 1], [], []>} : vector<128x128xbf16>, vector<128x512xbf16>, vector<128x512xf32> -> vector<128x512xf32>
    %c0_15 = arith.constant 0 : index
    %c2 = arith.constant 2 : index
    %37 = vector.load %arg5[%c0_15, %c2] : memref<128x9xf32, #tpu.memory_space<vmem>>, vector<128x1xf32>
    %38 = vector.broadcast %37 : vector<128x1xf32> to vector<128x512xf32>
    %39 = arith.addf %36, %38 : vector<128x512xf32>
    %cst_16 = arith.constant 0.000000e+00 : f32
    %40 = vector.broadcast %cst_16 : f32 to vector<128x512xf32>
    %41 = arith.maximumf %39, %40 : vector<128x512xf32>
    %c2_17 = arith.constant 2 : index
    %c0_18 = arith.constant 0 : index
    %c0_19 = arith.constant 0 : index
    %42 = vector.load %arg3[%c2_17, %c0_18, %c0_19] : memref<7x128x128xbf16, #tpu.memory_space<vmem>>, vector<1x128x128xbf16>
    %43 = vector.shape_cast %42 : vector<1x128x128xbf16> to vector<128x128xbf16>
    %44 = arith.truncf %41 : vector<128x512xf32> to vector<128x512xbf16>
    %cst_20 = arith.constant dense<0.000000e+00> : vector<128x512xf32>
    %45 = tpu.matmul %43, %44, %cst_20 {dimension_numbers = #tpu.dot_dimension_numbers<[1], [0], [0], [1], [0, 0, 1, 1], [], []>} : vector<128x128xbf16>, vector<128x512xbf16>, vector<128x512xf32> -> vector<128x512xf32>
    %c0_21 = arith.constant 0 : index
    %c3 = arith.constant 3 : index
    %46 = vector.load %arg5[%c0_21, %c3] : memref<128x9xf32, #tpu.memory_space<vmem>>, vector<128x1xf32>
    %47 = vector.broadcast %46 : vector<128x1xf32> to vector<128x512xf32>
    %48 = arith.addf %45, %47 : vector<128x512xf32>
    %cst_22 = arith.constant 0.000000e+00 : f32
    %49 = vector.broadcast %cst_22 : f32 to vector<128x512xf32>
    %50 = arith.maximumf %48, %49 : vector<128x512xf32>
    %c3_23 = arith.constant 3 : index
    %c0_24 = arith.constant 0 : index
    %c0_25 = arith.constant 0 : index
    %51 = vector.load %arg3[%c3_23, %c0_24, %c0_25] : memref<7x128x128xbf16, #tpu.memory_space<vmem>>, vector<1x128x128xbf16>
    %52 = vector.shape_cast %51 : vector<1x128x128xbf16> to vector<128x128xbf16>
    %53 = arith.truncf %50 : vector<128x512xf32> to vector<128x512xbf16>
    %cst_26 = arith.constant dense<0.000000e+00> : vector<128x512xf32>
    %54 = tpu.matmul %52, %53, %cst_26 {dimension_numbers = #tpu.dot_dimension_numbers<[1], [0], [0], [1], [0, 0, 1, 1], [], []>} : vector<128x128xbf16>, vector<128x512xbf16>, vector<128x512xf32> -> vector<128x512xf32>
    %c0_27 = arith.constant 0 : index
    %c4 = arith.constant 4 : index
    %55 = vector.load %arg5[%c0_27, %c4] : memref<128x9xf32, #tpu.memory_space<vmem>>, vector<128x1xf32>
    %56 = vector.broadcast %55 : vector<128x1xf32> to vector<128x512xf32>
    %57 = arith.addf %54, %56 : vector<128x512xf32>
    %cst_28 = arith.constant 0.000000e+00 : f32
    %58 = vector.broadcast %cst_28 : f32 to vector<128x512xf32>
    %59 = arith.maximumf %57, %58 : vector<128x512xf32>
    %c4_29 = arith.constant 4 : index
    %c0_30 = arith.constant 0 : index
    %c0_31 = arith.constant 0 : index
    %60 = vector.load %arg3[%c4_29, %c0_30, %c0_31] : memref<7x128x128xbf16, #tpu.memory_space<vmem>>, vector<1x128x128xbf16>
    %61 = vector.shape_cast %60 : vector<1x128x128xbf16> to vector<128x128xbf16>
    %62 = arith.truncf %59 : vector<128x512xf32> to vector<128x512xbf16>
    %cst_32 = arith.constant dense<0.000000e+00> : vector<128x512xf32>
    %63 = tpu.matmul %61, %62, %cst_32 {dimension_numbers = #tpu.dot_dimension_numbers<[1], [0], [0], [1], [0, 0, 1, 1], [], []>} : vector<128x128xbf16>, vector<128x512xbf16>, vector<128x512xf32> -> vector<128x512xf32>
    %c0_33 = arith.constant 0 : index
    %c5 = arith.constant 5 : index
    %64 = vector.load %arg5[%c0_33, %c5] : memref<128x9xf32, #tpu.memory_space<vmem>>, vector<128x1xf32>
    %65 = vector.broadcast %64 : vector<128x1xf32> to vector<128x512xf32>
    %66 = arith.addf %63, %65 : vector<128x512xf32>
    %cst_34 = arith.constant 0.000000e+00 : f32
    %67 = vector.broadcast %cst_34 : f32 to vector<128x512xf32>
    %68 = arith.maximumf %66, %67 : vector<128x512xf32>
    %c5_35 = arith.constant 5 : index
    %c0_36 = arith.constant 0 : index
    %c0_37 = arith.constant 0 : index
    %69 = vector.load %arg3[%c5_35, %c0_36, %c0_37] : memref<7x128x128xbf16, #tpu.memory_space<vmem>>, vector<1x128x128xbf16>
    %70 = vector.shape_cast %69 : vector<1x128x128xbf16> to vector<128x128xbf16>
    %71 = arith.truncf %68 : vector<128x512xf32> to vector<128x512xbf16>
    %cst_38 = arith.constant dense<0.000000e+00> : vector<128x512xf32>
    %72 = tpu.matmul %70, %71, %cst_38 {dimension_numbers = #tpu.dot_dimension_numbers<[1], [0], [0], [1], [0, 0, 1, 1], [], []>} : vector<128x128xbf16>, vector<128x512xbf16>, vector<128x512xf32> -> vector<128x512xf32>
    %c0_39 = arith.constant 0 : index
    %c6 = arith.constant 6 : index
    %73 = vector.load %arg5[%c0_39, %c6] : memref<128x9xf32, #tpu.memory_space<vmem>>, vector<128x1xf32>
    %74 = vector.broadcast %73 : vector<128x1xf32> to vector<128x512xf32>
    %75 = arith.addf %72, %74 : vector<128x512xf32>
    %cst_40 = arith.constant 0.000000e+00 : f32
    %76 = vector.broadcast %cst_40 : f32 to vector<128x512xf32>
    %77 = arith.maximumf %75, %76 : vector<128x512xf32>
    %c6_41 = arith.constant 6 : index
    %c0_42 = arith.constant 0 : index
    %c0_43 = arith.constant 0 : index
    %78 = vector.load %arg3[%c6_41, %c0_42, %c0_43] : memref<7x128x128xbf16, #tpu.memory_space<vmem>>, vector<1x128x128xbf16>
    %79 = vector.shape_cast %78 : vector<1x128x128xbf16> to vector<128x128xbf16>
    %80 = arith.truncf %77 : vector<128x512xf32> to vector<128x512xbf16>
    %cst_44 = arith.constant dense<0.000000e+00> : vector<128x512xf32>
    %81 = tpu.matmul %79, %80, %cst_44 {dimension_numbers = #tpu.dot_dimension_numbers<[1], [0], [0], [1], [0, 0, 1, 1], [], []>} : vector<128x128xbf16>, vector<128x512xbf16>, vector<128x512xf32> -> vector<128x512xf32>
    %c0_45 = arith.constant 0 : index
    %c7 = arith.constant 7 : index
    %82 = vector.load %arg5[%c0_45, %c7] : memref<128x9xf32, #tpu.memory_space<vmem>>, vector<128x1xf32>
    %83 = vector.broadcast %82 : vector<128x1xf32> to vector<128x512xf32>
    %84 = arith.addf %81, %83 : vector<128x512xf32>
    %cst_46 = arith.constant 0.000000e+00 : f32
    %85 = vector.broadcast %cst_46 : f32 to vector<128x512xf32>
    %86 = arith.maximumf %84, %85 : vector<128x512xf32>
    %c0_47 = arith.constant 0 : index
    %c0_48 = arith.constant 0 : index
    %87 = vector.load %arg4[%c0_47, %c0_48] : memref<8x128xbf16, #tpu.memory_space<vmem>>, vector<8x128xbf16>
    %88 = arith.truncf %86 : vector<128x512xf32> to vector<128x512xbf16>
    %cst_49 = arith.constant dense<0.000000e+00> : vector<8x512xf32>
    %89 = tpu.matmul %87, %88, %cst_49 {dimension_numbers = #tpu.dot_dimension_numbers<[1], [0], [0], [1], [0, 0, 1, 1], [], []>} : vector<8x128xbf16>, vector<128x512xbf16>, vector<8x512xf32> -> vector<8x512xf32>
    %c0_50 = arith.constant 0 : index
    %c8 = arith.constant 8 : index
    %90 = vector.load %arg5[%c0_50, %c8] : memref<128x9xf32, #tpu.memory_space<vmem>>, vector<8x1xf32>
    %91 = vector.broadcast %90 : vector<8x1xf32> to vector<8x512xf32>
    %92 = arith.addf %89, %91 : vector<8x512xf32>
    %93 = vector.extract_strided_slice %92 {offsets = [0, 0], sizes = [3, 512], strides = [1, 1]} : vector<8x512xf32> to vector<3x512xf32>
    %c0_51 = arith.constant 0 : index
    %c0_52 = arith.constant 0 : index
    %94 = vector.load %arg6[%c0_51, %c0_52] : memref<3x512xf32, #tpu.memory_space<vmem>>, vector<3x512xf32>
    tpu.vector_store %arg6[%c0_51, %c0_52], %93 {strides = array<i32>} : memref<3x512xf32, #tpu.memory_space<vmem>>, vector<3x512xf32>,
    return
  }
  func.func @transform_0(%arg0: i32) -> (i32, i32) {
    %c0_i32 = arith.constant 0 : i32
    %c0_i32_0 = arith.constant 0 : i32
    return %c0_i32, %arg0 : i32, i32
  }
  func.func @transform_1(%arg0: i32) -> (i32, i32) {
    %c0_i32 = arith.constant 0 : i32
    %c0_i32_0 = arith.constant 0 : i32
    %c0_i32_1 = arith.constant 0 : i32
    return %c0_i32, %c0_i32_0 : i32, i32
  }
  func.func @transform_2(%arg0: i32) -> (i32, i32, i32) {
    %c0_i32 = arith.constant 0 : i32
    %c0_i32_0 = arith.constant 0 : i32
    %c0_i32_1 = arith.constant 0 : i32
    %c0_i32_2 = arith.constant 0 : i32
    return %c0_i32, %c0_i32_0, %c0_i32_1 : i32, i32, i32
  }
  func.func @transform_3(%arg0: i32) -> (i32, i32) {
    %c0_i32 = arith.constant 0 : i32
    %c0_i32_0 = arith.constant 0 : i32
    %c0_i32_1 = arith.constant 0 : i32
    return %c0_i32, %c0_i32_0 : i32, i32
  }
  func.func @transform_4(%arg0: i32) -> (i32, i32) {
    %c0_i32 = arith.constant 0 : i32
    %c0_i32_0 = arith.constant 0 : i32
    %c0_i32_1 = arith.constant 0 : i32
    return %c0_i32, %c0_i32_0 : i32, i32
  }
  func.func @transform_5(%arg0: i32) -> (i32, i32) {
    %c0_i32 = arith.constant 0 : i32
    %c0_i32_0 = arith.constant 0 : i32
    return %c0_i32, %arg0 : i32, i32
  }
}

</mosaic_0001>

<llo_original>
// kernel: tpu_custom_call.1
$region0: #{tpu_custom_call.1}
  #allocation0 [shape = 'u32[]', space=smem, size = 0x4, offset = 0x4, fixed_abs, tag = 'smem constant byte address 0x4 - core index']
  #allocation1 [shape = 'u32[72,128]{1,0:T(1,128)}', space=vmem, size = 0x9000, scoped, tag = 'internal scratch']
  %s0 = inlined_call_operand.vmem [shape: f32[3,1024], index: 0, kind: input, shape index: {}]
  %s1 = inlined_call_operand.vmem [shape: f32[128,3], index: 1, kind: input, shape index: {}]
  %s2 = inlined_call_operand.hbm [shape: bf16[7,128,128], index: 2, kind: input, shape index: {}]
  %s3 = inlined_call_operand.vmem [shape: bf16[8,128], index: 3, kind: input, shape index: {}]
  %s4 = inlined_call_operand.vmem [shape: f32[128,9], index: 4, kind: input, shape index: {}]
  %s5 = inlined_call_operand.hbm [shape: f32[3,1024], index: 5, kind: output, shape index: {}]
  %s6 = sld [smem:[#allocation0]]
  $region57: #{tpu_custom_call.1} parent=0
    _
  %s8 = ssub.s32 1, %s6
  %s9 = scalar_select 0, %s8, %s6
  $region1: #{tpu_custom_call.1} parent=0
    #allocation2 [shape = 'u8[229376]{0}', space=vmem, size = 0x38000, scoped, tag = 'input window, operand 2, single buffered']
    #allocation3 [shape = 's32[2]{0}', space=sflag, size = 0x8, scoped, tag = 'scoped memory for tpu_custom_call.1']
    #allocation4 [shape = 's32[2]{0}', space=sflag, size = 0x8, scoped, tag = 'scoped memory for tpu_custom_call.1']
    #allocation5 [shape = 'u8[16384]{0}', space=vmem, size = 0x4000, scoped, tag = 'output window, operand 0']
    %10 = vsyncpa [#allocation3], 0
    %11 = vsyncpa [#allocation4], 0
    %s12 = scalar_lea.sflag [#allocation4], 1
    %13 = vsyncpa %s12, 0
    loop: start=0, step=1, limit=4
    $region2: #{tpu_custom_call.1} parent=1 // loop_pre_header
      _
    $region3: #{tpu_custom_call.1} parent=1 // loop_header
      %s15 = sphi 0, %s19
      %p16 = scmp.ge.s32.totalorder %s15, 4
      %s25 = sphi 0, %s27
      %s28 = sphi 0, %s25
      %s29 = sphi 0, %s28
      %s45 = sphi 0, %s29
      %s49 = sphi 0, %s49
      %s51 = sphi 0, %s49
      %s52 = sphi 0, %s51
      %s66 = sphi 0, %s52
      %s70 = sphi 0, %s70
      %s72 = sphi 0, %s70
      %s73 = sphi 0, %s72
      %s87 = sphi 0, %s73
      %s91 = sphi 0, %s91
      %s93 = sphi 0, %s91
      %s94 = sphi 0, %s93
      %s108 = sphi 0, %s94
      %s112 = sphi 0, %s112
      %s114 = sphi 0, %s112
      %s115 = sphi 0, %s114
      %s129 = sphi 0, %s115
      %s135 = sphi 0, %s137
      %s138 = sphi 0, %s135
      %s139 = sphi 0, %s138
      %s155 = sphi 0, %s139
    $region4: #{tpu_custom_call.1} parent=1 // loop_header_branch
      %18 = sbr.rel (%p16) target = $region8
    $region5: #{tpu_custom_call.1} parent=1 // loop_body
      %s20 = ssub.s32 %s15, 1
      %s21 = ssub.s32 %s15, 2
      %s22 = sadd.s32 %s15, 1
      %s23 = ssub.s32 %s15, %s22
      %p24 = scmp.eq.s32.totalorder %s23, 0
      %s26 = sadd.s32 %s25, 1
      %s27 = scalar_select %p24, %s25, %s26
      %p30 = pneg %p24
      %p31 = scmp.eq.s32.totalorder %s15, 1
      %p32 = por %p30, %p31
      %p33 = scmp.ne.s32.totalorder %s25, %s28
      %p34 = scmp.eq.s32.totalorder %s15, 0
      %p35 = por %p33, %p34
      %p36 = scmp.ne.s32.totalorder %s25, %s28
      %p37 = scmp.eq.s32.totalorder %s20, 1
      %p38 = por %p36, %p37
      %p39 = scmp.ne.s32.totalorder %s28, %s29
      %p40 = scmp.eq.s32.totalorder %s20, 0
      %p41 = por %p39, %p40
      %p42 = scmp.ne.s32.totalorder %s28, %s29
      %p43 = scmp.eq.s32.totalorder %s21, 1
      %p44 = por %p42, %p43
      %p46 = scmp.ne.s32.totalorder %s29, %s45
      %p47 = scmp.eq.s32.totalorder %s21, 0
      %p48 = por %p46, %p47
      %s50 = sadd.s32 %s49, 1
      %p53 = scmp.eq.s32.totalorder %s15, 1
      %p54 = scmp.ne.s32.totalorder %s49, %s51
      %p55 = scmp.eq.s32.totalorder %s15, 0
      %p56 = por %p54, %p55
      %p57 = scmp.ne.s32.totalorder %s49, %s51
      %p58 = scmp.eq.s32.totalorder %s20, 1
      %p59 = por %p57, %p58
      %p60 = scmp.ne.s32.totalorder %s51, %s52
      %p61 = scmp.eq.s32.totalorder %s20, 0
      %p62 = por %p60, %p61
      %p63 = scmp.ne.s32.totalorder %s51, %s52
      %p64 = scmp.eq.s32.totalorder %s21, 1
      %p65 = por %p63, %p64
      %p67 = scmp.ne.s32.totalorder %s52, %s66
      %p68 = scmp.eq.s32.totalorder %s21, 0
      %p69 = por %p67, %p68
      %s71 = sadd.s32 %s70, 1
      %p74 = scmp.eq.s32.totalorder %s15, 1
      %p75 = scmp.ne.s32.totalorder %s70, %s72
      %p76 = scmp.eq.s32.totalorder %s15, 0
      %p77 = por %p75, %p76
      %p78 = scmp.ne.s32.totalorder %s70, %s72
      %p79 = scmp.eq.s32.totalorder %s20, 1
      %p80 = por %p78, %p79
      %p81 = scmp.ne.s32.totalorder %s72, %s73
      %p82 = scmp.eq.s32.totalorder %s20, 0
      %p83 = por %p81, %p82
      %p84 = scmp.ne.s32.totalorder %s72, %s73
      %p85 = scmp.eq.s32.totalorder %s21, 1
      %p86 = por %p84, %p85
      %p88 = scmp.ne.s32.totalorder %s73, %s87
      %p89 = scmp.eq.s32.totalorder %s21, 0
      %p90 = por %p88, %p89
      %s92 = sadd.s32 %s91, 1
      %p95 = scmp.eq.s32.totalorder %s15, 1
      %p96 = scmp.ne.s32.totalorder %s91, %s93
      %p97 = scmp.eq.s32.totalorder %s15, 0
      %p98 = por %p96, %p97
      %p99 = scmp.ne.s32.totalorder %s91, %s93
      %p100 = scmp.eq.s32.totalorder %s20, 1
      %p101 = por %p99, %p100
      %p102 = scmp.ne.s32.totalorder %s93, %s94
      %p103 = scmp.eq.s32.totalorder %s20, 0
      %p104 = por %p102, %p103
      %p105 = scmp.ne.s32.totalorder %s93, %s94
      %p106 = scmp.eq.s32.totalorder %s21, 1
      %p107 = por %p105, %p106
      %p109 = scmp.ne.s32.totalorder %s94, %s108
      %p110 = scmp.eq.s32.totalorder %s21, 0
      %p111 = por %p109, %p110
      %s113 = sadd.s32 %s112, 1
      %p116 = scmp.eq.s32.totalorder %s15, 1
      %p117 = scmp.ne.s32.totalorder %s112, %s114
      %p118 = scmp.eq.s32.totalorder %s15, 0
      %p119 = por %p117, %p118
      %p120 = scmp.ne.s32.totalorder %s112, %s114
      %p121 = scmp.eq.s32.totalorder %s20, 1
      %p122 = por %p120, %p121
      %p123 = scmp.ne.s32.totalorder %s114, %s115
      %p124 = scmp.eq.s32.totalorder %s20, 0
      %p125 = por %p123, %p124
      %p126 = scmp.ne.s32.totalorder %s114, %s115
      %p127 = scmp.eq.s32.totalorder %s21, 1
      %p128 = por %p126, %p127
      %p130 = scmp.ne.s32.totalorder %s115, %s129
      %p131 = scmp.eq.s32.totalorder %s21, 0
      %p132 = por %p130, %p131
      %s133 = ssub.s32 %s15, %s22
      %p134 = scmp.eq.s32.totalorder %s133, 0
      %s136 = sadd.s32 %s135, 1
      %s137 = scalar_select %p134, %s135, %s136
      %p140 = pneg %p134
      %p141 = scmp.eq.s32.totalorder %s15, 1
      %p142 = por %p140, %p141
      %p143 = scmp.ne.s32.totalorder %s135, %s138
      %p144 = scmp.eq.s32.totalorder %s15, 0
      %p145 = por %p143, %p144
      %p146 = scmp.ne.s32.totalorder %s135, %s138
      %p147 = scmp.eq.s32.totalorder %s20, 1
      %p148 = por %p146, %p147
      %p149 = scmp.ne.s32.totalorder %s138, %s139
      %p150 = scmp.eq.s32.totalorder %s20, 0
      %p151 = por %p149, %p150
      %p152 = scmp.ne.s32.totalorder %s138, %s139
      %p153 = scmp.eq.s32.totalorder %s21, 1
      %p154 = por %p152, %p153
      %p156 = scmp.ne.s32.totalorder %s139, %s155
      %p157 = scmp.eq.s32.totalorder %s21, 0
      %p158 = por %p156, %p157
      %p159 = scmp.le.s32.totalorder 1, %s15
      %p160 = scmp.lt.s32.totalorder %s15, 3
      %p161 = pnand %p159, %p160
      %p162 = pneg %p161
      // Predicated region
      $region9: #{tpu_custom_call.1} parent=5 // pred_check
        _
      $region10: #{tpu_custom_call.1} parent=5 // pred_check_branch
        %164 = sbr.rel (%p161) target = $region12
      $region11: #{tpu_custom_call.1} parent=5 // pred_region
        %s165 = ssub.s32 %s15, 1
        // Predicated region
        $region13: #{tpu_custom_call.1} parent=11 // pred_check
          %p166 = pneg %p62
        $region14: #{tpu_custom_call.1} parent=11 // pred_check_branch
          %168 = sbr.rel (%p166) target = $region16
        $region15: #{tpu_custom_call.1} parent=11 // pred_region
          _
        $region16: #{tpu_custom_call.1} parent=11 // pred_fallthru
          _
        // Predicated region
        $region17: #{tpu_custom_call.1} parent=11 // pred_check
          %p169 = pneg %p83
        $region18: #{tpu_custom_call.1} parent=11 // pred_check_branch
          %171 = sbr.rel (%p169) target = $region20
        $region19: #{tpu_custom_call.1} parent=11 // pred_region
          %173 = vsyncadd [#allocation3], 0
          %s174 = sshll.u32 %s2, 4
          %s175 = int_to_ptr.hbm [resolvable:$true] %s174
          %s176 = sshll.u32 [#allocation2], 4
          %s177 = int_to_ptr.vmem [resolvable:$true] %s176
          %182 = dma.hbm_to_vmem [thread:$0]  %s175, 7168, %s177, [#allocation3], 64, 64, 4
        $region20: #{tpu_custom_call.1} parent=11 // pred_fallthru
          _
        // Predicated region
        $region21: #{tpu_custom_call.1} parent=11 // pred_check
          %p183 = pneg %p104
        $region22: #{tpu_custom_call.1} parent=11 // pred_check_branch
          %185 = sbr.rel (%p183) target = $region24
        $region23: #{tpu_custom_call.1} parent=11 // pred_region
          _
        $region24: #{tpu_custom_call.1} parent=11 // pred_fallthru
          _
        // Predicated region
        $region25: #{tpu_custom_call.1} parent=11 // pred_check
          %p186 = pneg %p125
        $region26: #{tpu_custom_call.1} parent=11 // pred_check_branch
          %188 = sbr.rel (%p186) target = $region28
        $region27: #{tpu_custom_call.1} parent=11 // pred_region
          _
        $region28: #{tpu_custom_call.1} parent=11 // pred_fallthru
          _
      $region12: #{tpu_custom_call.1} parent=5 // pred_fallthru
        _
      %p189 = scmp.lt.s32.totalorder %s15, 2
      // Predicated region
      $region29: #{tpu_custom_call.1} parent=5 // pred_check
        %p190 = pneg %p189
      $region30: #{tpu_custom_call.1} parent=5 // pred_check_branch
        %192 = sbr.rel (%p190) target = $region32
      $region31: #{tpu_custom_call.1} parent=5 // pred_region
        // Predicated region
        $region33: #{tpu_custom_call.1} parent=31 // pred_check
          %p193 = pneg %p35
        $region34: #{tpu_custom_call.1} parent=31 // pred_check_branch
          %195 = sbr.rel (%p193) target = $region36
        $region35: #{tpu_custom_call.1} parent=31 // pred_region
          %s196 = smul.u32 4, %s15
          %p197 = scmp.lt.s32.totalorder %s196, 7
          %s198 = scalar_select %p197, %s196, 7
          %s199 = smul.addr %s198, 4
          %s200 = scalar_lea.vmem %s0, %s199
          %s201 = smul.u32 4, %s15
        $region36: #{tpu_custom_call.1} parent=31 // pred_fallthru
          _
      $region32: #{tpu_custom_call.1} parent=5 // pred_fallthru
        _
      %p202 = scmp.le.s32.totalorder 1, %s15
      %p203 = scmp.lt.s32.totalorder %s15, 3
      %p204 = pnand %p202, %p203
      %p205 = pneg %p204
      // Predicated region
      $region37: #{tpu_custom_call.1} parent=5 // pred_check
        _
      $region38: #{tpu_custom_call.1} parent=5 // pred_check_branch
        %207 = sbr.rel (%p204) target = $region40
      $region39: #{tpu_custom_call.1} parent=5 // pred_region
        %s208 = ssub.s32 %s15, 1
        // Predicated region
        $region41: #{tpu_custom_call.1} parent=39 // pred_check
          %p209 = pneg %p83
        $region42: #{tpu_custom_call.1} parent=39 // pred_check_branch
          %211 = sbr.rel (%p209) target = $region44
        $region43: #{tpu_custom_call.1} parent=39 // pred_region
          %213 = dma.done [#allocation3], 7168
        $region44: #{tpu_custom_call.1} parent=39 // pred_fallthru
          _
        %s214 = smul.u32 4, %s20
        %p215 = scmp.lt.s32.totalorder %s214, 7
        %s216 = scalar_select %p215, %s214, 7
        %s217 = smul.addr %s216, 4
        %s218 = scalar_lea.vmem %s0, %s217
        %p219 = pneg %p41
        %p220 = pneg %p38
        %p221 = pneg %p62
        %p222 = pneg %p59
        %p223 = pneg %p83
        %p224 = pneg %p80
        %p225 = pneg %p104
        %p226 = pneg %p101
        %p227 = pneg %p125
        %p228 = pneg %p122
        %p229 = pneg %p151
        %p230 = pneg %p148
        %s231 = sand.u32 %s138, 1
        %s232 = scalar_lea.sflag [#allocation4], %s231
        %s233 = sand.u32 %s138, 1
        %s234 = smul.addr %s233, 16
        %s235 = scalar_lea.vmem [#allocation5], %s234
        %s236 = smul.u32 4, %s20
        %p237 = scmp.lt.s32.totalorder %s236, 7
        %s238 = scalar_select %p237, %s236, 7
        %s239 = smul.addr %s238, 4
        %s240 = scalar_lea.vmem %s0, %s239
        %s241 = smul.u32 4, %s20
        %s242 = smul.u32 4, %s20
        %v243 = vld [vmem:[%s240] sm:$0x77]
        %v244 = vld [vmem:[%s240 + $0x8] sm:$0x77]
        %v245 = vld [vmem:[%s1] sm:$0xff]
        %v246 = vld [vmem:[%s1 + $0x8] sm:$0xff]
        %v247 = vld [vmem:[%s1 + $0x10] sm:$0xff]
        %v248 = vld [vmem:[%s1 + $0x18] sm:$0xff]
        %v249 = vld [vmem:[%s1 + $0x20] sm:$0xff]
        %v250 = vld [vmem:[%s1 + $0x28] sm:$0xff]
        %v251 = vld [vmem:[%s1 + $0x30] sm:$0xff]
        %v252 = vld [vmem:[%s1 + $0x38] sm:$0xff]
        %v253 = vld [vmem:[%s1 + $0x40] sm:$0xff]
        %v254 = vld [vmem:[%s1 + $0x48] sm:$0xff]
        %v255 = vld [vmem:[%s1 + $0x50] sm:$0xff]
        %v256 = vld [vmem:[%s1 + $0x58] sm:$0xff]
        %v257 = vld [vmem:[%s1 + $0x60] sm:$0xff]
        %v258 = vld [vmem:[%s1 + $0x68] sm:$0xff]
        %v259 = vld [vmem:[%s1 + $0x70] sm:$0xff]
        %v260 = vld [vmem:[%s1 + $0x78] sm:$0xff]
        %v261 = vld [vmem:[%s4] sm:$0xff]
        %v262 = vld [vmem:[%s4 + $0x8] sm:$0xff]
        %v263 = vld [vmem:[%s4 + $0x10] sm:$0xff]
        %v264 = vld [vmem:[%s4 + $0x18] sm:$0xff]
        %v265 = vld [vmem:[%s4 + $0x20] sm:$0xff]
        %v266 = vld [vmem:[%s4 + $0x28] sm:$0xff]
        %v267 = vld [vmem:[%s4 + $0x30] sm:$0xff]
        %v268 = vld [vmem:[%s4 + $0x38] sm:$0xff]
        %v269 = vld [vmem:[%s4 + $0x40] sm:$0xff]
        %v270 = vld [vmem:[%s4 + $0x48] sm:$0xff]
        %v271 = vld [vmem:[%s4 + $0x50] sm:$0xff]
        %v272 = vld [vmem:[%s4 + $0x58] sm:$0xff]
        %v273 = vld [vmem:[%s4 + $0x60] sm:$0xff]
        %v274 = vld [vmem:[%s4 + $0x68] sm:$0xff]
        %v275 = vld [vmem:[%s4 + $0x70] sm:$0xff]
        %v276 = vld [vmem:[%s4 + $0x78] sm:$0xff]
        %278 = vset.pattern.permute.xlu0 0
        %279 = vperm.xlu0 %278, %v245
        %v280 = vpop.permute.xlu0 %279
        %283 = vset.pattern.permute.xlu0 0
        %284 = vperm.xlu0 %283, %v246
        %v285 = vpop.permute.xlu0 %284
        %288 = vset.pattern.permute.xlu0 0
        %289 = vperm.xlu0 %288, %v247
        %v290 = vpop.permute.xlu0 %289
        %293 = vset.pattern.permute.xlu0 0
        %294 = vperm.xlu0 %293, %v248
        %v295 = vpop.permute.xlu0 %294
        %298 = vset.pattern.permute.xlu0 0
        %299 = vperm.xlu0 %298, %v249
        %v300 = vpop.permute.xlu0 %299
        %303 = vset.pattern.permute.xlu0 0
        %304 = vperm.xlu0 %303, %v250
        %v305 = vpop.permute.xlu0 %304
        %308 = vset.pattern.permute.xlu0 0
        %309 = vperm.xlu0 %308, %v251
        %v310 = vpop.permute.xlu0 %309
        %313 = vset.pattern.permute.xlu0 0
        %314 = vperm.xlu0 %313, %v252
        %v315 = vpop.permute.xlu0 %314
        %318 = vset.pattern.permute.xlu0 0
        %319 = vperm.xlu0 %318, %v253
        %v320 = vpop.permute.xlu0 %319
        %323 = vset.pattern.permute.xlu0 0
        %324 = vperm.xlu0 %323, %v254
        %v325 = vpop.permute.xlu0 %324
        %328 = vset.pattern.permute.xlu0 0
        %329 = vperm.xlu0 %328, %v255
        %v330 = vpop.permute.xlu0 %329
        %333 = vset.pattern.permute.xlu0 0
        %334 = vperm.xlu0 %333, %v256
        %v335 = vpop.permute.xlu0 %334
        %338 = vset.pattern.permute.xlu0 0
        %339 = vperm.xlu0 %338, %v257
        %v340 = vpop.permute.xlu0 %339
        %343 = vset.pattern.permute.xlu0 0
        %344 = vperm.xlu0 %343, %v258
        %v345 = vpop.permute.xlu0 %344
        %348 = vset.pattern.permute.xlu0 0
        %349 = vperm.xlu0 %348, %v259
        %v350 = vpop.permute.xlu0 %349
        %353 = vset.pattern.permute.xlu0 0
        %354 = vperm.xlu0 %353, %v260
        %v355 = vpop.permute.xlu0 %354
        %v359 = vperm.slane %v243, 0
        %v360 = vperm.slane %v243, 4
        %v361 = vperm.slane %v244, 0
        %v362 = vperm.slane %v244, 4
        %v367 = vperm.slane %v359, 0
        %v368 = vperm.slane %v360, 0
        %v369 = vperm.slane %v361, 0
        %v370 = vperm.slane %v362, 0
        %v371 = vmul.f32 %v280, %v367
        %v372 = vmul.f32 %v280, %v368
        %v373 = vmul.f32 %v280, %v369
        %v374 = vmul.f32 %v280, %v370
        %v375 = vmul.f32 %v285, %v367
        %v376 = vmul.f32 %v285, %v368
        %v377 = vmul.f32 %v285, %v369
        %v378 = vmul.f32 %v285, %v370
        %v379 = vmul.f32 %v290, %v367
        %v380 = vmul.f32 %v290, %v368
        %v381 = vmul.f32 %v290, %v369
        %v382 = vmul.f32 %v290, %v370
        %v383 = vmul.f32 %v295, %v367
        %v384 = vmul.f32 %v295, %v368
        %v385 = vmul.f32 %v295, %v369
        %v386 = vmul.f32 %v295, %v370
        %v387 = vmul.f32 %v300, %v367
        %v388 = vmul.f32 %v300, %v368
        %v389 = vmul.f32 %v300, %v369
        %v390 = vmul.f32 %v300, %v370
        %v391 = vmul.f32 %v305, %v367
        %v392 = vmul.f32 %v305, %v368
        %v393 = vmul.f32 %v305, %v369
        %v394 = vmul.f32 %v305, %v370
        %v395 = vmul.f32 %v310, %v367
        %v396 = vmul.f32 %v310, %v368
        %v397 = vmul.f32 %v310, %v369
        %v398 = vmul.f32 %v310, %v370
        %v399 = vmul.f32 %v315, %v367
        %v400 = vmul.f32 %v315, %v368
        %v401 = vmul.f32 %v315, %v369
        %v402 = vmul.f32 %v315, %v370
        %v403 = vmul.f32 %v320, %v367
        %v404 = vmul.f32 %v320, %v368
        %v405 = vmul.f32 %v320, %v369
        %v406 = vmul.f32 %v320, %v370
        %v407 = vmul.f32 %v325, %v367
        %v408 = vmul.f32 %v325, %v368
        %v409 = vmul.f32 %v325, %v369
        %v410 = vmul.f32 %v325, %v370
        %v411 = vmul.f32 %v330, %v367
        %v412 = vmul.f32 %v330, %v368
        %v413 = vmul.f32 %v330, %v369
        %v414 = vmul.f32 %v330, %v370
        %v415 = vmul.f32 %v335, %v367
        %v416 = vmul.f32 %v335, %v368
        %v417 = vmul.f32 %v335, %v369
        %v418 = vmul.f32 %v335, %v370
        %v419 = vmul.f32 %v340, %v367
        %v420 = vmul.f32 %v340, %v368
        %v421 = vmul.f32 %v340, %v369
        %v422 = vmul.f32 %v340, %v370
        %v423 = vmul.f32 %v345, %v367
        %v424 = vmul.f32 %v345, %v368
        %v425 = vmul.f32 %v345, %v369
        %v426 = vmul.f32 %v345, %v370
        %v427 = vmul.f32 %v350, %v367
        %v428 = vmul.f32 %v350, %v368
        %v429 = vmul.f32 %v350, %v369
        %v430 = vmul.f32 %v350, %v370
        %v431 = vmul.f32 %v355, %v367
        %v432 = vmul.f32 %v355, %v368
        %v433 = vmul.f32 %v355, %v369
        %v434 = vmul.f32 %v355, %v370
        %436 = vset.pattern.permute.xlu0 0
        %437 = vperm.xlu0 %436, %v261
        %v438 = vpop.permute.xlu0 %437
        %441 = vset.pattern.permute.xlu0 0
        %442 = vperm.xlu0 %441, %v262
        %v443 = vpop.permute.xlu0 %442
        %446 = vset.pattern.permute.xlu0 0
        %447 = vperm.xlu0 %446, %v263
        %v448 = vpop.permute.xlu0 %447
        %451 = vset.pattern.permute.xlu0 0
        %452 = vperm.xlu0 %451, %v264
        %v453 = vpop.permute.xlu0 %452
        %456 = vset.pattern.permute.xlu0 0
        %457 = vperm.xlu0 %456, %v265
        %v458 = vpop.permute.xlu0 %457
        %461 = vset.pattern.permute.xlu0 0
        %462 = vperm.xlu0 %461, %v266
        %v463 = vpop.permute.xlu0 %462
        %466 = vset.pattern.permute.xlu0 0
        %467 = vperm.xlu0 %466, %v267
        %v468 = vpop.permute.xlu0 %467
        %471 = vset.pattern.permute.xlu0 0
        %472 = vperm.xlu0 %471, %v268
        %v473 = vpop.permute.xlu0 %472
        %476 = vset.pattern.permute.xlu0 0
        %477 = vperm.xlu0 %476, %v269
        %v478 = vpop.permute.xlu0 %477
        %481 = vset.pattern.permute.xlu0 0
        %482 = vperm.xlu0 %481, %v270
        %v483 = vpop.permute.xlu0 %482
        %486 = vset.pattern.permute.xlu0 0
        %487 = vperm.xlu0 %486, %v271
        %v488 = vpop.permute.xlu0 %487
        %491 = vset.pattern.permute.xlu0 0
        %492 = vperm.xlu0 %491, %v272
        %v493 = vpop.permute.xlu0 %492
        %496 = vset.pattern.permute.xlu0 0
        %497 = vperm.xlu0 %496, %v273
        %v498 = vpop.permute.xlu0 %497
        %501 = vset.pattern.permute.xlu0 0
        %502 = vperm.xlu0 %501, %v274
        %v503 = vpop.permute.xlu0 %502
        %506 = vset.pattern.permute.xlu0 0
        %507 = vperm.xlu0 %506, %v275
        %v508 = vpop.permute.xlu0 %507
        %511 = vset.pattern.permute.xlu0 0
        %512 = vperm.xlu0 %511, %v276
        %v513 = vpop.permute.xlu0 %512
        %v515 = vadd.f32 %v438, %v371
        %v516 = vadd.f32 %v438, %v372
        %v517 = vadd.f32 %v438, %v373
        %v518 = vadd.f32 %v438, %v374
        %v519 = vadd.f32 %v443, %v375
        %v520 = vadd.f32 %v443, %v376
        %v521 = vadd.f32 %v443, %v377
        %v522 = vadd.f32 %v443, %v378
        %v523 = vadd.f32 %v448, %v379
        %v524 = vadd.f32 %v448, %v380
        %v525 = vadd.f32 %v448, %v381
        %v526 = vadd.f32 %v448, %v382
        %v527 = vadd.f32 %v453, %v383
        %v528 = vadd.f32 %v453, %v384
        %v529 = vadd.f32 %v453, %v385
        %v530 = vadd.f32 %v453, %v386
        %v531 = vadd.f32 %v458, %v387
        %v532 = vadd.f32 %v458, %v388
        %v533 = vadd.f32 %v458, %v389
        %v534 = vadd.f32 %v458, %v390
        %v535 = vadd.f32 %v463, %v391
        %v536 = vadd.f32 %v463, %v392
        %v537 = vadd.f32 %v463, %v393
        %v538 = vadd.f32 %v463, %v394
        %v539 = vadd.f32 %v468, %v395
        %v540 = vadd.f32 %v468, %v396
        %v541 = vadd.f32 %v468, %v397
        %v542 = vadd.f32 %v468, %v398
        %v543 = vadd.f32 %v473, %v399
        %v544 = vadd.f32 %v473, %v400
        %v545 = vadd.f32 %v473, %v401
        %v546 = vadd.f32 %v473, %v402
        %v547 = vadd.f32 %v478, %v403
        %v548 = vadd.f32 %v478, %v404
        %v549 = vadd.f32 %v478, %v405
        %v550 = vadd.f32 %v478, %v406
        %v551 = vadd.f32 %v483, %v407
        %v552 = vadd.f32 %v483, %v408
        %v553 = vadd.f32 %v483, %v409
        %v554 = vadd.f32 %v483, %v410
        %v555 = vadd.f32 %v488, %v411
        %v556 = vadd.f32 %v488, %v412
        %v557 = vadd.f32 %v488, %v413
        %v558 = vadd.f32 %v488, %v414
        %v559 = vadd.f32 %v493, %v415
        %v560 = vadd.f32 %v493, %v416
        %v561 = vadd.f32 %v493, %v417
        %v562 = vadd.f32 %v493, %v418
        %v563 = vadd.f32 %v498, %v419
        %v564 = vadd.f32 %v498, %v420
        %v565 = vadd.f32 %v498, %v421
        %v566 = vadd.f32 %v498, %v422
        %v567 = vadd.f32 %v503, %v423
        %v568 = vadd.f32 %v503, %v424
        %v569 = vadd.f32 %v503, %v425
        %v570 = vadd.f32 %v503, %v426
        %v571 = vadd.f32 %v508, %v427
        %v572 = vadd.f32 %v508, %v428
        %v573 = vadd.f32 %v508, %v429
        %v574 = vadd.f32 %v508, %v430
        %v575 = vadd.f32 %v513, %v431
        %v576 = vadd.f32 %v513, %v432
        %v577 = vadd.f32 %v513, %v433
        %v578 = vadd.f32 %v513, %v434
        %579 = vset.pattern.permute.xlu0 1
        %580 = vperm.xlu0 %579, %v245
        %v581 = vpop.permute.xlu0 %580
        %583 = vset.pattern.permute.xlu0 1
        %584 = vperm.xlu0 %583, %v246
        %v585 = vpop.permute.xlu0 %584
        %587 = vset.pattern.permute.xlu0 1
        %588 = vperm.xlu0 %587, %v247
        %v589 = vpop.permute.xlu0 %588
        %591 = vset.pattern.permute.xlu0 1
        %592 = vperm.xlu0 %591, %v248
        %v593 = vpop.permute.xlu0 %592
        %595 = vset.pattern.permute.xlu0 1
        %596 = vperm.xlu0 %595, %v249
        %v597 = vpop.permute.xlu0 %596
        %599 = vset.pattern.permute.xlu0 1
        %600 = vperm.xlu0 %599, %v250
        %v601 = vpop.permute.xlu0 %600
        %603 = vset.pattern.permute.xlu0 1
        %604 = vperm.xlu0 %603, %v251
        %v605 = vpop.permute.xlu0 %604
        %607 = vset.pattern.permute.xlu0 1
        %608 = vperm.xlu0 %607, %v252
        %v609 = vpop.permute.xlu0 %608
        %611 = vset.pattern.permute.xlu0 1
        %612 = vperm.xlu0 %611, %v253
        %v613 = vpop.permute.xlu0 %612
        %615 = vset.pattern.permute.xlu0 1
        %616 = vperm.xlu0 %615, %v254
        %v617 = vpop.permute.xlu0 %616
        %619 = vset.pattern.permute.xlu0 1
        %620 = vperm.xlu0 %619, %v255
        %v621 = vpop.permute.xlu0 %620
        %623 = vset.pattern.permute.xlu0 1
        %624 = vperm.xlu0 %623, %v256
        %v625 = vpop.permute.xlu0 %624
        %627 = vset.pattern.permute.xlu0 1
        %628 = vperm.xlu0 %627, %v257
        %v629 = vpop.permute.xlu0 %628
        %631 = vset.pattern.permute.xlu0 1
        %632 = vperm.xlu0 %631, %v258
        %v633 = vpop.permute.xlu0 %632
        %635 = vset.pattern.permute.xlu0 1
        %636 = vperm.xlu0 %635, %v259
        %v637 = vpop.permute.xlu0 %636
        %639 = vset.pattern.permute.xlu0 1
        %640 = vperm.xlu0 %639, %v260
        %v641 = vpop.permute.xlu0 %640
        %v643 = vperm.slane %v243, 1
        %v644 = vperm.slane %v243, 5
        %v645 = vperm.slane %v244, 1
        %v646 = vperm.slane %v244, 5
        %v651 = vperm.slane %v643, 1
        %v652 = vperm.slane %v644, 1
        %v653 = vperm.slane %v645, 1
        %v654 = vperm.slane %v646, 1
        %v655 = vmul.f32 %v581, %v651
        %v656 = vmul.f32 %v581, %v652
        %v657 = vmul.f32 %v581, %v653
        %v658 = vmul.f32 %v581, %v654
        %v659 = vmul.f32 %v585, %v651
        %v660 = vmul.f32 %v585, %v652
        %v661 = vmul.f32 %v585, %v653
        %v662 = vmul.f32 %v585, %v654
        %v663 = vmul.f32 %v589, %v651
        %v664 = vmul.f32 %v589, %v652
        %v665 = vmul.f32 %v589, %v653
        %v666 = vmul.f32 %v589, %v654
        %v667 = vmul.f32 %v593, %v651
        %v668 = vmul.f32 %v593, %v652
        %v669 = vmul.f32 %v593, %v653
        %v670 = vmul.f32 %v593, %v654
        %v671 = vmul.f32 %v597, %v651
        %v672 = vmul.f32 %v597, %v652
        %v673 = vmul.f32 %v597, %v653
        %v674 = vmul.f32 %v597, %v654
        %v675 = vmul.f32 %v601, %v651
        %v676 = vmul.f32 %v601, %v652
        %v677 = vmul.f32 %v601, %v653
        %v678 = vmul.f32 %v601, %v654
        %v679 = vmul.f32 %v605, %v651
        %v680 = vmul.f32 %v605, %v652
        %v681 = vmul.f32 %v605, %v653
        %v682 = vmul.f32 %v605, %v654
        %v683 = vmul.f32 %v609, %v651
        %v684 = vmul.f32 %v609, %v652
        %v685 = vmul.f32 %v609, %v653
        %v686 = vmul.f32 %v609, %v654
        %v687 = vmul.f32 %v613, %v651
        %v688 = vmul.f32 %v613, %v652
        %v689 = vmul.f32 %v613, %v653
        %v690 = vmul.f32 %v613, %v654
        %v691 = vmul.f32 %v617, %v651
        %v692 = vmul.f32 %v617, %v652
        %v693 = vmul.f32 %v617, %v653
        %v694 = vmul.f32 %v617, %v654
        %v695 = vmul.f32 %v621, %v651
        %v696 = vmul.f32 %v621, %v652
        %v697 = vmul.f32 %v621, %v653
        %v698 = vmul.f32 %v621, %v654
        %v699 = vmul.f32 %v625, %v651
        %v700 = vmul.f32 %v625, %v652
        %v701 = vmul.f32 %v625, %v653
        %v702 = vmul.f32 %v625, %v654
        %v703 = vmul.f32 %v629, %v651
        %v704 = vmul.f32 %v629, %v652
        %v705 = vmul.f32 %v629, %v653
        %v706 = vmul.f32 %v629, %v654
        %v707 = vmul.f32 %v633, %v651
        %v708 = vmul.f32 %v633, %v652
        %v709 = vmul.f32 %v633, %v653
        %v710 = vmul.f32 %v633, %v654
        %v711 = vmul.f32 %v637, %v651
        %v712 = vmul.f32 %v637, %v652
        %v713 = vmul.f32 %v637, %v653
        %v714 = vmul.f32 %v637, %v654
        %v715 = vmul.f32 %v641, %v651
        %v716 = vmul.f32 %v641, %v652
        %v717 = vmul.f32 %v641, %v653
        %v718 = vmul.f32 %v641, %v654
        %v719 = vadd.f32 %v515, %v655
        %v720 = vadd.f32 %v516, %v656
        %v721 = vadd.f32 %v517, %v657
        %v722 = vadd.f32 %v518, %v658
        %v723 = vadd.f32 %v519, %v659
        %v724 = vadd.f32 %v520, %v660
        %v725 = vadd.f32 %v521, %v661
        %v726 = vadd.f32 %v522, %v662
        %v727 = vadd.f32 %v523, %v663
        %v728 = vadd.f32 %v524, %v664
        %v729 = vadd.f32 %v525, %v665
        %v730 = vadd.f32 %v526, %v666
        %v731 = vadd.f32 %v527, %v667
        %v732 = vadd.f32 %v528, %v668
        %v733 = vadd.f32 %v529, %v669
        %v734 = vadd.f32 %v530, %v670
        %v735 = vadd.f32 %v531, %v671
        %v736 = vadd.f32 %v532, %v672
        %v737 = vadd.f32 %v533, %v673
        %v738 = vadd.f32 %v534, %v674
        %v739 = vadd.f32 %v535, %v675
        %v740 = vadd.f32 %v536, %v676
        %v741 = vadd.f32 %v537, %v677
        %v742 = vadd.f32 %v538, %v678
        %v743 = vadd.f32 %v539, %v679
        %v744 = vadd.f32 %v540, %v680
        %v745 = vadd.f32 %v541, %v681
        %v746 = vadd.f32 %v542, %v682
        %v747 = vadd.f32 %v543, %v683
        %v748 = vadd.f32 %v544, %v684
        %v749 = vadd.f32 %v545, %v685
        %v750 = vadd.f32 %v546, %v686
        %v751 = vadd.f32 %v547, %v687
        %v752 = vadd.f32 %v548, %v688
        %v753 = vadd.f32 %v549, %v689
        %v754 = vadd.f32 %v550, %v690
        %v755 = vadd.f32 %v551, %v691
        %v756 = vadd.f32 %v552, %v692
        %v757 = vadd.f32 %v553, %v693
        %v758 = vadd.f32 %v554, %v694
        %v759 = vadd.f32 %v555, %v695
        %v760 = vadd.f32 %v556, %v696
        %v761 = vadd.f32 %v557, %v697
        %v762 = vadd.f32 %v558, %v698
        %v763 = vadd.f32 %v559, %v699
        %v764 = vadd.f32 %v560, %v700
        %v765 = vadd.f32 %v561, %v701
        %v766 = vadd.f32 %v562, %v702
        %v767 = vadd.f32 %v563, %v703
        %v768 = vadd.f32 %v564, %v704
        %v769 = vadd.f32 %v565, %v705
        %v770 = vadd.f32 %v566, %v706
        %v771 = vadd.f32 %v567, %v707
        %v772 = vadd.f32 %v568, %v708
        %v773 = vadd.f32 %v569, %v709
        %v774 = vadd.f32 %v570, %v710
        %v775 = vadd.f32 %v571, %v711
        %v776 = vadd.f32 %v572, %v712
        %v777 = vadd.f32 %v573, %v713
        %v778 = vadd.f32 %v574, %v714
        %v779 = vadd.f32 %v575, %v715
        %v780 = vadd.f32 %v576, %v716
        %v781 = vadd.f32 %v577, %v717
        %v782 = vadd.f32 %v578, %v718
        %783 = vset.pattern.permute.xlu0 2
        %784 = vperm.xlu0 %783, %v245
        %v785 = vpop.permute.xlu0 %784
        %787 = vset.pattern.permute.xlu0 2
        %788 = vperm.xlu0 %787, %v246
        %v789 = vpop.permute.xlu0 %788
        %791 = vset.pattern.permute.xlu0 2
        %792 = vperm.xlu0 %791, %v247
        %v793 = vpop.permute.xlu0 %792
        %795 = vset.pattern.permute.xlu0 2
        %796 = vperm.xlu0 %795, %v248
        %v797 = vpop.permute.xlu0 %796
        %799 = vset.pattern.permute.xlu0 2
        %800 = vperm.xlu0 %799, %v249
        %v801 = vpop.permute.xlu0 %800
        %803 = vset.pattern.permute.xlu0 2
        %804 = vperm.xlu0 %803, %v250
        %v805 = vpop.permute.xlu0 %804
        %807 = vset.pattern.permute.xlu0 2
        %808 = vperm.xlu0 %807, %v251
        %v809 = vpop.permute.xlu0 %808
        %811 = vset.pattern.permute.xlu0 2
        %812 = vperm.xlu0 %811, %v252
        %v813 = vpop.permute.xlu0 %812
        %815 = vset.pattern.permute.xlu0 2
        %816 = vperm.xlu0 %815, %v253
        %v817 = vpop.permute.xlu0 %816
        %819 = vset.pattern.permute.xlu0 2
        %820 = vperm.xlu0 %819, %v254
        %v821 = vpop.permute.xlu0 %820
        %823 = vset.pattern.permute.xlu0 2
        %824 = vperm.xlu0 %823, %v255
        %v825 = vpop.permute.xlu0 %824
        %827 = vset.pattern.permute.xlu0 2
        %828 = vperm.xlu0 %827, %v256
        %v829 = vpop.permute.xlu0 %828
        %831 = vset.pattern.permute.xlu0 2
        %832 = vperm.xlu0 %831, %v257
        %v833 = vpop.permute.xlu0 %832
        %835 = vset.pattern.permute.xlu0 2
        %836 = vperm.xlu0 %835, %v258
        %v837 = vpop.permute.xlu0 %836
        %839 = vset.pattern.permute.xlu0 2
        %840 = vperm.xlu0 %839, %v259
        %v841 = vpop.permute.xlu0 %840
        %843 = vset.pattern.permute.xlu0 2
        %844 = vperm.xlu0 %843, %v260
        %v845 = vpop.permute.xlu0 %844
        %v847 = vperm.slane %v243, 2
        %v848 = vperm.slane %v243, 6
        %v849 = vperm.slane %v244, 2
        %v850 = vperm.slane %v244, 6
        %v855 = vperm.slane %v847, 2
        %v856 = vperm.slane %v848, 2
        %v857 = vperm.slane %v849, 2
        %v858 = vperm.slane %v850, 2
        %v859 = vmul.f32 %v785, %v855
        %v860 = vmul.f32 %v785, %v856
        %v861 = vmul.f32 %v785, %v857
        %v862 = vmul.f32 %v785, %v858
        %v863 = vmul.f32 %v789, %v855
        %v864 = vmul.f32 %v789, %v856
        %v865 = vmul.f32 %v789, %v857
        %v866 = vmul.f32 %v789, %v858
        %v867 = vmul.f32 %v793, %v855
        %v868 = vmul.f32 %v793, %v856
        %v869 = vmul.f32 %v793, %v857
        %v870 = vmul.f32 %v793, %v858
        %v871 = vmul.f32 %v797, %v855
        %v872 = vmul.f32 %v797, %v856
        %v873 = vmul.f32 %v797, %v857
        %v874 = vmul.f32 %v797, %v858
        %v875 = vmul.f32 %v801, %v855
        %v876 = vmul.f32 %v801, %v856
        %v877 = vmul.f32 %v801, %v857
        %v878 = vmul.f32 %v801, %v858
        %v879 = vmul.f32 %v805, %v855
        %v880 = vmul.f32 %v805, %v856
        %v881 = vmul.f32 %v805, %v857
        %v882 = vmul.f32 %v805, %v858
        %v883 = vmul.f32 %v809, %v855
        %v884 = vmul.f32 %v809, %v856
        %v885 = vmul.f32 %v809, %v857
        %v886 = vmul.f32 %v809, %v858
        %v887 = vmul.f32 %v813, %v855
        %v888 = vmul.f32 %v813, %v856
        %v889 = vmul.f32 %v813, %v857
        %v890 = vmul.f32 %v813, %v858
        %v891 = vmul.f32 %v817, %v855
        %v892 = vmul.f32 %v817, %v856
        %v893 = vmul.f32 %v817, %v857
        %v894 = vmul.f32 %v817, %v858
        %v895 = vmul.f32 %v821, %v855
        %v896 = vmul.f32 %v821, %v856
        %v897 = vmul.f32 %v821, %v857
        %v898 = vmul.f32 %v821, %v858
        %v899 = vmul.f32 %v825, %v855
        %v900 = vmul.f32 %v825, %v856
        %v901 = vmul.f32 %v825, %v857
        %v902 = vmul.f32 %v825, %v858
        %v903 = vmul.f32 %v829, %v855
        %v904 = vmul.f32 %v829, %v856
        %v905 = vmul.f32 %v829, %v857
        %v906 = vmul.f32 %v829, %v858
        %v907 = vmul.f32 %v833, %v855
        %v908 = vmul.f32 %v833, %v856
        %v909 = vmul.f32 %v833, %v857
        %v910 = vmul.f32 %v833, %v858
        %v911 = vmul.f32 %v837, %v855
        %v912 = vmul.f32 %v837, %v856
        %v913 = vmul.f32 %v837, %v857
        %v914 = vmul.f32 %v837, %v858
        %v915 = vmul.f32 %v841, %v855
        %v916 = vmul.f32 %v841, %v856
        %v917 = vmul.f32 %v841, %v857
        %v918 = vmul.f32 %v841, %v858
        %v919 = vmul.f32 %v845, %v855
        %v920 = vmul.f32 %v845, %v856
        %v921 = vmul.f32 %v845, %v857
        %v922 = vmul.f32 %v845, %v858
        %v923 = vadd.f32 %v719, %v859
        %v924 = vadd.f32 %v720, %v860
        %v925 = vadd.f32 %v721, %v861
        %v926 = vadd.f32 %v722, %v862
        %v927 = vadd.f32 %v723, %v863
        %v928 = vadd.f32 %v724, %v864
        %v929 = vadd.f32 %v725, %v865
        %v930 = vadd.f32 %v726, %v866
        %v931 = vadd.f32 %v727, %v867
        %v932 = vadd.f32 %v728, %v868
        %v933 = vadd.f32 %v729, %v869
        %v934 = vadd.f32 %v730, %v870
        %v935 = vadd.f32 %v731, %v871
        %v936 = vadd.f32 %v732, %v872
        %v937 = vadd.f32 %v733, %v873
        %v938 = vadd.f32 %v734, %v874
        %v939 = vadd.f32 %v735, %v875
        %v940 = vadd.f32 %v736, %v876
        %v941 = vadd.f32 %v737, %v877
        %v942 = vadd.f32 %v738, %v878
        %v943 = vadd.f32 %v739, %v879
        %v944 = vadd.f32 %v740, %v880
        %v945 = vadd.f32 %v741, %v881
        %v946 = vadd.f32 %v742, %v882
        %v947 = vadd.f32 %v743, %v883
        %v948 = vadd.f32 %v744, %v884
        %v949 = vadd.f32 %v745, %v885
        %v950 = vadd.f32 %v746, %v886
        %v951 = vadd.f32 %v747, %v887
        %v952 = vadd.f32 %v748, %v888
        %v953 = vadd.f32 %v749, %v889
        %v954 = vadd.f32 %v750, %v890
        %v955 = vadd.f32 %v751, %v891
        %v956 = vadd.f32 %v752, %v892
        %v957 = vadd.f32 %v753, %v893
        %v958 = vadd.f32 %v754, %v894
        %v959 = vadd.f32 %v755, %v895
        %v960 = vadd.f32 %v756, %v896
        %v961 = vadd.f32 %v757, %v897
        %v962 = vadd.f32 %v758, %v898
        %v963 = vadd.f32 %v759, %v899
        %v964 = vadd.f32 %v760, %v900
        %v965 = vadd.f32 %v761, %v901
        %v966 = vadd.f32 %v762, %v902
        %v967 = vadd.f32 %v763, %v903
        %v968 = vadd.f32 %v764, %v904
        %v969 = vadd.f32 %v765, %v905
        %v970 = vadd.f32 %v766, %v906
        %v971 = vadd.f32 %v767, %v907
        %v972 = vadd.f32 %v768, %v908
        %v973 = vadd.f32 %v769, %v909
        %v974 = vadd.f32 %v770, %v910
        %v975 = vadd.f32 %v771, %v911
        %v976 = vadd.f32 %v772, %v912
        %v977 = vadd.f32 %v773, %v913
        %v978 = vadd.f32 %v774, %v914
        %v979 = vadd.f32 %v775, %v915
        %v980 = vadd.f32 %v776, %v916
        %v981 = vadd.f32 %v777, %v917
        %v982 = vadd.f32 %v778, %v918
        %v983 = vadd.f32 %v779, %v919
        %v984 = vadd.f32 %v780, %v920
        %v985 = vadd.f32 %v781, %v921
        %v986 = vadd.f32 %v782, %v922
        %v987 = vmax.f32 %v923, 0.0
        %v988 = vmax.f32 %v924, 0.0
        %v989 = vmax.f32 %v925, 0.0
        %v990 = vmax.f32 %v926, 0.0
        %v991 = vmax.f32 %v927, 0.0
        %v992 = vmax.f32 %v928, 0.0
        %v993 = vmax.f32 %v929, 0.0
        %v994 = vmax.f32 %v930, 0.0
        %v995 = vmax.f32 %v931, 0.0
        %v996 = vmax.f32 %v932, 0.0
        %v997 = vmax.f32 %v933, 0.0
        %v998 = vmax.f32 %v934, 0.0
        %v999 = vmax.f32 %v935, 0.0
        %v1000 = vmax.f32 %v936, 0.0
        %v1001 = vmax.f32 %v937, 0.0
        %v1002 = vmax.f32 %v938, 0.0
        %v1003 = vmax.f32 %v939, 0.0
        %v1004 = vmax.f32 %v940, 0.0
        %v1005 = vmax.f32 %v941, 0.0
        %v1006 = vmax.f32 %v942, 0.0
        %v1007 = vmax.f32 %v943, 0.0
        %v1008 = vmax.f32 %v944, 0.0
        %v1009 = vmax.f32 %v945, 0.0
        %v1010 = vmax.f32 %v946, 0.0
        %v1011 = vmax.f32 %v947, 0.0
        %v1012 = vmax.f32 %v948, 0.0
        %v1013 = vmax.f32 %v949, 0.0
        %v1014 = vmax.f32 %v950, 0.0
        %v1015 = vmax.f32 %v951, 0.0
        %v1016 = vmax.f32 %v952, 0.0
        %v1017 = vmax.f32 %v953, 0.0
        %v1018 = vmax.f32 %v954, 0.0
        %v1019 = vmax.f32 %v955, 0.0
        %v1020 = vmax.f32 %v956, 0.0
        %v1021 = vmax.f32 %v957, 0.0
        %v1022 = vmax.f32 %v958, 0.0
        %v1023 = vmax.f32 %v959, 0.0
        %v1024 = vmax.f32 %v960, 0.0
        %v1025 = vmax.f32 %v961, 0.0
        %v1026 = vmax.f32 %v962, 0.0
        %v1027 = vmax.f32 %v963, 0.0
        %v1028 = vmax.f32 %v964, 0.0
        %v1029 = vmax.f32 %v965, 0.0
        %v1030 = vmax.f32 %v966, 0.0
        %v1031 = vmax.f32 %v967, 0.0
        %v1032 = vmax.f32 %v968, 0.0
        %v1033 = vmax.f32 %v969, 0.0
        %v1034 = vmax.f32 %v970, 0.0
        %v1035 = vmax.f32 %v971, 0.0
        %v1036 = vmax.f32 %v972, 0.0
        %v1037 = vmax.f32 %v973, 0.0
        %v1038 = vmax.f32 %v974, 0.0
        %v1039 = vmax.f32 %v975, 0.0
        %v1040 = vmax.f32 %v976, 0.0
        %v1041 = vmax.f32 %v977, 0.0
        %v1042 = vmax.f32 %v978, 0.0
        %v1043 = vmax.f32 %v979, 0.0
        %v1044 = vmax.f32 %v980, 0.0
        %v1045 = vmax.f32 %v981, 0.0
        %v1046 = vmax.f32 %v982, 0.0
        %v1047 = vmax.f32 %v983, 0.0
        %v1048 = vmax.f32 %v984, 0.0
        %v1049 = vmax.f32 %v985, 0.0
        %v1050 = vmax.f32 %v986, 0.0
        %v1051 = vld [vmem:[#allocation2] sm:$0xf]
        %v1052 = vld [vmem:[#allocation2 + $0x4] sm:$0xf]
        %v1053 = vld [vmem:[#allocation2 + $0x8] sm:$0xf]
        %v1054 = vld [vmem:[#allocation2 + $0xc] sm:$0xf]
        %v1055 = vld [vmem:[#allocation2 + $0x10] sm:$0xf]
        %v1056 = vld [vmem:[#allocation2 + $0x14] sm:$0xf]
        %v1057 = vld [vmem:[#allocation2 + $0x18] sm:$0xf]
        %v1058 = vld [vmem:[#allocation2 + $0x1c] sm:$0xf]
        %v1059 = vld [vmem:[#allocation2 + $0x20] sm:$0xf]
        %v1060 = vld [vmem:[#allocation2 + $0x24] sm:$0xf]
        %v1061 = vld [vmem:[#allocation2 + $0x28] sm:$0xf]
        %v1062 = vld [vmem:[#allocation2 + $0x2c] sm:$0xf]
        %v1063 = vld [vmem:[#allocation2 + $0x30] sm:$0xf]
        %v1064 = vld [vmem:[#allocation2 + $0x34] sm:$0xf]
        %v1065 = vld [vmem:[#allocation2 + $0x38] sm:$0xf]
        %v1066 = vld [vmem:[#allocation2 + $0x3c] sm:$0xf]
        %v1067 = vpack.c.bf16 %v991, %v987
        %v1068 = vpack.c.bf16 %v992, %v988
        %v1069 = vpack.c.bf16 %v993, %v989
        %v1070 = vpack.c.bf16 %v994, %v990
        %v1071 = vpack.c.bf16 %v999, %v995
        %v1072 = vpack.c.bf16 %v1000, %v996
        %v1073 = vpack.c.bf16 %v1001, %v997
        %v1074 = vpack.c.bf16 %v1002, %v998
        %v1075 = vpack.c.bf16 %v1007, %v1003
        %v1076 = vpack.c.bf16 %v1008, %v1004
        %v1077 = vpack.c.bf16 %v1009, %v1005
        %v1078 = vpack.c.bf16 %v1010, %v1006
        %v1079 = vpack.c.bf16 %v1015, %v1011
        %v1080 = vpack.c.bf16 %v1016, %v1012
        %v1081 = vpack.c.bf16 %v1017, %v1013
        %v1082 = vpack.c.bf16 %v1018, %v1014
        %v1083 = vpack.c.bf16 %v1023, %v1019
        %v1084 = vpack.c.bf16 %v1024, %v1020
        %v1085 = vpack.c.bf16 %v1025, %v1021
        %v1086 = vpack.c.bf16 %v1026, %v1022
        %v1087 = vpack.c.bf16 %v1031, %v1027
        %v1088 = vpack.c.bf16 %v1032, %v1028
        %v1089 = vpack.c.bf16 %v1033, %v1029
        %v1090 = vpack.c.bf16 %v1034, %v1030
        %v1091 = vpack.c.bf16 %v1039, %v1035
        %v1092 = vpack.c.bf16 %v1040, %v1036
        %v1093 = vpack.c.bf16 %v1041, %v1037
        %v1094 = vpack.c.bf16 %v1042, %v1038
        %v1095 = vpack.c.bf16 %v1047, %v1043
        %v1096 = vpack.c.bf16 %v1048, %v1044
        %v1097 = vpack.c.bf16 %v1049, %v1045
        %v1098 = vpack.c.bf16 %v1050, %v1046
        %1099 = vset.pattern.permute.xlu0 1
        %1100 = vperm.xlu0 %1099, %v261
        %v1101 = vpop.permute.xlu0 %1100
        %1103 = vset.pattern.permute.xlu0 1
        %1104 = vperm.xlu0 %1103, %v262
        %v1105 = vpop.permute.xlu0 %1104
        %1107 = vset.pattern.permute.xlu0 1
        %1108 = vperm.xlu0 %1107, %v263
        %v1109 = vpop.permute.xlu0 %1108
        %1111 = vset.pattern.permute.xlu0 1
        %1112 = vperm.xlu0 %1111, %v264
        %v1113 = vpop.permute.xlu0 %1112
        %1115 = vset.pattern.permute.xlu0 1
        %1116 = vperm.xlu0 %1115, %v265
        %v1117 = vpop.permute.xlu0 %1116
        %1119 = vset.pattern.permute.xlu0 1
        %1120 = vperm.xlu0 %1119, %v266
        %v1121 = vpop.permute.xlu0 %1120
        %1123 = vset.pattern.permute.xlu0 1
        %1124 = vperm.xlu0 %1123, %v267
        %v1125 = vpop.permute.xlu0 %1124
        %1127 = vset.pattern.permute.xlu0 1
        %1128 = vperm.xlu0 %1127, %v268
        %v1129 = vpop.permute.xlu0 %1128
        %1131 = vset.pattern.permute.xlu0 1
        %1132 = vperm.xlu0 %1131, %v269
        %v1133 = vpop.permute.xlu0 %1132
        %1135 = vset.pattern.permute.xlu0 1
        %1136 = vperm.xlu0 %1135, %v270
        %v1137 = vpop.permute.xlu0 %1136
        %1139 = vset.pattern.permute.xlu0 1
        %1140 = vperm.xlu0 %1139, %v271
        %v1141 = vpop.permute.xlu0 %1140
        %1143 = vset.pattern.permute.xlu0 1
        %1144 = vperm.xlu0 %1143, %v272
        %v1145 = vpop.permute.xlu0 %1144
        %1147 = vset.pattern.permute.xlu0 1
        %1148 = vperm.xlu0 %1147, %v273
        %v1149 = vpop.permute.xlu0 %1148
        %1151 = vset.pattern.permute.xlu0 1
        %1152 = vperm.xlu0 %1151, %v274
        %v1153 = vpop.permute.xlu0 %1152
        %1155 = vset.pattern.permute.xlu0 1
        %1156 = vperm.xlu0 %1155, %v275
        %v1157 = vpop.permute.xlu0 %1156
        %1159 = vset.pattern.permute.xlu0 1
        %1160 = vperm.xlu0 %1159, %v276
        %v1161 = vpop.permute.xlu0 %1160
        %v1179 = vunpack.c.l.b16 %v1051
        %v1180 = vunpack.c.l.b16 %v1052
        %v1181 = vunpack.c.l.b16 %v1053
        %v1182 = vunpack.c.l.b16 %v1054
        %v1183 = vunpack.c.l.b16 %v1055
        %v1184 = vunpack.c.l.b16 %v1056
        %v1185 = vunpack.c.l.b16 %v1057
        %v1186 = vunpack.c.l.b16 %v1058
        %v1187 = vunpack.c.l.b16 %v1059
        %v1188 = vunpack.c.l.b16 %v1060
        %v1189 = vunpack.c.l.b16 %v1061
        %v1190 = vunpack.c.l.b16 %v1062
        %v1191 = vunpack.c.l.b16 %v1063
        %v1192 = vunpack.c.l.b16 %v1064
        %v1193 = vunpack.c.l.b16 %v1065
        %v1194 = vunpack.c.l.b16 %v1066
        %v1195 = vpack.c.b16 %v1180, %v1179
        %v1196 = vpack.c.b16 %v1182, %v1181
        %v1197 = vpack.c.b16 %v1184, %v1183
        %v1198 = vpack.c.b16 %v1186, %v1185
        %v1199 = vpack.c.b16 %v1188, %v1187
        %v1200 = vpack.c.b16 %v1190, %v1189
        %v1201 = vpack.c.b16 %v1192, %v1191
        %v1202 = vpack.c.b16 %v1194, %v1193
        %1211 = vmatpush.bf16.msra.mxu0 %v1095
        %1212 = vmatpush.bf16.msra.mxu0 %v1091
        %1213 = vmatpush.bf16.msra.mxu0 %v1087
        %1214 = vmatpush.bf16.msra.mxu0 %v1083
        %1215 = vmatpush.bf16.msra.mxu0 %v1079
        %1216 = vmatpush.bf16.msra.mxu0 %v1075
        %1217 = vmatpush.bf16.msra.mxu0 %v1071
        %1218 = vmatpush.bf16.msra.mxu0 %v1067
        %1219 = vmatmul.bf16.gmra.mxu0 %v1195
        %v1220 = vpop.f32.mrf.mxu0
        %v1221 = vadd.f32 %v1101, %v1220
        %v1222 = vpop.f32.mrf.mxu0
        %v1223 = vadd.f32 %v1105, %v1222
        %1224 = vmatmul.bf16.gmra.mxu0 %v1196
        %v1225 = vpop.f32.mrf.mxu0
        %v1226 = vadd.f32 %v1109, %v1225
        %v1227 = vpop.f32.mrf.mxu0
        %v1228 = vadd.f32 %v1113, %v1227
        %1229 = vmatmul.bf16.gmra.mxu0 %v1197
        %v1230 = vpop.f32.mrf.mxu0
        %v1231 = vadd.f32 %v1117, %v1230
        %v1232 = vpop.f32.mrf.mxu0
        %v1233 = vadd.f32 %v1121, %v1232
        %1234 = vmatmul.bf16.gmra.mxu0 %v1198
        %v1235 = vpop.f32.mrf.mxu0
        %v1236 = vadd.f32 %v1125, %v1235
        %v1237 = vpop.f32.mrf.mxu0
        %v1238 = vadd.f32 %v1129, %v1237
        %1239 = vmatmul.bf16.gmra.mxu0 %v1199
        %v1240 = vpop.f32.mrf.mxu0
        %v1241 = vadd.f32 %v1133, %v1240
        %v1242 = vpop.f32.mrf.mxu0
        %v1243 = vadd.f32 %v1137, %v1242
        %1244 = vmatmul.bf16.gmra.mxu0 %v1200
        %v1245 = vpop.f32.mrf.mxu0
        %v1246 = vadd.f32 %v1141, %v1245
        %v1247 = vpop.f32.mrf.mxu0
        %v1248 = vadd.f32 %v1145, %v1247
        %1249 = vmatmul.bf16.gmra.mxu0 %v1201
        %v1250 = vpop.f32.mrf.mxu0
        %v1251 = vadd.f32 %v1149, %v1250
        %v1252 = vpop.f32.mrf.mxu0
        %v1253 = vadd.f32 %v1153, %v1252
        %1254 = vmatmul.bf16.gmra.mxu0 %v1202
        %v1255 = vpop.f32.mrf.mxu0
        %v1256 = vadd.f32 %v1157, %v1255
        %v1257 = vpop.f32.mrf.mxu0
        %v1258 = vadd.f32 %v1161, %v1257
        %1259 = vdwg.mxu0
        %1260 = vmatpush.bf16.msra.mxu0 %v1096
        %1261 = vmatpush.bf16.msra.mxu0 %v1092
        %1262 = vmatpush.bf16.msra.mxu0 %v1088
        %1263 = vmatpush.bf16.msra.mxu0 %v1084
        %1264 = vmatpush.bf16.msra.mxu0 %v1080
        %1265 = vmatpush.bf16.msra.mxu0 %v1076
        %1266 = vmatpush.bf16.msra.mxu0 %v1072
        %1267 = vmatpush.bf16.msra.mxu0 %v1068
        %1268 = vmatmul.bf16.gmra.mxu0 %v1195
        %v1269 = vpop.f32.mrf.mxu0
        %v1270 = vadd.f32 %v1101, %v1269
        %v1271 = vpop.f32.mrf.mxu0
        %v1272 = vadd.f32 %v1105, %v1271
        %1273 = vmatmul.bf16.gmra.mxu0 %v1196
        %v1274 = vpop.f32.mrf.mxu0
        %v1275 = vadd.f32 %v1109, %v1274
        %v1276 = vpop.f32.mrf.mxu0
        %v1277 = vadd.f32 %v1113, %v1276
        %1278 = vmatmul.bf16.gmra.mxu0 %v1197
        %v1279 = vpop.f32.mrf.mxu0
        %v1280 = vadd.f32 %v1117, %v1279
        %v1281 = vpop.f32.mrf.mxu0
        %v1282 = vadd.f32 %v1121, %v1281
        %1283 = vmatmul.bf16.gmra.mxu0 %v1198
        %v1284 = vpop.f32.mrf.mxu0
        %v1285 = vadd.f32 %v1125, %v1284
        %v1286 = vpop.f32.mrf.mxu0
        %v1287 = vadd.f32 %v1129, %v1286
        %1288 = vmatmul.bf16.gmra.mxu0 %v1199
        %v1289 = vpop.f32.mrf.mxu0
        %v1290 = vadd.f32 %v1133, %v1289
        %v1291 = vpop.f32.mrf.mxu0
        %v1292 = vadd.f32 %v1137, %v1291
        %1293 = vmatmul.bf16.gmra.mxu0 %v1200
        %v1294 = vpop.f32.mrf.mxu0
        %v1295 = vadd.f32 %v1141, %v1294
        %v1296 = vpop.f32.mrf.mxu0
        %v1297 = vadd.f32 %v1145, %v1296
        %1298 = vmatmul.bf16.gmra.mxu0 %v1201
        %v1299 = vpop.f32.mrf.mxu0
        %v1300 = vadd.f32 %v1149, %v1299
        %v1301 = vpop.f32.mrf.mxu0
        %v1302 = vadd.f32 %v1153, %v1301
        %1303 = vmatmul.bf16.gmra.mxu0 %v1202
        %v1304 = vpop.f32.mrf.mxu0
        %v1305 = vadd.f32 %v1157, %v1304
        %v1306 = vpop.f32.mrf.mxu0
        %v1307 = vadd.f32 %v1161, %v1306
        %1308 = vdwg.mxu0
        %1309 = vmatpush.bf16.msra.mxu0 %v1097
        %1310 = vmatpush.bf16.msra.mxu0 %v1093
        %1311 = vmatpush.bf16.msra.mxu0 %v1089
        %1312 = vmatpush.bf16.msra.mxu0 %v1085
        %1313 = vmatpush.bf16.msra.mxu0 %v1081
        %1314 = vmatpush.bf16.msra.mxu0 %v1077
        %1315 = vmatpush.bf16.msra.mxu0 %v1073
        %1316 = vmatpush.bf16.msra.mxu0 %v1069
        %1317 = vmatmul.bf16.gmra.mxu0 %v1195
        %v1318 = vpop.f32.mrf.mxu0
        %v1319 = vadd.f32 %v1101, %v1318
        %v1320 = vpop.f32.mrf.mxu0
        %v1321 = vadd.f32 %v1105, %v1320
        %1322 = vmatmul.bf16.gmra.mxu0 %v1196
        %v1323 = vpop.f32.mrf.mxu0
        %v1324 = vadd.f32 %v1109, %v1323
        %v1325 = vpop.f32.mrf.mxu0
        %v1326 = vadd.f32 %v1113, %v1325
        %1327 = vmatmul.bf16.gmra.mxu0 %v1197
        %v1328 = vpop.f32.mrf.mxu0
        %v1329 = vadd.f32 %v1117, %v1328
        %v1330 = vpop.f32.mrf.mxu0
        %v1331 = vadd.f32 %v1121, %v1330
        %1332 = vmatmul.bf16.gmra.mxu0 %v1198
        %v1333 = vpop.f32.mrf.mxu0
        %v1334 = vadd.f32 %v1125, %v1333
        %v1335 = vpop.f32.mrf.mxu0
        %v1336 = vadd.f32 %v1129, %v1335
        %1337 = vmatmul.bf16.gmra.mxu0 %v1199
        %v1338 = vpop.f32.mrf.mxu0
        %v1339 = vadd.f32 %v1133, %v1338
        %v1340 = vpop.f32.mrf.mxu0
        %v1341 = vadd.f32 %v1137, %v1340
        %1342 = vmatmul.bf16.gmra.mxu0 %v1200
        %v1343 = vpop.f32.mrf.mxu0
        %v1344 = vadd.f32 %v1141, %v1343
        %v1345 = vpop.f32.mrf.mxu0
        %v1346 = vadd.f32 %v1145, %v1345
        %1347 = vmatmul.bf16.gmra.mxu0 %v1201
        %v1348 = vpop.f32.mrf.mxu0
        %v1349 = vadd.f32 %v1149, %v1348
        %v1350 = vpop.f32.mrf.mxu0
        %v1351 = vadd.f32 %v1153, %v1350
        %1352 = vmatmul.bf16.gmra.mxu0 %v1202
        %v1353 = vpop.f32.mrf.mxu0
        %v1354 = vadd.f32 %v1157, %v1353
        %v1355 = vpop.f32.mrf.mxu0
        %v1356 = vadd.f32 %v1161, %v1355
        %1357 = vdwg.mxu0
        %1358 = vmatpush.bf16.msra.mxu0 %v1098
        %1359 = vmatpush.bf16.msra.mxu0 %v1094
        %1360 = vmatpush.bf16.msra.mxu0 %v1090
        %1361 = vmatpush.bf16.msra.mxu0 %v1086
        %1362 = vmatpush.bf16.msra.mxu0 %v1082
        %1363 = vmatpush.bf16.msra.mxu0 %v1078
        %1364 = vmatpush.bf16.msra.mxu0 %v1074
        %1365 = vmatpush.bf16.msra.mxu0 %v1070
        %1366 = vmatmul.bf16.gmra.mxu0 %v1195
        %v1367 = vpop.f32.mrf.mxu0
        %v1368 = vadd.f32 %v1101, %v1367
        %v1369 = vpop.f32.mrf.mxu0
        %v1370 = vadd.f32 %v1105, %v1369
        %1371 = vmatmul.bf16.gmra.mxu0 %v1196
        %v1372 = vpop.f32.mrf.mxu0
        %v1373 = vadd.f32 %v1109, %v1372
        %v1374 = vpop.f32.mrf.mxu0
        %v1375 = vadd.f32 %v1113, %v1374
        %1376 = vmatmul.bf16.gmra.mxu0 %v1197
        %v1377 = vpop.f32.mrf.mxu0
        %v1378 = vadd.f32 %v1117, %v1377
        %v1379 = vpop.f32.mrf.mxu0
        %v1380 = vadd.f32 %v1121, %v1379
        %1381 = vmatmul.bf16.gmra.mxu0 %v1198
        %v1382 = vpop.f32.mrf.mxu0
        %v1383 = vadd.f32 %v1125, %v1382
        %v1384 = vpop.f32.mrf.mxu0
        %v1385 = vadd.f32 %v1129, %v1384
        %1386 = vmatmul.bf16.gmra.mxu0 %v1199
        %v1387 = vpop.f32.mrf.mxu0
        %v1388 = vadd.f32 %v1133, %v1387
        %v1389 = vpop.f32.mrf.mxu0
        %v1390 = vadd.f32 %v1137, %v1389
        %1391 = vmatmul.bf16.gmra.mxu0 %v1200
        %v1392 = vpop.f32.mrf.mxu0
        %v1393 = vadd.f32 %v1141, %v1392
        %v1394 = vpop.f32.mrf.mxu0
        %v1395 = vadd.f32 %v1145, %v1394
        %1396 = vmatmul.bf16.gmra.mxu0 %v1201
        %v1397 = vpop.f32.mrf.mxu0
        %v1398 = vadd.f32 %v1149, %v1397
        %v1399 = vpop.f32.mrf.mxu0
        %v1400 = vadd.f32 %v1153, %v1399
        %1401 = vmatmul.bf16.gmra.mxu0 %v1202
        %v1402 = vpop.f32.mrf.mxu0
        %v1403 = vadd.f32 %v1157, %v1402
        %v1404 = vpop.f32.mrf.mxu0
        %v1405 = vadd.f32 %v1161, %v1404
        %1406 = vdwg.mxu0
        %v1407 = vmax.f32 %v1221, 0.0
        %v1408 = vmax.f32 %v1270, 0.0
        %v1409 = vmax.f32 %v1319, 0.0
        %v1410 = vmax.f32 %v1368, 0.0
        %v1411 = vmax.f32 %v1223, 0.0
        %v1412 = vmax.f32 %v1272, 0.0
        %v1413 = vmax.f32 %v1321, 0.0
        %v1414 = vmax.f32 %v1370, 0.0
        %v1415 = vmax.f32 %v1226, 0.0
        %v1416 = vmax.f32 %v1275, 0.0
        %v1417 = vmax.f32 %v1324, 0.0
        %v1418 = vmax.f32 %v1373, 0.0
        %v1419 = vmax.f32 %v1228, 0.0
        %v1420 = vmax.f32 %v1277, 0.0
        %v1421 = vmax.f32 %v1326, 0.0
        %v1422 = vmax.f32 %v1375, 0.0
        %v1423 = vmax.f32 %v1231, 0.0
        %v1424 = vmax.f32 %v1280, 0.0
        %v1425 = vmax.f32 %v1329, 0.0
        %v1426 = vmax.f32 %v1378, 0.0
        %v1427 = vmax.f32 %v1233, 0.0
        %v1428 = vmax.f32 %v1282, 0.0
        %v1429 = vmax.f32 %v1331, 0.0
        %v1430 = vmax.f32 %v1380, 0.0
        %v1431 = vmax.f32 %v1236, 0.0
        %v1432 = vmax.f32 %v1285, 0.0
        %v1433 = vmax.f32 %v1334, 0.0
        %v1434 = vmax.f32 %v1383, 0.0
        %v1435 = vmax.f32 %v1238, 0.0
        %v1436 = vmax.f32 %v1287, 0.0
        %v1437 = vmax.f32 %v1336, 0.0
        %v1438 = vmax.f32 %v1385, 0.0
        %v1439 = vmax.f32 %v1241, 0.0
        %v1440 = vmax.f32 %v1290, 0.0
        %v1441 = vmax.f32 %v1339, 0.0
        %v1442 = vmax.f32 %v1388, 0.0
        %v1443 = vmax.f32 %v1243, 0.0
        %v1444 = vmax.f32 %v1292, 0.0
        %v1445 = vmax.f32 %v1341, 0.0
        %v1446 = vmax.f32 %v1390, 0.0
        %v1447 = vmax.f32 %v1246, 0.0
        %v1448 = vmax.f32 %v1295, 0.0
        %v1449 = vmax.f32 %v1344, 0.0
        %v1450 = vmax.f32 %v1393, 0.0
        %v1451 = vmax.f32 %v1248, 0.0
        %v1452 = vmax.f32 %v1297, 0.0
        %v1453 = vmax.f32 %v1346, 0.0
        %v1454 = vmax.f32 %v1395, 0.0
        %v1455 = vmax.f32 %v1251, 0.0
        %v1456 = vmax.f32 %v1300, 0.0
        %v1457 = vmax.f32 %v1349, 0.0
        %v1458 = vmax.f32 %v1398, 0.0
        %v1459 = vmax.f32 %v1253, 0.0
        %v1460 = vmax.f32 %v1302, 0.0
        %v1461 = vmax.f32 %v1351, 0.0
        %v1462 = vmax.f32 %v1400, 0.0
        %v1463 = vmax.f32 %v1256, 0.0
        %v1464 = vmax.f32 %v1305, 0.0
        %v1465 = vmax.f32 %v1354, 0.0
        %v1466 = vmax.f32 %v1403, 0.0
        %v1467 = vmax.f32 %v1258, 0.0
        %v1468 = vmax.f32 %v1307, 0.0
        %v1469 = vmax.f32 %v1356, 0.0
        %v1470 = vmax.f32 %v1405, 0.0
        %s1471 = scalar_lea.vmem [#allocation2], 64
        %v1472 = vld [vmem:[%s1471] sm:$0xf]
        %v1473 = vld [vmem:[%s1471 + $0x4] sm:$0xf]
        %v1474 = vld [vmem:[%s1471 + $0x8] sm:$0xf]
        %v1475 = vld [vmem:[%s1471 + $0xc] sm:$0xf]
        %v1476 = vld [vmem:[%s1471 + $0x10] sm:$0xf]
        %v1477 = vld [vmem:[%s1471 + $0x14] sm:$0xf]
        %v1478 = vld [vmem:[%s1471 + $0x18] sm:$0xf]
        %v1479 = vld [vmem:[%s1471 + $0x1c] sm:$0xf]
        %v1480 = vld [vmem:[%s1471 + $0x20] sm:$0xf]
        %v1481 = vld [vmem:[%s1471 + $0x24] sm:$0xf]
        %v1482 = vld [vmem:[%s1471 + $0x28] sm:$0xf]
        %v1483 = vld [vmem:[%s1471 + $0x2c] sm:$0xf]
        %v1484 = vld [vmem:[%s1471 + $0x30] sm:$0xf]
        %v1485 = vld [vmem:[%s1471 + $0x34] sm:$0xf]
        %v1486 = vld [vmem:[%s1471 + $0x38] sm:$0xf]
        %v1487 = vld [vmem:[%s1471 + $0x3c] sm:$0xf]
        %v1488 = vpack.c.bf16 %v1411, %v1407
        %v1489 = vpack.c.bf16 %v1412, %v1408
        %v1490 = vpack.c.bf16 %v1413, %v1409
        %v1491 = vpack.c.bf16 %v1414, %v1410
        %v1492 = vpack.c.bf16 %v1419, %v1415
        %v1493 = vpack.c.bf16 %v1420, %v1416
        %v1494 = vpack.c.bf16 %v1421, %v1417
        %v1495 = vpack.c.bf16 %v1422, %v1418
        %v1496 = vpack.c.bf16 %v1427, %v1423
        %v1497 = vpack.c.bf16 %v1428, %v1424
        %v1498 = vpack.c.bf16 %v1429, %v1425
        %v1499 = vpack.c.bf16 %v1430, %v1426
        %v1500 = vpack.c.bf16 %v1435, %v1431
        %v1501 = vpack.c.bf16 %v1436, %v1432
        %v1502 = vpack.c.bf16 %v1437, %v1433
        %v1503 = vpack.c.bf16 %v1438, %v1434
        %v1504 = vpack.c.bf16 %v1443, %v1439
        %v1505 = vpack.c.bf16 %v1444, %v1440
        %v1506 = vpack.c.bf16 %v1445, %v1441
        %v1507 = vpack.c.bf16 %v1446, %v1442
        %v1508 = vpack.c.bf16 %v1451, %v1447
        %v1509 = vpack.c.bf16 %v1452, %v1448
        %v1510 = vpack.c.bf16 %v1453, %v1449
        %v1511 = vpack.c.bf16 %v1454, %v1450
        %v1512 = vpack.c.bf16 %v1459, %v1455
        %v1513 = vpack.c.bf16 %v1460, %v1456
        %v1514 = vpack.c.bf16 %v1461, %v1457
        %v1515 = vpack.c.bf16 %v1462, %v1458
        %v1516 = vpack.c.bf16 %v1467, %v1463
        %v1517 = vpack.c.bf16 %v1468, %v1464
        %v1518 = vpack.c.bf16 %v1469, %v1465
        %v1519 = vpack.c.bf16 %v1470, %v1466
        %1520 = vset.pattern.permute.xlu0 2
        %1521 = vperm.xlu0 %1520, %v261
        %v1522 = vpop.permute.xlu0 %1521
        %1524 = vset.pattern.permute.xlu0 2
        %1525 = vperm.xlu0 %1524, %v262
        %v1526 = vpop.permute.xlu0 %1525
        %1528 = vset.pattern.permute.xlu0 2
        %1529 = vperm.xlu0 %1528, %v263
        %v1530 = vpop.permute.xlu0 %1529
        %1532 = vset.pattern.permute.xlu0 2
        %1533 = vperm.xlu0 %1532, %v264
        %v1534 = vpop.permute.xlu0 %1533
        %1536 = vset.pattern.permute.xlu0 2
        %1537 = vperm.xlu0 %1536, %v265
        %v1538 = vpop.permute.xlu0 %1537
        %1540 = vset.pattern.permute.xlu0 2
        %1541 = vperm.xlu0 %1540, %v266
        %v1542 = vpop.permute.xlu0 %1541
        %1544 = vset.pattern.permute.xlu0 2
        %1545 = vperm.xlu0 %1544, %v267
        %v1546 = vpop.permute.xlu0 %1545
        %1548 = vset.pattern.permute.xlu0 2
        %1549 = vperm.xlu0 %1548, %v268
        %v1550 = vpop.permute.xlu0 %1549
        %1552 = vset.pattern.permute.xlu0 2
        %1553 = vperm.xlu0 %1552, %v269
        %v1554 = vpop.permute.xlu0 %1553
        %1556 = vset.pattern.permute.xlu0 2
        %1557 = vperm.xlu0 %1556, %v270
        %v1558 = vpop.permute.xlu0 %1557
        %1560 = vset.pattern.permute.xlu0 2
        %1561 = vperm.xlu0 %1560, %v271
        %v1562 = vpop.permute.xlu0 %1561
        %1564 = vset.pattern.permute.xlu0 2
        %1565 = vperm.xlu0 %1564, %v272
        %v1566 = vpop.permute.xlu0 %1565
        %1568 = vset.pattern.permute.xlu0 2
        %1569 = vperm.xlu0 %1568, %v273
        %v1570 = vpop.permute.xlu0 %1569
        %1572 = vset.pattern.permute.xlu0 2
        %1573 = vperm.xlu0 %1572, %v274
        %v1574 = vpop.permute.xlu0 %1573
        %1576 = vset.pattern.permute.xlu0 2
        %1577 = vperm.xlu0 %1576, %v275
        %v1578 = vpop.permute.xlu0 %1577
        %1580 = vset.pattern.permute.xlu0 2
        %1581 = vperm.xlu0 %1580, %v276
        %v1582 = vpop.permute.xlu0 %1581
        %v1600 = vunpack.c.l.b16 %v1472
        %v1601 = vunpack.c.l.b16 %v1473
        %v1602 = vunpack.c.l.b16 %v1474
        %v1603 = vunpack.c.l.b16 %v1475
        %v1604 = vunpack.c.l.b16 %v1476
        %v1605 = vunpack.c.l.b16 %v1477
        %v1606 = vunpack.c.l.b16 %v1478
        %v1607 = vunpack.c.l.b16 %v1479
        %v1608 = vunpack.c.l.b16 %v1480
        %v1609 = vunpack.c.l.b16 %v1481
        %v1610 = vunpack.c.l.b16 %v1482
        %v1611 = vunpack.c.l.b16 %v1483
        %v1612 = vunpack.c.l.b16 %v1484
        %v1613 = vunpack.c.l.b16 %v1485
        %v1614 = vunpack.c.l.b16 %v1486
        %v1615 = vunpack.c.l.b16 %v1487
        %v1616 = vpack.c.b16 %v1601, %v1600
        %v1617 = vpack.c.b16 %v1603, %v1602
        %v1618 = vpack.c.b16 %v1605, %v1604
        %v1619 = vpack.c.b16 %v1607, %v1606
        %v1620 = vpack.c.b16 %v1609, %v1608
        %v1621 = vpack.c.b16 %v1611, %v1610
        %v1622 = vpack.c.b16 %v1613, %v1612
        %v1623 = vpack.c.b16 %v1615, %v1614
        %1632 = vmatpush.bf16.msra.mxu0 %v1516
        %1633 = vmatpush.bf16.msra.mxu0 %v1512
        %1634 = vmatpush.bf16.msra.mxu0 %v1508
        %1635 = vmatpush.bf16.msra.mxu0 %v1504
        %1636 = vmatpush.bf16.msra.mxu0 %v1500
        %1637 = vmatpush.bf16.msra.mxu0 %v1496
        %1638 = vmatpush.bf16.msra.mxu0 %v1492
        %1639 = vmatpush.bf16.msra.mxu0 %v1488
        %1640 = vmatmul.bf16.gmra.mxu0 %v1616
        %v1641 = vpop.f32.mrf.mxu0
        %v1642 = vadd.f32 %v1522, %v1641
        %v1643 = vpop.f32.mrf.mxu0
        %v1644 = vadd.f32 %v1526, %v1643
        %1645 = vmatmul.bf16.gmra.mxu0 %v1617
        %v1646 = vpop.f32.mrf.mxu0
        %v1647 = vadd.f32 %v1530, %v1646
        %v1648 = vpop.f32.mrf.mxu0
        %v1649 = vadd.f32 %v1534, %v1648
        %1650 = vmatmul.bf16.gmra.mxu0 %v1618
        %v1651 = vpop.f32.mrf.mxu0
        %v1652 = vadd.f32 %v1538, %v1651
        %v1653 = vpop.f32.mrf.mxu0
        %v1654 = vadd.f32 %v1542, %v1653
        %1655 = vmatmul.bf16.gmra.mxu0 %v1619
        %v1656 = vpop.f32.mrf.mxu0
        %v1657 = vadd.f32 %v1546, %v1656
        %v1658 = vpop.f32.mrf.mxu0
        %v1659 = vadd.f32 %v1550, %v1658
        %1660 = vmatmul.bf16.gmra.mxu0 %v1620
        %v1661 = vpop.f32.mrf.mxu0
        %v1662 = vadd.f32 %v1554, %v1661
        %v1663 = vpop.f32.mrf.mxu0
        %v1664 = vadd.f32 %v1558, %v1663
        %1665 = vmatmul.bf16.gmra.mxu0 %v1621
        %v1666 = vpop.f32.mrf.mxu0
        %v1667 = vadd.f32 %v1562, %v1666
        %v1668 = vpop.f32.mrf.mxu0
        %v1669 = vadd.f32 %v1566, %v1668
        %1670 = vmatmul.bf16.gmra.mxu0 %v1622
        %v1671 = vpop.f32.mrf.mxu0
        %v1672 = vadd.f32 %v1570, %v1671
        %v1673 = vpop.f32.mrf.mxu0
        %v1674 = vadd.f32 %v1574, %v1673
        %1675 = vmatmul.bf16.gmra.mxu0 %v1623
        %v1676 = vpop.f32.mrf.mxu0
        %v1677 = vadd.f32 %v1578, %v1676
        %v1678 = vpop.f32.mrf.mxu0
        %v1679 = vadd.f32 %v1582, %v1678
        %1680 = vdwg.mxu0
        %1681 = vmatpush.bf16.msra.mxu0 %v1517
        %1682 = vmatpush.bf16.msra.mxu0 %v1513
        %1683 = vmatpush.bf16.msra.mxu0 %v1509
        %1684 = vmatpush.bf16.msra.mxu0 %v1505
        %1685 = vmatpush.bf16.msra.mxu0 %v1501
        %1686 = vmatpush.bf16.msra.mxu0 %v1497
        %1687 = vmatpush.bf16.msra.mxu0 %v1493
        %1688 = vmatpush.bf16.msra.mxu0 %v1489
        %1689 = vmatmul.bf16.gmra.mxu0 %v1616
        %v1690 = vpop.f32.mrf.mxu0
        %v1691 = vadd.f32 %v1522, %v1690
        %v1692 = vpop.f32.mrf.mxu0
        %v1693 = vadd.f32 %v1526, %v1692
        %1694 = vmatmul.bf16.gmra.mxu0 %v1617
        %v1695 = vpop.f32.mrf.mxu0
        %v1696 = vadd.f32 %v1530, %v1695
        %v1697 = vpop.f32.mrf.mxu0
        %v1698 = vadd.f32 %v1534, %v1697
        %1699 = vmatmul.bf16.gmra.mxu0 %v1618
        %v1700 = vpop.f32.mrf.mxu0
        %v1701 = vadd.f32 %v1538, %v1700
        %v1702 = vpop.f32.mrf.mxu0
        %v1703 = vadd.f32 %v1542, %v1702
        %1704 = vmatmul.bf16.gmra.mxu0 %v1619
        %v1705 = vpop.f32.mrf.mxu0
        %v1706 = vadd.f32 %v1546, %v1705
        %v1707 = vpop.f32.mrf.mxu0
        %v1708 = vadd.f32 %v1550, %v1707
        %1709 = vmatmul.bf16.gmra.mxu0 %v1620
        %v1710 = vpop.f32.mrf.mxu0
        %v1711 = vadd.f32 %v1554, %v1710
        %v1712 = vpop.f32.mrf.mxu0
        %v1713 = vadd.f32 %v1558, %v1712
        %1714 = vmatmul.bf16.gmra.mxu0 %v1621
        %v1715 = vpop.f32.mrf.mxu0
        %v1716 = vadd.f32 %v1562, %v1715
        %v1717 = vpop.f32.mrf.mxu0
        %v1718 = vadd.f32 %v1566, %v1717
        %1719 = vmatmul.bf16.gmra.mxu0 %v1622
        %v1720 = vpop.f32.mrf.mxu0
        %v1721 = vadd.f32 %v1570, %v1720
        %v1722 = vpop.f32.mrf.mxu0
        %v1723 = vadd.f32 %v1574, %v1722
        %1724 = vmatmul.bf16.gmra.mxu0 %v1623
        %v1725 = vpop.f32.mrf.mxu0
        %v1726 = vadd.f32 %v1578, %v1725
        %v1727 = vpop.f32.mrf.mxu0
        %v1728 = vadd.f32 %v1582, %v1727
        %1729 = vdwg.mxu0
        %1730 = vmatpush.bf16.msra.mxu0 %v1518
        %1731 = vmatpush.bf16.msra.mxu0 %v1514
        %1732 = vmatpush.bf16.msra.mxu0 %v1510
        %1733 = vmatpush.bf16.msra.mxu0 %v1506
        %1734 = vmatpush.bf16.msra.mxu0 %v1502
        %1735 = vmatpush.bf16.msra.mxu0 %v1498
        %1736 = vmatpush.bf16.msra.mxu0 %v1494
        %1737 = vmatpush.bf16.msra.mxu0 %v1490
        %1738 = vmatmul.bf16.gmra.mxu0 %v1616
        %v1739 = vpop.f32.mrf.mxu0
        %v1740 = vadd.f32 %v1522, %v1739
        %v1741 = vpop.f32.mrf.mxu0
        %v1742 = vadd.f32 %v1526, %v1741
        %1743 = vmatmul.bf16.gmra.mxu0 %v1617
        %v1744 = vpop.f32.mrf.mxu0
        %v1745 = vadd.f32 %v1530, %v1744
        %v1746 = vpop.f32.mrf.mxu0
        %v1747 = vadd.f32 %v1534, %v1746
        %1748 = vmatmul.bf16.gmra.mxu0 %v1618
        %v1749 = vpop.f32.mrf.mxu0
        %v1750 = vadd.f32 %v1538, %v1749
        %v1751 = vpop.f32.mrf.mxu0
        %v1752 = vadd.f32 %v1542, %v1751
        %1753 = vmatmul.bf16.gmra.mxu0 %v1619
        %v1754 = vpop.f32.mrf.mxu0
        %v1755 = vadd.f32 %v1546, %v1754
        %v1756 = vpop.f32.mrf.mxu0
        %v1757 = vadd.f32 %v1550, %v1756
        %1758 = vmatmul.bf16.gmra.mxu0 %v1620
        %v1759 = vpop.f32.mrf.mxu0
        %v1760 = vadd.f32 %v1554, %v1759
        %v1761 = vpop.f32.mrf.mxu0
        %v1762 = vadd.f32 %v1558, %v1761
        %1763 = vmatmul.bf16.gmra.mxu0 %v1621
        %v1764 = vpop.f32.mrf.mxu0
        %v1765 = vadd.f32 %v1562, %v1764
        %v1766 = vpop.f32.mrf.mxu0
        %v1767 = vadd.f32 %v1566, %v1766
        %1768 = vmatmul.bf16.gmra.mxu0 %v1622
        %v1769 = vpop.f32.mrf.mxu0
        %v1770 = vadd.f32 %v1570, %v1769
        %v1771 = vpop.f32.mrf.mxu0
        %v1772 = vadd.f32 %v1574, %v1771
        %1773 = vmatmul.bf16.gmra.mxu0 %v1623
        %v1774 = vpop.f32.mrf.mxu0
        %v1775 = vadd.f32 %v1578, %v1774
        %v1776 = vpop.f32.mrf.mxu0
        %v1777 = vadd.f32 %v1582, %v1776
        %1778 = vdwg.mxu0
        %1779 = vmatpush.bf16.msra.mxu0 %v1519
        %1780 = vmatpush.bf16.msra.mxu0 %v1515
        %1781 = vmatpush.bf16.msra.mxu0 %v1511
        %1782 = vmatpush.bf16.msra.mxu0 %v1507
        %1783 = vmatpush.bf16.msra.mxu0 %v1503
        %1784 = vmatpush.bf16.msra.mxu0 %v1499
        %1785 = vmatpush.bf16.msra.mxu0 %v1495
        %1786 = vmatpush.bf16.msra.mxu0 %v1491
        %1787 = vmatmul.bf16.gmra.mxu0 %v1616
        %v1788 = vpop.f32.mrf.mxu0
        %v1789 = vadd.f32 %v1522, %v1788
        %v1790 = vpop.f32.mrf.mxu0
        %v1791 = vadd.f32 %v1526, %v1790
        %1792 = vmatmul.bf16.gmra.mxu0 %v1617
        %v1793 = vpop.f32.mrf.mxu0
        %v1794 = vadd.f32 %v1530, %v1793
        %v1795 = vpop.f32.mrf.mxu0
        %v1796 = vadd.f32 %v1534, %v1795
        %1797 = vmatmul.bf16.gmra.mxu0 %v1618
        %v1798 = vpop.f32.mrf.mxu0
        %v1799 = vadd.f32 %v1538, %v1798
        %v1800 = vpop.f32.mrf.mxu0
        %v1801 = vadd.f32 %v1542, %v1800
        %1802 = vmatmul.bf16.gmra.mxu0 %v1619
        %v1803 = vpop.f32.mrf.mxu0
        %v1804 = vadd.f32 %v1546, %v1803
        %v1805 = vpop.f32.mrf.mxu0
        %v1806 = vadd.f32 %v1550, %v1805
        %1807 = vmatmul.bf16.gmra.mxu0 %v1620
        %v1808 = vpop.f32.mrf.mxu0
        %v1809 = vadd.f32 %v1554, %v1808
        %v1810 = vpop.f32.mrf.mxu0
        %v1811 = vadd.f32 %v1558, %v1810
        %1812 = vmatmul.bf16.gmra.mxu0 %v1621
        %v1813 = vpop.f32.mrf.mxu0
        %v1814 = vadd.f32 %v1562, %v1813
        %v1815 = vpop.f32.mrf.mxu0
        %v1816 = vadd.f32 %v1566, %v1815
        %1817 = vmatmul.bf16.gmra.mxu0 %v1622
        %v1818 = vpop.f32.mrf.mxu0
        %v1819 = vadd.f32 %v1570, %v1818
        %v1820 = vpop.f32.mrf.mxu0
        %v1821 = vadd.f32 %v1574, %v1820
        %1822 = vmatmul.bf16.gmra.mxu0 %v1623
        %v1823 = vpop.f32.mrf.mxu0
        %v1824 = vadd.f32 %v1578, %v1823
        %v1825 = vpop.f32.mrf.mxu0
        %v1826 = vadd.f32 %v1582, %v1825
        %1827 = vdwg.mxu0
        %v1828 = vmax.f32 %v1642, 0.0
        %v1829 = vmax.f32 %v1691, 0.0
        %v1830 = vmax.f32 %v1740, 0.0
        %v1831 = vmax.f32 %v1789, 0.0
        %v1832 = vmax.f32 %v1644, 0.0
        %v1833 = vmax.f32 %v1693, 0.0
        %v1834 = vmax.f32 %v1742, 0.0
        %v1835 = vmax.f32 %v1791, 0.0
        %v1836 = vmax.f32 %v1647, 0.0
        %v1837 = vmax.f32 %v1696, 0.0
        %v1838 = vmax.f32 %v1745, 0.0
        %v1839 = vmax.f32 %v1794, 0.0
        %v1840 = vmax.f32 %v1649, 0.0
        %v1841 = vmax.f32 %v1698, 0.0
        %v1842 = vmax.f32 %v1747, 0.0
        %v1843 = vmax.f32 %v1796, 0.0
        %v1844 = vmax.f32 %v1652, 0.0
        %v1845 = vmax.f32 %v1701, 0.0
        %v1846 = vmax.f32 %v1750, 0.0
        %v1847 = vmax.f32 %v1799, 0.0
        %v1848 = vmax.f32 %v1654, 0.0
        %v1849 = vmax.f32 %v1703, 0.0
        %v1850 = vmax.f32 %v1752, 0.0
        %v1851 = vmax.f32 %v1801, 0.0
        %v1852 = vmax.f32 %v1657, 0.0
        %v1853 = vmax.f32 %v1706, 0.0
        %v1854 = vmax.f32 %v1755, 0.0
        %v1855 = vmax.f32 %v1804, 0.0
        %v1856 = vmax.f32 %v1659, 0.0
        %v1857 = vmax.f32 %v1708, 0.0
        %v1858 = vmax.f32 %v1757, 0.0
        %v1859 = vmax.f32 %v1806, 0.0
        %v1860 = vmax.f32 %v1662, 0.0
        %v1861 = vmax.f32 %v1711, 0.0
        %v1862 = vmax.f32 %v1760, 0.0
        %v1863 = vmax.f32 %v1809, 0.0
        %v1864 = vmax.f32 %v1664, 0.0
        %v1865 = vmax.f32 %v1713, 0.0
        %v1866 = vmax.f32 %v1762, 0.0
        %v1867 = vmax.f32 %v1811, 0.0
        %v1868 = vmax.f32 %v1667, 0.0
        %v1869 = vmax.f32 %v1716, 0.0
        %v1870 = vmax.f32 %v1765, 0.0
        %v1871 = vmax.f32 %v1814, 0.0
        %v1872 = vmax.f32 %v1669, 0.0
        %v1873 = vmax.f32 %v1718, 0.0
        %v1874 = vmax.f32 %v1767, 0.0
        %v1875 = vmax.f32 %v1816, 0.0
        %v1876 = vmax.f32 %v1672, 0.0
        %v1877 = vmax.f32 %v1721, 0.0
        %v1878 = vmax.f32 %v1770, 0.0
        %v1879 = vmax.f32 %v1819, 0.0
        %v1880 = vmax.f32 %v1674, 0.0
        %v1881 = vmax.f32 %v1723, 0.0
        %v1882 = vmax.f32 %v1772, 0.0
        %v1883 = vmax.f32 %v1821, 0.0
        %v1884 = vmax.f32 %v1677, 0.0
        %v1885 = vmax.f32 %v1726, 0.0
        %v1886 = vmax.f32 %v1775, 0.0
        %v1887 = vmax.f32 %v1824, 0.0
        %v1888 = vmax.f32 %v1679, 0.0
        %v1889 = vmax.f32 %v1728, 0.0
        %v1890 = vmax.f32 %v1777, 0.0
        %v1891 = vmax.f32 %v1826, 0.0
        %s1892 = scalar_lea.vmem [#allocation2], 128
        %v1893 = vld [vmem:[%s1892] sm:$0xf]
        %v1894 = vld [vmem:[%s1892 + $0x4] sm:$0xf]
        %v1895 = vld [vmem:[%s1892 + $0x8] sm:$0xf]
        %v1896 = vld [vmem:[%s1892 + $0xc] sm:$0xf]
        %v1897 = vld [vmem:[%s1892 + $0x10] sm:$0xf]
        %v1898 = vld [vmem:[%s1892 + $0x14] sm:$0xf]
        %v1899 = vld [vmem:[%s1892 + $0x18] sm:$0xf]
        %v1900 = vld [vmem:[%s1892 + $0x1c] sm:$0xf]
        %v1901 = vld [vmem:[%s1892 + $0x20] sm:$0xf]
        %v1902 = vld [vmem:[%s1892 + $0x24] sm:$0xf]
        %v1903 = vld [vmem:[%s1892 + $0x28] sm:$0xf]
        %v1904 = vld [vmem:[%s1892 + $0x2c] sm:$0xf]
        %v1905 = vld [vmem:[%s1892 + $0x30] sm:$0xf]
        %v1906 = vld [vmem:[%s1892 + $0x34] sm:$0xf]
        %v1907 = vld [vmem:[%s1892 + $0x38] sm:$0xf]
        %v1908 = vld [vmem:[%s1892 + $0x3c] sm:$0xf]
        %v1909 = vpack.c.bf16 %v1832, %v1828
        %v1910 = vpack.c.bf16 %v1833, %v1829
        %v1911 = vpack.c.bf16 %v1834, %v1830
        %v1912 = vpack.c.bf16 %v1835, %v1831
        %v1913 = vpack.c.bf16 %v1840, %v1836
        %v1914 = vpack.c.bf16 %v1841, %v1837
        %v1915 = vpack.c.bf16 %v1842, %v1838
        %v1916 = vpack.c.bf16 %v1843, %v1839
        %v1917 = vpack.c.bf16 %v1848, %v1844
        %v1918 = vpack.c.bf16 %v1849, %v1845
        %v1919 = vpack.c.bf16 %v1850, %v1846
        %v1920 = vpack.c.bf16 %v1851, %v1847
        %v1921 = vpack.c.bf16 %v1856, %v1852
        %v1922 = vpack.c.bf16 %v1857, %v1853
        %v1923 = vpack.c.bf16 %v1858, %v1854
        %v1924 = vpack.c.bf16 %v1859, %v1855
        %v1925 = vpack.c.bf16 %v1864, %v1860
        %v1926 = vpack.c.bf16 %v1865, %v1861
        %v1927 = vpack.c.bf16 %v1866, %v1862
        %v1928 = vpack.c.bf16 %v1867, %v1863
        %v1929 = vpack.c.bf16 %v1872, %v1868
        %v1930 = vpack.c.bf16 %v1873, %v1869
        %v1931 = vpack.c.bf16 %v1874, %v1870
        %v1932 = vpack.c.bf16 %v1875, %v1871
        %v1933 = vpack.c.bf16 %v1880, %v1876
        %v1934 = vpack.c.bf16 %v1881, %v1877
        %v1935 = vpack.c.bf16 %v1882, %v1878
        %v1936 = vpack.c.bf16 %v1883, %v1879
        %v1937 = vpack.c.bf16 %v1888, %v1884
        %v1938 = vpack.c.bf16 %v1889, %v1885
        %v1939 = vpack.c.bf16 %v1890, %v1886
        %v1940 = vpack.c.bf16 %v1891, %v1887
        %1941 = vset.pattern.permute.xlu0 3
        %1942 = vperm.xlu0 %1941, %v261
        %v1943 = vpop.permute.xlu0 %1942
        %1945 = vset.pattern.permute.xlu0 3
        %1946 = vperm.xlu0 %1945, %v262
        %v1947 = vpop.permute.xlu0 %1946
        %1949 = vset.pattern.permute.xlu0 3
        %1950 = vperm.xlu0 %1949, %v263
        %v1951 = vpop.permute.xlu0 %1950
        %1953 = vset.pattern.permute.xlu0 3
        %1954 = vperm.xlu0 %1953, %v264
        %v1955 = vpop.permute.xlu0 %1954
        %1957 = vset.pattern.permute.xlu0 3
        %1958 = vperm.xlu0 %1957, %v265
        %v1959 = vpop.permute.xlu0 %1958
        %1961 = vset.pattern.permute.xlu0 3
        %1962 = vperm.xlu0 %1961, %v266
        %v1963 = vpop.permute.xlu0 %1962
        %1965 = vset.pattern.permute.xlu0 3
        %1966 = vperm.xlu0 %1965, %v267
        %v1967 = vpop.permute.xlu0 %1966
        %1969 = vset.pattern.permute.xlu0 3
        %1970 = vperm.xlu0 %1969, %v268
        %v1971 = vpop.permute.xlu0 %1970
        %1973 = vset.pattern.permute.xlu0 3
        %1974 = vperm.xlu0 %1973, %v269
        %v1975 = vpop.permute.xlu0 %1974
        %1977 = vset.pattern.permute.xlu0 3
        %1978 = vperm.xlu0 %1977, %v270
        %v1979 = vpop.permute.xlu0 %1978
        %1981 = vset.pattern.permute.xlu0 3
        %1982 = vperm.xlu0 %1981, %v271
        %v1983 = vpop.permute.xlu0 %1982
        %1985 = vset.pattern.permute.xlu0 3
        %1986 = vperm.xlu0 %1985, %v272
        %v1987 = vpop.permute.xlu0 %1986
        %1989 = vset.pattern.permute.xlu0 3
        %1990 = vperm.xlu0 %1989, %v273
        %v1991 = vpop.permute.xlu0 %1990
        %1993 = vset.pattern.permute.xlu0 3
        %1994 = vperm.xlu0 %1993, %v274
        %v1995 = vpop.permute.xlu0 %1994
        %1997 = vset.pattern.permute.xlu0 3
        %1998 = vperm.xlu0 %1997, %v275
        %v1999 = vpop.permute.xlu0 %1998
        %2001 = vset.pattern.permute.xlu0 3
        %2002 = vperm.xlu0 %2001, %v276
        %v2003 = vpop.permute.xlu0 %2002
        %v2021 = vunpack.c.l.b16 %v1893
        %v2022 = vunpack.c.l.b16 %v1894
        %v2023 = vunpack.c.l.b16 %v1895
        %v2024 = vunpack.c.l.b16 %v1896
        %v2025 = vunpack.c.l.b16 %v1897
        %v2026 = vunpack.c.l.b16 %v1898
        %v2027 = vunpack.c.l.b16 %v1899
        %v2028 = vunpack.c.l.b16 %v1900
        %v2029 = vunpack.c.l.b16 %v1901
        %v2030 = vunpack.c.l.b16 %v1902
        %v2031 = vunpack.c.l.b16 %v1903
        %v2032 = vunpack.c.l.b16 %v1904
        %v2033 = vunpack.c.l.b16 %v1905
        %v2034 = vunpack.c.l.b16 %v1906
        %v2035 = vunpack.c.l.b16 %v1907
        %v2036 = vunpack.c.l.b16 %v1908
        %v2037 = vpack.c.b16 %v2022, %v2021
        %v2038 = vpack.c.b16 %v2024, %v2023
        %v2039 = vpack.c.b16 %v2026, %v2025
        %v2040 = vpack.c.b16 %v2028, %v2027
        %v2041 = vpack.c.b16 %v2030, %v2029
        %v2042 = vpack.c.b16 %v2032, %v2031
        %v2043 = vpack.c.b16 %v2034, %v2033
        %v2044 = vpack.c.b16 %v2036, %v2035
        %2053 = vmatpush.bf16.msra.mxu0 %v1937
        %2054 = vmatpush.bf16.msra.mxu0 %v1933
        %2055 = vmatpush.bf16.msra.mxu0 %v1929
        %2056 = vmatpush.bf16.msra.mxu0 %v1925
        %2057 = vmatpush.bf16.msra.mxu0 %v1921
        %2058 = vmatpush.bf16.msra.mxu0 %v1917
        %2059 = vmatpush.bf16.msra.mxu0 %v1913
        %2060 = vmatpush.bf16.msra.mxu0 %v1909
        %2061 = vmatmul.bf16.gmra.mxu0 %v2037
        %v2062 = vpop.f32.mrf.mxu0
        %v2063 = vadd.f32 %v1943, %v2062
        %v2064 = vpop.f32.mrf.mxu0
        %v2065 = vadd.f32 %v1947, %v2064
        %2066 = vmatmul.bf16.gmra.mxu0 %v2038
        %v2067 = vpop.f32.mrf.mxu0
        %v2068 = vadd.f32 %v1951, %v2067
        %v2069 = vpop.f32.mrf.mxu0
        %v2070 = vadd.f32 %v1955, %v2069
        %2071 = vmatmul.bf16.gmra.mxu0 %v2039
        %v2072 = vpop.f32.mrf.mxu0
        %v2073 = vadd.f32 %v1959, %v2072
        %v2074 = vpop.f32.mrf.mxu0
        %v2075 = vadd.f32 %v1963, %v2074
        %2076 = vmatmul.bf16.gmra.mxu0 %v2040
        %v2077 = vpop.f32.mrf.mxu0
        %v2078 = vadd.f32 %v1967, %v2077
        %v2079 = vpop.f32.mrf.mxu0
        %v2080 = vadd.f32 %v1971, %v2079
        %2081 = vmatmul.bf16.gmra.mxu0 %v2041
        %v2082 = vpop.f32.mrf.mxu0
        %v2083 = vadd.f32 %v1975, %v2082
        %v2084 = vpop.f32.mrf.mxu0
        %v2085 = vadd.f32 %v1979, %v2084
        %2086 = vmatmul.bf16.gmra.mxu0 %v2042
        %v2087 = vpop.f32.mrf.mxu0
        %v2088 = vadd.f32 %v1983, %v2087
        %v2089 = vpop.f32.mrf.mxu0
        %v2090 = vadd.f32 %v1987, %v2089
        %2091 = vmatmul.bf16.gmra.mxu0 %v2043
        %v2092 = vpop.f32.mrf.mxu0
        %v2093 = vadd.f32 %v1991, %v2092
        %v2094 = vpop.f32.mrf.mxu0
        %v2095 = vadd.f32 %v1995, %v2094
        %2096 = vmatmul.bf16.gmra.mxu0 %v2044
        %v2097 = vpop.f32.mrf.mxu0
        %v2098 = vadd.f32 %v1999, %v2097
        %v2099 = vpop.f32.mrf.mxu0
        %v2100 = vadd.f32 %v2003, %v2099
        %2101 = vdwg.mxu0
        %2102 = vmatpush.bf16.msra.mxu0 %v1938
        %2103 = vmatpush.bf16.msra.mxu0 %v1934
        %2104 = vmatpush.bf16.msra.mxu0 %v1930
        %2105 = vmatpush.bf16.msra.mxu0 %v1926
        %2106 = vmatpush.bf16.msra.mxu0 %v1922
        %2107 = vmatpush.bf16.msra.mxu0 %v1918
        %2108 = vmatpush.bf16.msra.mxu0 %v1914
        %2109 = vmatpush.bf16.msra.mxu0 %v1910
        %2110 = vmatmul.bf16.gmra.mxu0 %v2037
        %v2111 = vpop.f32.mrf.mxu0
        %v2112 = vadd.f32 %v1943, %v2111
        %v2113 = vpop.f32.mrf.mxu0
        %v2114 = vadd.f32 %v1947, %v2113
        %2115 = vmatmul.bf16.gmra.mxu0 %v2038
        %v2116 = vpop.f32.mrf.mxu0
        %v2117 = vadd.f32 %v1951, %v2116
        %v2118 = vpop.f32.mrf.mxu0
        %v2119 = vadd.f32 %v1955, %v2118
        %2120 = vmatmul.bf16.gmra.mxu0 %v2039
        %v2121 = vpop.f32.mrf.mxu0
        %v2122 = vadd.f32 %v1959, %v2121
        %v2123 = vpop.f32.mrf.mxu0
        %v2124 = vadd.f32 %v1963, %v2123
        %2125 = vmatmul.bf16.gmra.mxu0 %v2040
        %v2126 = vpop.f32.mrf.mxu0
        %v2127 = vadd.f32 %v1967, %v2126
        %v2128 = vpop.f32.mrf.mxu0
        %v2129 = vadd.f32 %v1971, %v2128
        %2130 = vmatmul.bf16.gmra.mxu0 %v2041
        %v2131 = vpop.f32.mrf.mxu0
        %v2132 = vadd.f32 %v1975, %v2131
        %v2133 = vpop.f32.mrf.mxu0
        %v2134 = vadd.f32 %v1979, %v2133
        %2135 = vmatmul.bf16.gmra.mxu0 %v2042
        %v2136 = vpop.f32.mrf.mxu0
        %v2137 = vadd.f32 %v1983, %v2136
        %v2138 = vpop.f32.mrf.mxu0
        %v2139 = vadd.f32 %v1987, %v2138
        %2140 = vmatmul.bf16.gmra.mxu0 %v2043
        %v2141 = vpop.f32.mrf.mxu0
        %v2142 = vadd.f32 %v1991, %v2141
        %v2143 = vpop.f32.mrf.mxu0
        %v2144 = vadd.f32 %v1995, %v2143
        %2145 = vmatmul.bf16.gmra.mxu0 %v2044
        %v2146 = vpop.f32.mrf.mxu0
        %v2147 = vadd.f32 %v1999, %v2146
        %v2148 = vpop.f32.mrf.mxu0
        %v2149 = vadd.f32 %v2003, %v2148
        %2150 = vdwg.mxu0
        %2151 = vmatpush.bf16.msra.mxu0 %v1939
        %2152 = vmatpush.bf16.msra.mxu0 %v1935
        %2153 = vmatpush.bf16.msra.mxu0 %v1931
        %2154 = vmatpush.bf16.msra.mxu0 %v1927
        %2155 = vmatpush.bf16.msra.mxu0 %v1923
        %2156 = vmatpush.bf16.msra.mxu0 %v1919
        %2157 = vmatpush.bf16.msra.mxu0 %v1915
        %2158 = vmatpush.bf16.msra.mxu0 %v1911
        %2159 = vmatmul.bf16.gmra.mxu0 %v2037
        %v2160 = vpop.f32.mrf.mxu0
        %v2161 = vadd.f32 %v1943, %v2160
        %v2162 = vpop.f32.mrf.mxu0
        %v2163 = vadd.f32 %v1947, %v2162
        %2164 = vmatmul.bf16.gmra.mxu0 %v2038
        %v2165 = vpop.f32.mrf.mxu0
        %v2166 = vadd.f32 %v1951, %v2165
        %v2167 = vpop.f32.mrf.mxu0
        %v2168 = vadd.f32 %v1955, %v2167
        %2169 = vmatmul.bf16.gmra.mxu0 %v2039
        %v2170 = vpop.f32.mrf.mxu0
        %v2171 = vadd.f32 %v1959, %v2170
        %v2172 = vpop.f32.mrf.mxu0
        %v2173 = vadd.f32 %v1963, %v2172
        %2174 = vmatmul.bf16.gmra.mxu0 %v2040
        %v2175 = vpop.f32.mrf.mxu0
        %v2176 = vadd.f32 %v1967, %v2175
        %v2177 = vpop.f32.mrf.mxu0
        %v2178 = vadd.f32 %v1971, %v2177
        %2179 = vmatmul.bf16.gmra.mxu0 %v2041
        %v2180 = vpop.f32.mrf.mxu0
        %v2181 = vadd.f32 %v1975, %v2180
        %v2182 = vpop.f32.mrf.mxu0
        %v2183 = vadd.f32 %v1979, %v2182
        %2184 = vmatmul.bf16.gmra.mxu0 %v2042
        %v2185 = vpop.f32.mrf.mxu0
        %v2186 = vadd.f32 %v1983, %v2185
        %v2187 = vpop.f32.mrf.mxu0
        %v2188 = vadd.f32 %v1987, %v2187
        %2189 = vmatmul.bf16.gmra.mxu0 %v2043
        %v2190 = vpop.f32.mrf.mxu0
        %v2191 = vadd.f32 %v1991, %v2190
        %v2192 = vpop.f32.mrf.mxu0
        %v2193 = vadd.f32 %v1995, %v2192
        %2194 = vmatmul.bf16.gmra.mxu0 %v2044
        %v2195 = vpop.f32.mrf.mxu0
        %v2196 = vadd.f32 %v1999, %v2195
        %v2197 = vpop.f32.mrf.mxu0
        %v2198 = vadd.f32 %v2003, %v2197
        %2199 = vdwg.mxu0
        %2200 = vmatpush.bf16.msra.mxu0 %v1940
        %2201 = vmatpush.bf16.msra.mxu0 %v1936
        %2202 = vmatpush.bf16.msra.mxu0 %v1932
        %2203 = vmatpush.bf16.msra.mxu0 %v1928
        %2204 = vmatpush.bf16.msra.mxu0 %v1924
        %2205 = vmatpush.bf16.msra.mxu0 %v1920
        %2206 = vmatpush.bf16.msra.mxu0 %v1916
        %2207 = vmatpush.bf16.msra.mxu0 %v1912
        %2208 = vmatmul.bf16.gmra.mxu0 %v2037
        %v2209 = vpop.f32.mrf.mxu0
        %v2210 = vadd.f32 %v1943, %v2209
        %v2211 = vpop.f32.mrf.mxu0
        %v2212 = vadd.f32 %v1947, %v2211
        %2213 = vmatmul.bf16.gmra.mxu0 %v2038
        %v2214 = vpop.f32.mrf.mxu0
        %v2215 = vadd.f32 %v1951, %v2214
        %v2216 = vpop.f32.mrf.mxu0
        %v2217 = vadd.f32 %v1955, %v2216
        %2218 = vmatmul.bf16.gmra.mxu0 %v2039
        %v2219 = vpop.f32.mrf.mxu0
        %v2220 = vadd.f32 %v1959, %v2219
        %v2221 = vpop.f32.mrf.mxu0
        %v2222 = vadd.f32 %v1963, %v2221
        %2223 = vmatmul.bf16.gmra.mxu0 %v2040
        %v2224 = vpop.f32.mrf.mxu0
        %v2225 = vadd.f32 %v1967, %v2224
        %v2226 = vpop.f32.mrf.mxu0
        %v2227 = vadd.f32 %v1971, %v2226
        %2228 = vmatmul.bf16.gmra.mxu0 %v2041
        %v2229 = vpop.f32.mrf.mxu0
        %v2230 = vadd.f32 %v1975, %v2229
        %v2231 = vpop.f32.mrf.mxu0
        %v2232 = vadd.f32 %v1979, %v2231
        %2233 = vmatmul.bf16.gmra.mxu0 %v2042
        %v2234 = vpop.f32.mrf.mxu0
        %v2235 = vadd.f32 %v1983, %v2234
        %v2236 = vpop.f32.mrf.mxu0
        %v2237 = vadd.f32 %v1987, %v2236
        %2238 = vmatmul.bf16.gmra.mxu0 %v2043
        %v2239 = vpop.f32.mrf.mxu0
        %v2240 = vadd.f32 %v1991, %v2239
        %v2241 = vpop.f32.mrf.mxu0
        %v2242 = vadd.f32 %v1995, %v2241
        %2243 = vmatmul.bf16.gmra.mxu0 %v2044
        %v2244 = vpop.f32.mrf.mxu0
        %v2245 = vadd.f32 %v1999, %v2244
        %v2246 = vpop.f32.mrf.mxu0
        %v2247 = vadd.f32 %v2003, %v2246
        %2248 = vdwg.mxu0
        %v2249 = vmax.f32 %v2063, 0.0
        %v2250 = vmax.f32 %v2112, 0.0
        %v2251 = vmax.f32 %v2161, 0.0
        %v2252 = vmax.f32 %v2210, 0.0
        %v2253 = vmax.f32 %v2065, 0.0
        %v2254 = vmax.f32 %v2114, 0.0
        %v2255 = vmax.f32 %v2163, 0.0
        %v2256 = vmax.f32 %v2212, 0.0
        %v2257 = vmax.f32 %v2068, 0.0
        %v2258 = vmax.f32 %v2117, 0.0
        %v2259 = vmax.f32 %v2166, 0.0
        %v2260 = vmax.f32 %v2215, 0.0
        %v2261 = vmax.f32 %v2070, 0.0
        %v2262 = vmax.f32 %v2119, 0.0
        %v2263 = vmax.f32 %v2168, 0.0
        %v2264 = vmax.f32 %v2217, 0.0
        %v2265 = vmax.f32 %v2073, 0.0
        %v2266 = vmax.f32 %v2122, 0.0
        %v2267 = vmax.f32 %v2171, 0.0
        %v2268 = vmax.f32 %v2220, 0.0
        %v2269 = vmax.f32 %v2075, 0.0
        %v2270 = vmax.f32 %v2124, 0.0
        %v2271 = vmax.f32 %v2173, 0.0
        %v2272 = vmax.f32 %v2222, 0.0
        %v2273 = vmax.f32 %v2078, 0.0
        %v2274 = vmax.f32 %v2127, 0.0
        %v2275 = vmax.f32 %v2176, 0.0
        %v2276 = vmax.f32 %v2225, 0.0
        %v2277 = vmax.f32 %v2080, 0.0
        %v2278 = vmax.f32 %v2129, 0.0
        %v2279 = vmax.f32 %v2178, 0.0
        %v2280 = vmax.f32 %v2227, 0.0
        %v2281 = vmax.f32 %v2083, 0.0
        %v2282 = vmax.f32 %v2132, 0.0
        %v2283 = vmax.f32 %v2181, 0.0
        %v2284 = vmax.f32 %v2230, 0.0
        %v2285 = vmax.f32 %v2085, 0.0
        %v2286 = vmax.f32 %v2134, 0.0
        %v2287 = vmax.f32 %v2183, 0.0
        %v2288 = vmax.f32 %v2232, 0.0
        %v2289 = vmax.f32 %v2088, 0.0
        %v2290 = vmax.f32 %v2137, 0.0
        %v2291 = vmax.f32 %v2186, 0.0
        %v2292 = vmax.f32 %v2235, 0.0
        %v2293 = vmax.f32 %v2090, 0.0
        %v2294 = vmax.f32 %v2139, 0.0
        %v2295 = vmax.f32 %v2188, 0.0
        %v2296 = vmax.f32 %v2237, 0.0
        %v2297 = vmax.f32 %v2093, 0.0
        %v2298 = vmax.f32 %v2142, 0.0
        %v2299 = vmax.f32 %v2191, 0.0
        %v2300 = vmax.f32 %v2240, 0.0
        %v2301 = vmax.f32 %v2095, 0.0
        %v2302 = vmax.f32 %v2144, 0.0
        %v2303 = vmax.f32 %v2193, 0.0
        %v2304 = vmax.f32 %v2242, 0.0
        %v2305 = vmax.f32 %v2098, 0.0
        %v2306 = vmax.f32 %v2147, 0.0
        %v2307 = vmax.f32 %v2196, 0.0
        %v2308 = vmax.f32 %v2245, 0.0
        %v2309 = vmax.f32 %v2100, 0.0
        %v2310 = vmax.f32 %v2149, 0.0
        %v2311 = vmax.f32 %v2198, 0.0
        %v2312 = vmax.f32 %v2247, 0.0
        %s2313 = scalar_lea.vmem [#allocation2], 192
        %v2314 = vld [vmem:[%s2313] sm:$0xf]
        %v2315 = vld [vmem:[%s2313 + $0x4] sm:$0xf]
        %v2316 = vld [vmem:[%s2313 + $0x8] sm:$0xf]
        %v2317 = vld [vmem:[%s2313 + $0xc] sm:$0xf]
        %v2318 = vld [vmem:[%s2313 + $0x10] sm:$0xf]
        %v2319 = vld [vmem:[%s2313 + $0x14] sm:$0xf]
        %v2320 = vld [vmem:[%s2313 + $0x18] sm:$0xf]
        %v2321 = vld [vmem:[%s2313 + $0x1c] sm:$0xf]
        %v2322 = vld [vmem:[%s2313 + $0x20] sm:$0xf]
        %v2323 = vld [vmem:[%s2313 + $0x24] sm:$0xf]
        %v2324 = vld [vmem:[%s2313 + $0x28] sm:$0xf]
        %v2325 = vld [vmem:[%s2313 + $0x2c] sm:$0xf]
        %v2326 = vld [vmem:[%s2313 + $0x30] sm:$0xf]
        %v2327 = vld [vmem:[%s2313 + $0x34] sm:$0xf]
        %v2328 = vld [vmem:[%s2313 + $0x38] sm:$0xf]
        %v2329 = vld [vmem:[%s2313 + $0x3c] sm:$0xf]
        %v2330 = vpack.c.bf16 %v2253, %v2249
        %v2331 = vpack.c.bf16 %v2254, %v2250
        %v2332 = vpack.c.bf16 %v2255, %v2251
        %v2333 = vpack.c.bf16 %v2256, %v2252
        %v2334 = vpack.c.bf16 %v2261, %v2257
        %v2335 = vpack.c.bf16 %v2262, %v2258
        %v2336 = vpack.c.bf16 %v2263, %v2259
        %v2337 = vpack.c.bf16 %v2264, %v2260
        %v2338 = vpack.c.bf16 %v2269, %v2265
        %v2339 = vpack.c.bf16 %v2270, %v2266
        %v2340 = vpack.c.bf16 %v2271, %v2267
        %v2341 = vpack.c.bf16 %v2272, %v2268
        %v2342 = vpack.c.bf16 %v2277, %v2273
        %v2343 = vpack.c.bf16 %v2278, %v2274
        %v2344 = vpack.c.bf16 %v2279, %v2275
        %v2345 = vpack.c.bf16 %v2280, %v2276
        %v2346 = vpack.c.bf16 %v2285, %v2281
        %v2347 = vpack.c.bf16 %v2286, %v2282
        %v2348 = vpack.c.bf16 %v2287, %v2283
        %v2349 = vpack.c.bf16 %v2288, %v2284
        %v2350 = vpack.c.bf16 %v2293, %v2289
        %v2351 = vpack.c.bf16 %v2294, %v2290
        %v2352 = vpack.c.bf16 %v2295, %v2291
        %v2353 = vpack.c.bf16 %v2296, %v2292
        %v2354 = vpack.c.bf16 %v2301, %v2297
        %v2355 = vpack.c.bf16 %v2302, %v2298
        %v2356 = vpack.c.bf16 %v2303, %v2299
        %v2357 = vpack.c.bf16 %v2304, %v2300
        %v2358 = vpack.c.bf16 %v2309, %v2305
        %v2359 = vpack.c.bf16 %v2310, %v2306
        %v2360 = vpack.c.bf16 %v2311, %v2307
        %v2361 = vpack.c.bf16 %v2312, %v2308
        %2362 = vset.pattern.permute.xlu0 4
        %2363 = vperm.xlu0 %2362, %v261
        %v2364 = vpop.permute.xlu0 %2363
        %2366 = vset.pattern.permute.xlu0 4
        %2367 = vperm.xlu0 %2366, %v262
        %v2368 = vpop.permute.xlu0 %2367
        %2370 = vset.pattern.permute.xlu0 4
        %2371 = vperm.xlu0 %2370, %v263
        %v2372 = vpop.permute.xlu0 %2371
        %2374 = vset.pattern.permute.xlu0 4
        %2375 = vperm.xlu0 %2374, %v264
        %v2376 = vpop.permute.xlu0 %2375
        %2378 = vset.pattern.permute.xlu0 4
        %2379 = vperm.xlu0 %2378, %v265
        %v2380 = vpop.permute.xlu0 %2379
        %2382 = vset.pattern.permute.xlu0 4
        %2383 = vperm.xlu0 %2382, %v266
        %v2384 = vpop.permute.xlu0 %2383
        %2386 = vset.pattern.permute.xlu0 4
        %2387 = vperm.xlu0 %2386, %v267
        %v2388 = vpop.permute.xlu0 %2387
        %2390 = vset.pattern.permute.xlu0 4
        %2391 = vperm.xlu0 %2390, %v268
        %v2392 = vpop.permute.xlu0 %2391
        %2394 = vset.pattern.permute.xlu0 4
        %2395 = vperm.xlu0 %2394, %v269
        %v2396 = vpop.permute.xlu0 %2395
        %2398 = vset.pattern.permute.xlu0 4
        %2399 = vperm.xlu0 %2398, %v270
        %v2400 = vpop.permute.xlu0 %2399
        %2402 = vset.pattern.permute.xlu0 4
        %2403 = vperm.xlu0 %2402, %v271
        %v2404 = vpop.permute.xlu0 %2403
        %2406 = vset.pattern.permute.xlu0 4
        %2407 = vperm.xlu0 %2406, %v272
        %v2408 = vpop.permute.xlu0 %2407
        %2410 = vset.pattern.permute.xlu0 4
        %2411 = vperm.xlu0 %2410, %v273
        %v2412 = vpop.permute.xlu0 %2411
        %2414 = vset.pattern.permute.xlu0 4
        %2415 = vperm.xlu0 %2414, %v274
        %v2416 = vpop.permute.xlu0 %2415
        %2418 = vset.pattern.permute.xlu0 4
        %2419 = vperm.xlu0 %2418, %v275
        %v2420 = vpop.permute.xlu0 %2419
        %2422 = vset.pattern.permute.xlu0 4
        %2423 = vperm.xlu0 %2422, %v276
        %v2424 = vpop.permute.xlu0 %2423
        %v2442 = vunpack.c.l.b16 %v2314
        %v2443 = vunpack.c.l.b16 %v2315
        %v2444 = vunpack.c.l.b16 %v2316
        %v2445 = vunpack.c.l.b16 %v2317
        %v2446 = vunpack.c.l.b16 %v2318
        %v2447 = vunpack.c.l.b16 %v2319
        %v2448 = vunpack.c.l.b16 %v2320
        %v2449 = vunpack.c.l.b16 %v2321
        %v2450 = vunpack.c.l.b16 %v2322
        %v2451 = vunpack.c.l.b16 %v2323
        %v2452 = vunpack.c.l.b16 %v2324
        %v2453 = vunpack.c.l.b16 %v2325
        %v2454 = vunpack.c.l.b16 %v2326
        %v2455 = vunpack.c.l.b16 %v2327
        %v2456 = vunpack.c.l.b16 %v2328
        %v2457 = vunpack.c.l.b16 %v2329
        %v2458 = vpack.c.b16 %v2443, %v2442
        %v2459 = vpack.c.b16 %v2445, %v2444
        %v2460 = vpack.c.b16 %v2447, %v2446
        %v2461 = vpack.c.b16 %v2449, %v2448
        %v2462 = vpack.c.b16 %v2451, %v2450
        %v2463 = vpack.c.b16 %v2453, %v2452
        %v2464 = vpack.c.b16 %v2455, %v2454
        %v2465 = vpack.c.b16 %v2457, %v2456
        %2474 = vmatpush.bf16.msra.mxu0 %v2358
        %2475 = vmatpush.bf16.msra.mxu0 %v2354
        %2476 = vmatpush.bf16.msra.mxu0 %v2350
        %2477 = vmatpush.bf16.msra.mxu0 %v2346
        %2478 = vmatpush.bf16.msra.mxu0 %v2342
        %2479 = vmatpush.bf16.msra.mxu0 %v2338
        %2480 = vmatpush.bf16.msra.mxu0 %v2334
        %2481 = vmatpush.bf16.msra.mxu0 %v2330
        %2482 = vmatmul.bf16.gmra.mxu0 %v2458
        %v2483 = vpop.f32.mrf.mxu0
        %v2484 = vadd.f32 %v2364, %v2483
        %v2485 = vpop.f32.mrf.mxu0
        %v2486 = vadd.f32 %v2368, %v2485
        %2487 = vmatmul.bf16.gmra.mxu0 %v2459
        %v2488 = vpop.f32.mrf.mxu0
        %v2489 = vadd.f32 %v2372, %v2488
        %v2490 = vpop.f32.mrf.mxu0
        %v2491 = vadd.f32 %v2376, %v2490
        %2492 = vmatmul.bf16.gmra.mxu0 %v2460
        %v2493 = vpop.f32.mrf.mxu0
        %v2494 = vadd.f32 %v2380, %v2493
        %v2495 = vpop.f32.mrf.mxu0
        %v2496 = vadd.f32 %v2384, %v2495
        %2497 = vmatmul.bf16.gmra.mxu0 %v2461
        %v2498 = vpop.f32.mrf.mxu0
        %v2499 = vadd.f32 %v2388, %v2498
        %v2500 = vpop.f32.mrf.mxu0
        %v2501 = vadd.f32 %v2392, %v2500
        %2502 = vmatmul.bf16.gmra.mxu0 %v2462
        %v2503 = vpop.f32.mrf.mxu0
        %v2504 = vadd.f32 %v2396, %v2503
        %v2505 = vpop.f32.mrf.mxu0
        %v2506 = vadd.f32 %v2400, %v2505
        %2507 = vmatmul.bf16.gmra.mxu0 %v2463
        %v2508 = vpop.f32.mrf.mxu0
        %v2509 = vadd.f32 %v2404, %v2508
        %v2510 = vpop.f32.mrf.mxu0
        %v2511 = vadd.f32 %v2408, %v2510
        %2512 = vmatmul.bf16.gmra.mxu0 %v2464
        %v2513 = vpop.f32.mrf.mxu0
        %v2514 = vadd.f32 %v2412, %v2513
        %v2515 = vpop.f32.mrf.mxu0
        %v2516 = vadd.f32 %v2416, %v2515
        %2517 = vmatmul.bf16.gmra.mxu0 %v2465
        %v2518 = vpop.f32.mrf.mxu0
        %v2519 = vadd.f32 %v2420, %v2518
        %v2520 = vpop.f32.mrf.mxu0
        %v2521 = vadd.f32 %v2424, %v2520
        %2522 = vdwg.mxu0
        %2523 = vmatpush.bf16.msra.mxu0 %v2359
        %2524 = vmatpush.bf16.msra.mxu0 %v2355
        %2525 = vmatpush.bf16.msra.mxu0 %v2351
        %2526 = vmatpush.bf16.msra.mxu0 %v2347
        %2527 = vmatpush.bf16.msra.mxu0 %v2343
        %2528 = vmatpush.bf16.msra.mxu0 %v2339
        %2529 = vmatpush.bf16.msra.mxu0 %v2335
        %2530 = vmatpush.bf16.msra.mxu0 %v2331
        %2531 = vmatmul.bf16.gmra.mxu0 %v2458
        %v2532 = vpop.f32.mrf.mxu0
        %v2533 = vadd.f32 %v2364, %v2532
        %v2534 = vpop.f32.mrf.mxu0
        %v2535 = vadd.f32 %v2368, %v2534
        %2536 = vmatmul.bf16.gmra.mxu0 %v2459
        %v2537 = vpop.f32.mrf.mxu0
        %v2538 = vadd.f32 %v2372, %v2537
        %v2539 = vpop.f32.mrf.mxu0
        %v2540 = vadd.f32 %v2376, %v2539
        %2541 = vmatmul.bf16.gmra.mxu0 %v2460
        %v2542 = vpop.f32.mrf.mxu0
        %v2543 = vadd.f32 %v2380, %v2542
        %v2544 = vpop.f32.mrf.mxu0
        %v2545 = vadd.f32 %v2384, %v2544
        %2546 = vmatmul.bf16.gmra.mxu0 %v2461
        %v2547 = vpop.f32.mrf.mxu0
        %v2548 = vadd.f32 %v2388, %v2547
        %v2549 = vpop.f32.mrf.mxu0
        %v2550 = vadd.f32 %v2392, %v2549
        %2551 = vmatmul.bf16.gmra.mxu0 %v2462
        %v2552 = vpop.f32.mrf.mxu0
        %v2553 = vadd.f32 %v2396, %v2552
        %v2554 = vpop.f32.mrf.mxu0
        %v2555 = vadd.f32 %v2400, %v2554
        %2556 = vmatmul.bf16.gmra.mxu0 %v2463
        %v2557 = vpop.f32.mrf.mxu0
        %v2558 = vadd.f32 %v2404, %v2557
        %v2559 = vpop.f32.mrf.mxu0
        %v2560 = vadd.f32 %v2408, %v2559
        %2561 = vmatmul.bf16.gmra.mxu0 %v2464
        %v2562 = vpop.f32.mrf.mxu0
        %v2563 = vadd.f32 %v2412, %v2562
        %v2564 = vpop.f32.mrf.mxu0
        %v2565 = vadd.f32 %v2416, %v2564
        %2566 = vmatmul.bf16.gmra.mxu0 %v2465
        %v2567 = vpop.f32.mrf.mxu0
        %v2568 = vadd.f32 %v2420, %v2567
        %v2569 = vpop.f32.mrf.mxu0
        %v2570 = vadd.f32 %v2424, %v2569
        %2571 = vdwg.mxu0
        %2572 = vmatpush.bf16.msra.mxu0 %v2360
        %2573 = vmatpush.bf16.msra.mxu0 %v2356
        %2574 = vmatpush.bf16.msra.mxu0 %v2352
        %2575 = vmatpush.bf16.msra.mxu0 %v2348
        %2576 = vmatpush.bf16.msra.mxu0 %v2344
        %2577 = vmatpush.bf16.msra.mxu0 %v2340
        %2578 = vmatpush.bf16.msra.mxu0 %v2336
        %2579 = vmatpush.bf16.msra.mxu0 %v2332
        %2580 = vmatmul.bf16.gmra.mxu0 %v2458
        %v2581 = vpop.f32.mrf.mxu0
        %v2582 = vadd.f32 %v2364, %v2581
        %v2583 = vpop.f32.mrf.mxu0
        %v2584 = vadd.f32 %v2368, %v2583
        %2585 = vmatmul.bf16.gmra.mxu0 %v2459
        %v2586 = vpop.f32.mrf.mxu0
        %v2587 = vadd.f32 %v2372, %v2586
        %v2588 = vpop.f32.mrf.mxu0
        %v2589 = vadd.f32 %v2376, %v2588
        %2590 = vmatmul.bf16.gmra.mxu0 %v2460
        %v2591 = vpop.f32.mrf.mxu0
        %v2592 = vadd.f32 %v2380, %v2591
        %v2593 = vpop.f32.mrf.mxu0
        %v2594 = vadd.f32 %v2384, %v2593
        %2595 = vmatmul.bf16.gmra.mxu0 %v2461
        %v2596 = vpop.f32.mrf.mxu0
        %v2597 = vadd.f32 %v2388, %v2596
        %v2598 = vpop.f32.mrf.mxu0
        %v2599 = vadd.f32 %v2392, %v2598
        %2600 = vmatmul.bf16.gmra.mxu0 %v2462
        %v2601 = vpop.f32.mrf.mxu0
        %v2602 = vadd.f32 %v2396, %v2601
        %v2603 = vpop.f32.mrf.mxu0
        %v2604 = vadd.f32 %v2400, %v2603
        %2605 = vmatmul.bf16.gmra.mxu0 %v2463
        %v2606 = vpop.f32.mrf.mxu0
        %v2607 = vadd.f32 %v2404, %v2606
        %v2608 = vpop.f32.mrf.mxu0
        %v2609 = vadd.f32 %v2408, %v2608
        %2610 = vmatmul.bf16.gmra.mxu0 %v2464
        %v2611 = vpop.f32.mrf.mxu0
        %v2612 = vadd.f32 %v2412, %v2611
        %v2613 = vpop.f32.mrf.mxu0
        %v2614 = vadd.f32 %v2416, %v2613
        %2615 = vmatmul.bf16.gmra.mxu0 %v2465
        %v2616 = vpop.f32.mrf.mxu0
        %v2617 = vadd.f32 %v2420, %v2616
        %v2618 = vpop.f32.mrf.mxu0
        %v2619 = vadd.f32 %v2424, %v2618
        %2620 = vdwg.mxu0
        %2621 = vmatpush.bf16.msra.mxu0 %v2361
        %2622 = vmatpush.bf16.msra.mxu0 %v2357
        %2623 = vmatpush.bf16.msra.mxu0 %v2353
        %2624 = vmatpush.bf16.msra.mxu0 %v2349
        %2625 = vmatpush.bf16.msra.mxu0 %v2345
        %2626 = vmatpush.bf16.msra.mxu0 %v2341
        %2627 = vmatpush.bf16.msra.mxu0 %v2337
        %2628 = vmatpush.bf16.msra.mxu0 %v2333
        %2629 = vmatmul.bf16.gmra.mxu0 %v2458
        %v2630 = vpop.f32.mrf.mxu0
        %v2631 = vadd.f32 %v2364, %v2630
        %v2632 = vpop.f32.mrf.mxu0
        %v2633 = vadd.f32 %v2368, %v2632
        %2634 = vmatmul.bf16.gmra.mxu0 %v2459
        %v2635 = vpop.f32.mrf.mxu0
        %v2636 = vadd.f32 %v2372, %v2635
        %v2637 = vpop.f32.mrf.mxu0
        %v2638 = vadd.f32 %v2376, %v2637
        %2639 = vmatmul.bf16.gmra.mxu0 %v2460
        %v2640 = vpop.f32.mrf.mxu0
        %v2641 = vadd.f32 %v2380, %v2640
        %v2642 = vpop.f32.mrf.mxu0
        %v2643 = vadd.f32 %v2384, %v2642
        %2644 = vmatmul.bf16.gmra.mxu0 %v2461
        %v2645 = vpop.f32.mrf.mxu0
        %v2646 = vadd.f32 %v2388, %v2645
        %v2647 = vpop.f32.mrf.mxu0
        %v2648 = vadd.f32 %v2392, %v2647
        %2649 = vmatmul.bf16.gmra.mxu0 %v2462
        %v2650 = vpop.f32.mrf.mxu0
        %v2651 = vadd.f32 %v2396, %v2650
        %v2652 = vpop.f32.mrf.mxu0
        %v2653 = vadd.f32 %v2400, %v2652
        %2654 = vmatmul.bf16.gmra.mxu0 %v2463
        %v2655 = vpop.f32.mrf.mxu0
        %v2656 = vadd.f32 %v2404, %v2655
        %v2657 = vpop.f32.mrf.mxu0
        %v2658 = vadd.f32 %v2408, %v2657
        %2659 = vmatmul.bf16.gmra.mxu0 %v2464
        %v2660 = vpop.f32.mrf.mxu0
        %v2661 = vadd.f32 %v2412, %v2660
        %v2662 = vpop.f32.mrf.mxu0
        %v2663 = vadd.f32 %v2416, %v2662
        %2664 = vmatmul.bf16.gmra.mxu0 %v2465
        %v2665 = vpop.f32.mrf.mxu0
        %v2666 = vadd.f32 %v2420, %v2665
        %v2667 = vpop.f32.mrf.mxu0
        %v2668 = vadd.f32 %v2424, %v2667
        %2669 = vdwg.mxu0
        %v2670 = vmax.f32 %v2484, 0.0
        %v2671 = vmax.f32 %v2533, 0.0
        %v2672 = vmax.f32 %v2582, 0.0
        %v2673 = vmax.f32 %v2631, 0.0
        %v2674 = vmax.f32 %v2486, 0.0
        %v2675 = vmax.f32 %v2535, 0.0
        %v2676 = vmax.f32 %v2584, 0.0
        %v2677 = vmax.f32 %v2633, 0.0
        %v2678 = vmax.f32 %v2489, 0.0
        %v2679 = vmax.f32 %v2538, 0.0
        %v2680 = vmax.f32 %v2587, 0.0
        %v2681 = vmax.f32 %v2636, 0.0
        %v2682 = vmax.f32 %v2491, 0.0
        %v2683 = vmax.f32 %v2540, 0.0
        %v2684 = vmax.f32 %v2589, 0.0
        %v2685 = vmax.f32 %v2638, 0.0
        %v2686 = vmax.f32 %v2494, 0.0
        %v2687 = vmax.f32 %v2543, 0.0
        %v2688 = vmax.f32 %v2592, 0.0
        %v2689 = vmax.f32 %v2641, 0.0
        %v2690 = vmax.f32 %v2496, 0.0
        %v2691 = vmax.f32 %v2545, 0.0
        %v2692 = vmax.f32 %v2594, 0.0
        %v2693 = vmax.f32 %v2643, 0.0
        %v2694 = vmax.f32 %v2499, 0.0
        %v2695 = vmax.f32 %v2548, 0.0
        %v2696 = vmax.f32 %v2597, 0.0
        %v2697 = vmax.f32 %v2646, 0.0
        %v2698 = vmax.f32 %v2501, 0.0
        %v2699 = vmax.f32 %v2550, 0.0
        %v2700 = vmax.f32 %v2599, 0.0
        %v2701 = vmax.f32 %v2648, 0.0
        %v2702 = vmax.f32 %v2504, 0.0
        %v2703 = vmax.f32 %v2553, 0.0
        %v2704 = vmax.f32 %v2602, 0.0
        %v2705 = vmax.f32 %v2651, 0.0
        %v2706 = vmax.f32 %v2506, 0.0
        %v2707 = vmax.f32 %v2555, 0.0
        %v2708 = vmax.f32 %v2604, 0.0
        %v2709 = vmax.f32 %v2653, 0.0
        %v2710 = vmax.f32 %v2509, 0.0
        %v2711 = vmax.f32 %v2558, 0.0
        %v2712 = vmax.f32 %v2607, 0.0
        %v2713 = vmax.f32 %v2656, 0.0
        %v2714 = vmax.f32 %v2511, 0.0
        %v2715 = vmax.f32 %v2560, 0.0
        %v2716 = vmax.f32 %v2609, 0.0
        %v2717 = vmax.f32 %v2658, 0.0
        %v2718 = vmax.f32 %v2514, 0.0
        %v2719 = vmax.f32 %v2563, 0.0
        %v2720 = vmax.f32 %v2612, 0.0
        %v2721 = vmax.f32 %v2661, 0.0
        %v2722 = vmax.f32 %v2516, 0.0
        %v2723 = vmax.f32 %v2565, 0.0
        %v2724 = vmax.f32 %v2614, 0.0
        %v2725 = vmax.f32 %v2663, 0.0
        %v2726 = vmax.f32 %v2519, 0.0
        %v2727 = vmax.f32 %v2568, 0.0
        %v2728 = vmax.f32 %v2617, 0.0
        %v2729 = vmax.f32 %v2666, 0.0
        %v2730 = vmax.f32 %v2521, 0.0
        %v2731 = vmax.f32 %v2570, 0.0
        %v2732 = vmax.f32 %v2619, 0.0
        %v2733 = vmax.f32 %v2668, 0.0
        %s2734 = scalar_lea.vmem [#allocation2], 256
        %v2735 = vld [vmem:[%s2734] sm:$0xf]
        %v2736 = vld [vmem:[%s2734 + $0x4] sm:$0xf]
        %v2737 = vld [vmem:[%s2734 + $0x8] sm:$0xf]
        %v2738 = vld [vmem:[%s2734 + $0xc] sm:$0xf]
        %v2739 = vld [vmem:[%s2734 + $0x10] sm:$0xf]
        %v2740 = vld [vmem:[%s2734 + $0x14] sm:$0xf]
        %v2741 = vld [vmem:[%s2734 + $0x18] sm:$0xf]
        %v2742 = vld [vmem:[%s2734 + $0x1c] sm:$0xf]
        %v2743 = vld [vmem:[%s2734 + $0x20] sm:$0xf]
        %v2744 = vld [vmem:[%s2734 + $0x24] sm:$0xf]
        %v2745 = vld [vmem:[%s2734 + $0x28] sm:$0xf]
        %v2746 = vld [vmem:[%s2734 + $0x2c] sm:$0xf]
        %v2747 = vld [vmem:[%s2734 + $0x30] sm:$0xf]
        %v2748 = vld [vmem:[%s2734 + $0x34] sm:$0xf]
        %v2749 = vld [vmem:[%s2734 + $0x38] sm:$0xf]
        %v2750 = vld [vmem:[%s2734 + $0x3c] sm:$0xf]
        %v2751 = vpack.c.bf16 %v2674, %v2670
        %v2752 = vpack.c.bf16 %v2675, %v2671
        %v2753 = vpack.c.bf16 %v2676, %v2672
        %v2754 = vpack.c.bf16 %v2677, %v2673
        %v2755 = vpack.c.bf16 %v2682, %v2678
        %v2756 = vpack.c.bf16 %v2683, %v2679
        %v2757 = vpack.c.bf16 %v2684, %v2680
        %v2758 = vpack.c.bf16 %v2685, %v2681
        %v2759 = vpack.c.bf16 %v2690, %v2686
        %v2760 = vpack.c.bf16 %v2691, %v2687
        %v2761 = vpack.c.bf16 %v2692, %v2688
        %v2762 = vpack.c.bf16 %v2693, %v2689
        %v2763 = vpack.c.bf16 %v2698, %v2694
        %v2764 = vpack.c.bf16 %v2699, %v2695
        %v2765 = vpack.c.bf16 %v2700, %v2696
        %v2766 = vpack.c.bf16 %v2701, %v2697
        %v2767 = vpack.c.bf16 %v2706, %v2702
        %v2768 = vpack.c.bf16 %v2707, %v2703
        %v2769 = vpack.c.bf16 %v2708, %v2704
        %v2770 = vpack.c.bf16 %v2709, %v2705
        %v2771 = vpack.c.bf16 %v2714, %v2710
        %v2772 = vpack.c.bf16 %v2715, %v2711
        %v2773 = vpack.c.bf16 %v2716, %v2712
        %v2774 = vpack.c.bf16 %v2717, %v2713
        %v2775 = vpack.c.bf16 %v2722, %v2718
        %v2776 = vpack.c.bf16 %v2723, %v2719
        %v2777 = vpack.c.bf16 %v2724, %v2720
        %v2778 = vpack.c.bf16 %v2725, %v2721
        %v2779 = vpack.c.bf16 %v2730, %v2726
        %v2780 = vpack.c.bf16 %v2731, %v2727
        %v2781 = vpack.c.bf16 %v2732, %v2728
        %v2782 = vpack.c.bf16 %v2733, %v2729
        %2783 = vset.pattern.permute.xlu0 5
        %2784 = vperm.xlu0 %2783, %v261
        %v2785 = vpop.permute.xlu0 %2784
        %2787 = vset.pattern.permute.xlu0 5
        %2788 = vperm.xlu0 %2787, %v262
        %v2789 = vpop.permute.xlu0 %2788
        %2791 = vset.pattern.permute.xlu0 5
        %2792 = vperm.xlu0 %2791, %v263
        %v2793 = vpop.permute.xlu0 %2792
        %2795 = vset.pattern.permute.xlu0 5
        %2796 = vperm.xlu0 %2795, %v264
        %v2797 = vpop.permute.xlu0 %2796
        %2799 = vset.pattern.permute.xlu0 5
        %2800 = vperm.xlu0 %2799, %v265
        %v2801 = vpop.permute.xlu0 %2800
        %2803 = vset.pattern.permute.xlu0 5
        %2804 = vperm.xlu0 %2803, %v266
        %v2805 = vpop.permute.xlu0 %2804
        %2807 = vset.pattern.permute.xlu0 5
        %2808 = vperm.xlu0 %2807, %v267
        %v2809 = vpop.permute.xlu0 %2808
        %2811 = vset.pattern.permute.xlu0 5
        %2812 = vperm.xlu0 %2811, %v268
        %v2813 = vpop.permute.xlu0 %2812
        %2815 = vset.pattern.permute.xlu0 5
        %2816 = vperm.xlu0 %2815, %v269
        %v2817 = vpop.permute.xlu0 %2816
        %2819 = vset.pattern.permute.xlu0 5
        %2820 = vperm.xlu0 %2819, %v270
        %v2821 = vpop.permute.xlu0 %2820
        %2823 = vset.pattern.permute.xlu0 5
        %2824 = vperm.xlu0 %2823, %v271
        %v2825 = vpop.permute.xlu0 %2824
        %2827 = vset.pattern.permute.xlu0 5
        %2828 = vperm.xlu0 %2827, %v272
        %v2829 = vpop.permute.xlu0 %2828
        %2831 = vset.pattern.permute.xlu0 5
        %2832 = vperm.xlu0 %2831, %v273
        %v2833 = vpop.permute.xlu0 %2832
        %2835 = vset.pattern.permute.xlu0 5
        %2836 = vperm.xlu0 %2835, %v274
        %v2837 = vpop.permute.xlu0 %2836
        %2839 = vset.pattern.permute.xlu0 5
        %2840 = vperm.xlu0 %2839, %v275
        %v2841 = vpop.permute.xlu0 %2840
        %2843 = vset.pattern.permute.xlu0 5
        %2844 = vperm.xlu0 %2843, %v276
        %v2845 = vpop.permute.xlu0 %2844
        %v2863 = vunpack.c.l.b16 %v2735
        %v2864 = vunpack.c.l.b16 %v2736
        %v2865 = vunpack.c.l.b16 %v2737
        %v2866 = vunpack.c.l.b16 %v2738
        %v2867 = vunpack.c.l.b16 %v2739
        %v2868 = vunpack.c.l.b16 %v2740
        %v2869 = vunpack.c.l.b16 %v2741
        %v2870 = vunpack.c.l.b16 %v2742
        %v2871 = vunpack.c.l.b16 %v2743
        %v2872 = vunpack.c.l.b16 %v2744
        %v2873 = vunpack.c.l.b16 %v2745
        %v2874 = vunpack.c.l.b16 %v2746
        %v2875 = vunpack.c.l.b16 %v2747
        %v2876 = vunpack.c.l.b16 %v2748
        %v2877 = vunpack.c.l.b16 %v2749
        %v2878 = vunpack.c.l.b16 %v2750
        %v2879 = vpack.c.b16 %v2864, %v2863
        %v2880 = vpack.c.b16 %v2866, %v2865
        %v2881 = vpack.c.b16 %v2868, %v2867
        %v2882 = vpack.c.b16 %v2870, %v2869
        %v2883 = vpack.c.b16 %v2872, %v2871
        %v2884 = vpack.c.b16 %v2874, %v2873
        %v2885 = vpack.c.b16 %v2876, %v2875
        %v2886 = vpack.c.b16 %v2878, %v2877
        %2895 = vmatpush.bf16.msra.mxu0 %v2779
        %2896 = vmatpush.bf16.msra.mxu0 %v2775
        %2897 = vmatpush.bf16.msra.mxu0 %v2771
        %2898 = vmatpush.bf16.msra.mxu0 %v2767
        %2899 = vmatpush.bf16.msra.mxu0 %v2763
        %2900 = vmatpush.bf16.msra.mxu0 %v2759
        %2901 = vmatpush.bf16.msra.mxu0 %v2755
        %2902 = vmatpush.bf16.msra.mxu0 %v2751
        %2903 = vmatmul.bf16.gmra.mxu0 %v2879
        %v2904 = vpop.f32.mrf.mxu0
        %v2905 = vadd.f32 %v2785, %v2904
        %v2906 = vpop.f32.mrf.mxu0
        %v2907 = vadd.f32 %v2789, %v2906
        %2908 = vmatmul.bf16.gmra.mxu0 %v2880
        %v2909 = vpop.f32.mrf.mxu0
        %v2910 = vadd.f32 %v2793, %v2909
        %v2911 = vpop.f32.mrf.mxu0
        %v2912 = vadd.f32 %v2797, %v2911
        %2913 = vmatmul.bf16.gmra.mxu0 %v2881
        %v2914 = vpop.f32.mrf.mxu0
        %v2915 = vadd.f32 %v2801, %v2914
        %v2916 = vpop.f32.mrf.mxu0
        %v2917 = vadd.f32 %v2805, %v2916
        %2918 = vmatmul.bf16.gmra.mxu0 %v2882
        %v2919 = vpop.f32.mrf.mxu0
        %v2920 = vadd.f32 %v2809, %v2919
        %v2921 = vpop.f32.mrf.mxu0
        %v2922 = vadd.f32 %v2813, %v2921
        %2923 = vmatmul.bf16.gmra.mxu0 %v2883
        %v2924 = vpop.f32.mrf.mxu0
        %v2925 = vadd.f32 %v2817, %v2924
        %v2926 = vpop.f32.mrf.mxu0
        %v2927 = vadd.f32 %v2821, %v2926
        %2928 = vmatmul.bf16.gmra.mxu0 %v2884
        %v2929 = vpop.f32.mrf.mxu0
        %v2930 = vadd.f32 %v2825, %v2929
        %v2931 = vpop.f32.mrf.mxu0
        %v2932 = vadd.f32 %v2829, %v2931
        %2933 = vmatmul.bf16.gmra.mxu0 %v2885
        %v2934 = vpop.f32.mrf.mxu0
        %v2935 = vadd.f32 %v2833, %v2934
        %v2936 = vpop.f32.mrf.mxu0
        %v2937 = vadd.f32 %v2837, %v2936
        %2938 = vmatmul.bf16.gmra.mxu0 %v2886
        %v2939 = vpop.f32.mrf.mxu0
        %v2940 = vadd.f32 %v2841, %v2939
        %v2941 = vpop.f32.mrf.mxu0
        %v2942 = vadd.f32 %v2845, %v2941
        %2943 = vdwg.mxu0
        %2944 = vmatpush.bf16.msra.mxu0 %v2780
        %2945 = vmatpush.bf16.msra.mxu0 %v2776
        %2946 = vmatpush.bf16.msra.mxu0 %v2772
        %2947 = vmatpush.bf16.msra.mxu0 %v2768
        %2948 = vmatpush.bf16.msra.mxu0 %v2764
        %2949 = vmatpush.bf16.msra.mxu0 %v2760
        %2950 = vmatpush.bf16.msra.mxu0 %v2756
        %2951 = vmatpush.bf16.msra.mxu0 %v2752
        %2952 = vmatmul.bf16.gmra.mxu0 %v2879
        %v2953 = vpop.f32.mrf.mxu0
        %v2954 = vadd.f32 %v2785, %v2953
        %v2955 = vpop.f32.mrf.mxu0
        %v2956 = vadd.f32 %v2789, %v2955
        %2957 = vmatmul.bf16.gmra.mxu0 %v2880
        %v2958 = vpop.f32.mrf.mxu0
        %v2959 = vadd.f32 %v2793, %v2958
        %v2960 = vpop.f32.mrf.mxu0
        %v2961 = vadd.f32 %v2797, %v2960
        %2962 = vmatmul.bf16.gmra.mxu0 %v2881
        %v2963 = vpop.f32.mrf.mxu0
        %v2964 = vadd.f32 %v2801, %v2963
        %v2965 = vpop.f32.mrf.mxu0
        %v2966 = vadd.f32 %v2805, %v2965
        %2967 = vmatmul.bf16.gmra.mxu0 %v2882
        %v2968 = vpop.f32.mrf.mxu0
        %v2969 = vadd.f32 %v2809, %v2968
        %v2970 = vpop.f32.mrf.mxu0
        %v2971 = vadd.f32 %v2813, %v2970
        %2972 = vmatmul.bf16.gmra.mxu0 %v2883
        %v2973 = vpop.f32.mrf.mxu0
        %v2974 = vadd.f32 %v2817, %v2973
        %v2975 = vpop.f32.mrf.mxu0
        %v2976 = vadd.f32 %v2821, %v2975
        %2977 = vmatmul.bf16.gmra.mxu0 %v2884
        %v2978 = vpop.f32.mrf.mxu0
        %v2979 = vadd.f32 %v2825, %v2978
        %v2980 = vpop.f32.mrf.mxu0
        %v2981 = vadd.f32 %v2829, %v2980
        %2982 = vmatmul.bf16.gmra.mxu0 %v2885
        %v2983 = vpop.f32.mrf.mxu0
        %v2984 = vadd.f32 %v2833, %v2983
        %v2985 = vpop.f32.mrf.mxu0
        %v2986 = vadd.f32 %v2837, %v2985
        %2987 = vmatmul.bf16.gmra.mxu0 %v2886
        %v2988 = vpop.f32.mrf.mxu0
        %v2989 = vadd.f32 %v2841, %v2988
        %v2990 = vpop.f32.mrf.mxu0
        %v2991 = vadd.f32 %v2845, %v2990
        %2992 = vdwg.mxu0
        %2993 = vmatpush.bf16.msra.mxu0 %v2781
        %2994 = vmatpush.bf16.msra.mxu0 %v2777
        %2995 = vmatpush.bf16.msra.mxu0 %v2773
        %2996 = vmatpush.bf16.msra.mxu0 %v2769
        %2997 = vmatpush.bf16.msra.mxu0 %v2765
        %2998 = vmatpush.bf16.msra.mxu0 %v2761
        %2999 = vmatpush.bf16.msra.mxu0 %v2757
        %3000 = vmatpush.bf16.msra.mxu0 %v2753
        %3001 = vmatmul.bf16.gmra.mxu0 %v2879
        %v3002 = vpop.f32.mrf.mxu0
        %v3003 = vadd.f32 %v2785, %v3002
        %v3004 = vpop.f32.mrf.mxu0
        %v3005 = vadd.f32 %v2789, %v3004
        %3006 = vmatmul.bf16.gmra.mxu0 %v2880
        %v3007 = vpop.f32.mrf.mxu0
        %v3008 = vadd.f32 %v2793, %v3007
        %v3009 = vpop.f32.mrf.mxu0
        %v3010 = vadd.f32 %v2797, %v3009
        %3011 = vmatmul.bf16.gmra.mxu0 %v2881
        %v3012 = vpop.f32.mrf.mxu0
        %v3013 = vadd.f32 %v2801, %v3012
        %v3014 = vpop.f32.mrf.mxu0
        %v3015 = vadd.f32 %v2805, %v3014
        %3016 = vmatmul.bf16.gmra.mxu0 %v2882
        %v3017 = vpop.f32.mrf.mxu0
        %v3018 = vadd.f32 %v2809, %v3017
        %v3019 = vpop.f32.mrf.mxu0
        %v3020 = vadd.f32 %v2813, %v3019
        %3021 = vmatmul.bf16.gmra.mxu0 %v2883
        %v3022 = vpop.f32.mrf.mxu0
        %v3023 = vadd.f32 %v2817, %v3022
        %v3024 = vpop.f32.mrf.mxu0
        %v3025 = vadd.f32 %v2821, %v3024
        %3026 = vmatmul.bf16.gmra.mxu0 %v2884
        %v3027 = vpop.f32.mrf.mxu0
        %v3028 = vadd.f32 %v2825, %v3027
        %v3029 = vpop.f32.mrf.mxu0
        %v3030 = vadd.f32 %v2829, %v3029
        %3031 = vmatmul.bf16.gmra.mxu0 %v2885
        %v3032 = vpop.f32.mrf.mxu0
        %v3033 = vadd.f32 %v2833, %v3032
        %v3034 = vpop.f32.mrf.mxu0
        %v3035 = vadd.f32 %v2837, %v3034
        %3036 = vmatmul.bf16.gmra.mxu0 %v2886
        %v3037 = vpop.f32.mrf.mxu0
        %v3038 = vadd.f32 %v2841, %v3037
        %v3039 = vpop.f32.mrf.mxu0
        %v3040 = vadd.f32 %v2845, %v3039
        %3041 = vdwg.mxu0
        %3042 = vmatpush.bf16.msra.mxu0 %v2782
        %3043 = vmatpush.bf16.msra.mxu0 %v2778
        %3044 = vmatpush.bf16.msra.mxu0 %v2774
        %3045 = vmatpush.bf16.msra.mxu0 %v2770
        %3046 = vmatpush.bf16.msra.mxu0 %v2766
        %3047 = vmatpush.bf16.msra.mxu0 %v2762
        %3048 = vmatpush.bf16.msra.mxu0 %v2758
        %3049 = vmatpush.bf16.msra.mxu0 %v2754
        %3050 = vmatmul.bf16.gmra.mxu0 %v2879
        %v3051 = vpop.f32.mrf.mxu0
        %v3052 = vadd.f32 %v2785, %v3051
        %v3053 = vpop.f32.mrf.mxu0
        %v3054 = vadd.f32 %v2789, %v3053
        %3055 = vmatmul.bf16.gmra.mxu0 %v2880
        %v3056 = vpop.f32.mrf.mxu0
        %v3057 = vadd.f32 %v2793, %v3056
        %v3058 = vpop.f32.mrf.mxu0
        %v3059 = vadd.f32 %v2797, %v3058
        %3060 = vmatmul.bf16.gmra.mxu0 %v2881
        %v3061 = vpop.f32.mrf.mxu0
        %v3062 = vadd.f32 %v2801, %v3061
        %v3063 = vpop.f32.mrf.mxu0
        %v3064 = vadd.f32 %v2805, %v3063
        %3065 = vmatmul.bf16.gmra.mxu0 %v2882
        %v3066 = vpop.f32.mrf.mxu0
        %v3067 = vadd.f32 %v2809, %v3066
        %v3068 = vpop.f32.mrf.mxu0
        %v3069 = vadd.f32 %v2813, %v3068
        %3070 = vmatmul.bf16.gmra.mxu0 %v2883
        %v3071 = vpop.f32.mrf.mxu0
        %v3072 = vadd.f32 %v2817, %v3071
        %v3073 = vpop.f32.mrf.mxu0
        %v3074 = vadd.f32 %v2821, %v3073
        %3075 = vmatmul.bf16.gmra.mxu0 %v2884
        %v3076 = vpop.f32.mrf.mxu0
        %v3077 = vadd.f32 %v2825, %v3076
        %v3078 = vpop.f32.mrf.mxu0
        %v3079 = vadd.f32 %v2829, %v3078
        %3080 = vmatmul.bf16.gmra.mxu0 %v2885
        %v3081 = vpop.f32.mrf.mxu0
        %v3082 = vadd.f32 %v2833, %v3081
        %v3083 = vpop.f32.mrf.mxu0
        %v3084 = vadd.f32 %v2837, %v3083
        %3085 = vmatmul.bf16.gmra.mxu0 %v2886
        %v3086 = vpop.f32.mrf.mxu0
        %v3087 = vadd.f32 %v2841, %v3086
        %v3088 = vpop.f32.mrf.mxu0
        %v3089 = vadd.f32 %v2845, %v3088
        %3090 = vdwg.mxu0
        %v3091 = vmax.f32 %v2905, 0.0
        %v3092 = vmax.f32 %v2954, 0.0
        %v3093 = vmax.f32 %v3003, 0.0
        %v3094 = vmax.f32 %v3052, 0.0
        %v3095 = vmax.f32 %v2907, 0.0
        %v3096 = vmax.f32 %v2956, 0.0
        %v3097 = vmax.f32 %v3005, 0.0
        %v3098 = vmax.f32 %v3054, 0.0
        %v3099 = vmax.f32 %v2910, 0.0
        %v3100 = vmax.f32 %v2959, 0.0
        %v3101 = vmax.f32 %v3008, 0.0
        %v3102 = vmax.f32 %v3057, 0.0
        %v3103 = vmax.f32 %v2912, 0.0
        %v3104 = vmax.f32 %v2961, 0.0
        %v3105 = vmax.f32 %v3010, 0.0
        %v3106 = vmax.f32 %v3059, 0.0
        %v3107 = vmax.f32 %v2915, 0.0
        %v3108 = vmax.f32 %v2964, 0.0
        %v3109 = vmax.f32 %v3013, 0.0
        %v3110 = vmax.f32 %v3062, 0.0
        %v3111 = vmax.f32 %v2917, 0.0
        %v3112 = vmax.f32 %v2966, 0.0
        %v3113 = vmax.f32 %v3015, 0.0
        %v3114 = vmax.f32 %v3064, 0.0
        %v3115 = vmax.f32 %v2920, 0.0
        %v3116 = vmax.f32 %v2969, 0.0
        %v3117 = vmax.f32 %v3018, 0.0
        %v3118 = vmax.f32 %v3067, 0.0
        %v3119 = vmax.f32 %v2922, 0.0
        %v3120 = vmax.f32 %v2971, 0.0
        %v3121 = vmax.f32 %v3020, 0.0
        %v3122 = vmax.f32 %v3069, 0.0
        %v3123 = vmax.f32 %v2925, 0.0
        %v3124 = vmax.f32 %v2974, 0.0
        %v3125 = vmax.f32 %v3023, 0.0
        %v3126 = vmax.f32 %v3072, 0.0
        %v3127 = vmax.f32 %v2927, 0.0
        %v3128 = vmax.f32 %v2976, 0.0
        %v3129 = vmax.f32 %v3025, 0.0
        %v3130 = vmax.f32 %v3074, 0.0
        %v3131 = vmax.f32 %v2930, 0.0
        %v3132 = vmax.f32 %v2979, 0.0
        %v3133 = vmax.f32 %v3028, 0.0
        %v3134 = vmax.f32 %v3077, 0.0
        %v3135 = vmax.f32 %v2932, 0.0
        %v3136 = vmax.f32 %v2981, 0.0
        %v3137 = vmax.f32 %v3030, 0.0
        %v3138 = vmax.f32 %v3079, 0.0
        %v3139 = vmax.f32 %v2935, 0.0
        %v3140 = vmax.f32 %v2984, 0.0
        %v3141 = vmax.f32 %v3033, 0.0
        %v3142 = vmax.f32 %v3082, 0.0
        %v3143 = vmax.f32 %v2937, 0.0
        %v3144 = vmax.f32 %v2986, 0.0
        %v3145 = vmax.f32 %v3035, 0.0
        %v3146 = vmax.f32 %v3084, 0.0
        %v3147 = vmax.f32 %v2940, 0.0
        %v3148 = vmax.f32 %v2989, 0.0
        %v3149 = vmax.f32 %v3038, 0.0
        %v3150 = vmax.f32 %v3087, 0.0
        %v3151 = vmax.f32 %v2942, 0.0
        %v3152 = vmax.f32 %v2991, 0.0
        %v3153 = vmax.f32 %v3040, 0.0
        %v3154 = vmax.f32 %v3089, 0.0
        %s3155 = scalar_lea.vmem [#allocation2], 320
        %v3156 = vld [vmem:[%s3155] sm:$0xf]
        %v3157 = vld [vmem:[%s3155 + $0x4] sm:$0xf]
        %v3158 = vld [vmem:[%s3155 + $0x8] sm:$0xf]
        %v3159 = vld [vmem:[%s3155 + $0xc] sm:$0xf]
        %v3160 = vld [vmem:[%s3155 + $0x10] sm:$0xf]
        %v3161 = vld [vmem:[%s3155 + $0x14] sm:$0xf]
        %v3162 = vld [vmem:[%s3155 + $0x18] sm:$0xf]
        %v3163 = vld [vmem:[%s3155 + $0x1c] sm:$0xf]
        %v3164 = vld [vmem:[%s3155 + $0x20] sm:$0xf]
        %v3165 = vld [vmem:[%s3155 + $0x24] sm:$0xf]
        %v3166 = vld [vmem:[%s3155 + $0x28] sm:$0xf]
        %v3167 = vld [vmem:[%s3155 + $0x2c] sm:$0xf]
        %v3168 = vld [vmem:[%s3155 + $0x30] sm:$0xf]
        %v3169 = vld [vmem:[%s3155 + $0x34] sm:$0xf]
        %v3170 = vld [vmem:[%s3155 + $0x38] sm:$0xf]
        %v3171 = vld [vmem:[%s3155 + $0x3c] sm:$0xf]
        %v3172 = vpack.c.bf16 %v3095, %v3091
        %v3173 = vpack.c.bf16 %v3096, %v3092
        %v3174 = vpack.c.bf16 %v3097, %v3093
        %v3175 = vpack.c.bf16 %v3098, %v3094
        %v3176 = vpack.c.bf16 %v3103, %v3099
        %v3177 = vpack.c.bf16 %v3104, %v3100
        %v3178 = vpack.c.bf16 %v3105, %v3101
        %v3179 = vpack.c.bf16 %v3106, %v3102
        %v3180 = vpack.c.bf16 %v3111, %v3107
        %v3181 = vpack.c.bf16 %v3112, %v3108
        %v3182 = vpack.c.bf16 %v3113, %v3109
        %v3183 = vpack.c.bf16 %v3114, %v3110
        %v3184 = vpack.c.bf16 %v3119, %v3115
        %v3185 = vpack.c.bf16 %v3120, %v3116
        %v3186 = vpack.c.bf16 %v3121, %v3117
        %v3187 = vpack.c.bf16 %v3122, %v3118
        %v3188 = vpack.c.bf16 %v3127, %v3123
        %v3189 = vpack.c.bf16 %v3128, %v3124
        %v3190 = vpack.c.bf16 %v3129, %v3125
        %v3191 = vpack.c.bf16 %v3130, %v3126
        %v3192 = vpack.c.bf16 %v3135, %v3131
        %v3193 = vpack.c.bf16 %v3136, %v3132
        %v3194 = vpack.c.bf16 %v3137, %v3133
        %v3195 = vpack.c.bf16 %v3138, %v3134
        %v3196 = vpack.c.bf16 %v3143, %v3139
        %v3197 = vpack.c.bf16 %v3144, %v3140
        %v3198 = vpack.c.bf16 %v3145, %v3141
        %v3199 = vpack.c.bf16 %v3146, %v3142
        %v3200 = vpack.c.bf16 %v3151, %v3147
        %v3201 = vpack.c.bf16 %v3152, %v3148
        %v3202 = vpack.c.bf16 %v3153, %v3149
        %v3203 = vpack.c.bf16 %v3154, %v3150
        %3204 = vset.pattern.permute.xlu0 6
        %3205 = vperm.xlu0 %3204, %v261
        %v3206 = vpop.permute.xlu0 %3205
        %3208 = vset.pattern.permute.xlu0 6
        %3209 = vperm.xlu0 %3208, %v262
        %v3210 = vpop.permute.xlu0 %3209
        %3212 = vset.pattern.permute.xlu0 6
        %3213 = vperm.xlu0 %3212, %v263
        %v3214 = vpop.permute.xlu0 %3213
        %3216 = vset.pattern.permute.xlu0 6
        %3217 = vperm.xlu0 %3216, %v264
        %v3218 = vpop.permute.xlu0 %3217
        %3220 = vset.pattern.permute.xlu0 6
        %3221 = vperm.xlu0 %3220, %v265
        %v3222 = vpop.permute.xlu0 %3221
        %3224 = vset.pattern.permute.xlu0 6
        %3225 = vperm.xlu0 %3224, %v266
        %v3226 = vpop.permute.xlu0 %3225
        %3228 = vset.pattern.permute.xlu0 6
        %3229 = vperm.xlu0 %3228, %v267
        %v3230 = vpop.permute.xlu0 %3229
        %3232 = vset.pattern.permute.xlu0 6
        %3233 = vperm.xlu0 %3232, %v268
        %v3234 = vpop.permute.xlu0 %3233
        %3236 = vset.pattern.permute.xlu0 6
        %3237 = vperm.xlu0 %3236, %v269
        %v3238 = vpop.permute.xlu0 %3237
        %3240 = vset.pattern.permute.xlu0 6
        %3241 = vperm.xlu0 %3240, %v270
        %v3242 = vpop.permute.xlu0 %3241
        %3244 = vset.pattern.permute.xlu0 6
        %3245 = vperm.xlu0 %3244, %v271
        %v3246 = vpop.permute.xlu0 %3245
        %3248 = vset.pattern.permute.xlu0 6
        %3249 = vperm.xlu0 %3248, %v272
        %v3250 = vpop.permute.xlu0 %3249
        %3252 = vset.pattern.permute.xlu0 6
        %3253 = vperm.xlu0 %3252, %v273
        %v3254 = vpop.permute.xlu0 %3253
        %3256 = vset.pattern.permute.xlu0 6
        %3257 = vperm.xlu0 %3256, %v274
        %v3258 = vpop.permute.xlu0 %3257
        %3260 = vset.pattern.permute.xlu0 6
        %3261 = vperm.xlu0 %3260, %v275
        %v3262 = vpop.permute.xlu0 %3261
        %3264 = vset.pattern.permute.xlu0 6
        %3265 = vperm.xlu0 %3264, %v276
        %v3266 = vpop.permute.xlu0 %3265
        %v3284 = vunpack.c.l.b16 %v3156
        %v3285 = vunpack.c.l.b16 %v3157
        %v3286 = vunpack.c.l.b16 %v3158
        %v3287 = vunpack.c.l.b16 %v3159
        %v3288 = vunpack.c.l.b16 %v3160
        %v3289 = vunpack.c.l.b16 %v3161
        %v3290 = vunpack.c.l.b16 %v3162
        %v3291 = vunpack.c.l.b16 %v3163
        %v3292 = vunpack.c.l.b16 %v3164
        %v3293 = vunpack.c.l.b16 %v3165
        %v3294 = vunpack.c.l.b16 %v3166
        %v3295 = vunpack.c.l.b16 %v3167
        %v3296 = vunpack.c.l.b16 %v3168
        %v3297 = vunpack.c.l.b16 %v3169
        %v3298 = vunpack.c.l.b16 %v3170
        %v3299 = vunpack.c.l.b16 %v3171
        %v3300 = vpack.c.b16 %v3285, %v3284
        %v3301 = vpack.c.b16 %v3287, %v3286
        %v3302 = vpack.c.b16 %v3289, %v3288
        %v3303 = vpack.c.b16 %v3291, %v3290
        %v3304 = vpack.c.b16 %v3293, %v3292
        %v3305 = vpack.c.b16 %v3295, %v3294
        %v3306 = vpack.c.b16 %v3297, %v3296
        %v3307 = vpack.c.b16 %v3299, %v3298
        %3316 = vmatpush.bf16.msra.mxu0 %v3200
        %3317 = vmatpush.bf16.msra.mxu0 %v3196
        %3318 = vmatpush.bf16.msra.mxu0 %v3192
        %3319 = vmatpush.bf16.msra.mxu0 %v3188
        %3320 = vmatpush.bf16.msra.mxu0 %v3184
        %3321 = vmatpush.bf16.msra.mxu0 %v3180
        %3322 = vmatpush.bf16.msra.mxu0 %v3176
        %3323 = vmatpush.bf16.msra.mxu0 %v3172
        %3324 = vmatmul.bf16.gmra.mxu0 %v3300
        %v3325 = vpop.f32.mrf.mxu0
        %v3326 = vadd.f32 %v3206, %v3325
        %v3327 = vpop.f32.mrf.mxu0
        %v3328 = vadd.f32 %v3210, %v3327
        %3329 = vmatmul.bf16.gmra.mxu0 %v3301
        %v3330 = vpop.f32.mrf.mxu0
        %v3331 = vadd.f32 %v3214, %v3330
        %v3332 = vpop.f32.mrf.mxu0
        %v3333 = vadd.f32 %v3218, %v3332
        %3334 = vmatmul.bf16.gmra.mxu0 %v3302
        %v3335 = vpop.f32.mrf.mxu0
        %v3336 = vadd.f32 %v3222, %v3335
        %v3337 = vpop.f32.mrf.mxu0
        %v3338 = vadd.f32 %v3226, %v3337
        %3339 = vmatmul.bf16.gmra.mxu0 %v3303
        %v3340 = vpop.f32.mrf.mxu0
        %v3341 = vadd.f32 %v3230, %v3340
        %v3342 = vpop.f32.mrf.mxu0
        %v3343 = vadd.f32 %v3234, %v3342
        %3344 = vmatmul.bf16.gmra.mxu0 %v3304
        %v3345 = vpop.f32.mrf.mxu0
        %v3346 = vadd.f32 %v3238, %v3345
        %v3347 = vpop.f32.mrf.mxu0
        %v3348 = vadd.f32 %v3242, %v3347
        %3349 = vmatmul.bf16.gmra.mxu0 %v3305
        %v3350 = vpop.f32.mrf.mxu0
        %v3351 = vadd.f32 %v3246, %v3350
        %v3352 = vpop.f32.mrf.mxu0
        %v3353 = vadd.f32 %v3250, %v3352
        %3354 = vmatmul.bf16.gmra.mxu0 %v3306
        %v3355 = vpop.f32.mrf.mxu0
        %v3356 = vadd.f32 %v3254, %v3355
        %v3357 = vpop.f32.mrf.mxu0
        %v3358 = vadd.f32 %v3258, %v3357
        %3359 = vmatmul.bf16.gmra.mxu0 %v3307
        %v3360 = vpop.f32.mrf.mxu0
        %v3361 = vadd.f32 %v3262, %v3360
        %v3362 = vpop.f32.mrf.mxu0
        %v3363 = vadd.f32 %v3266, %v3362
        %3364 = vdwg.mxu0
        %3365 = vmatpush.bf16.msra.mxu0 %v3201
        %3366 = vmatpush.bf16.msra.mxu0 %v3197
        %3367 = vmatpush.bf16.msra.mxu0 %v3193
        %3368 = vmatpush.bf16.msra.mxu0 %v3189
        %3369 = vmatpush.bf16.msra.mxu0 %v3185
        %3370 = vmatpush.bf16.msra.mxu0 %v3181
        %3371 = vmatpush.bf16.msra.mxu0 %v3177
        %3372 = vmatpush.bf16.msra.mxu0 %v3173
        %3373 = vmatmul.bf16.gmra.mxu0 %v3300
        %v3374 = vpop.f32.mrf.mxu0
        %v3375 = vadd.f32 %v3206, %v3374
        %v3376 = vpop.f32.mrf.mxu0
        %v3377 = vadd.f32 %v3210, %v3376
        %3378 = vmatmul.bf16.gmra.mxu0 %v3301
        %v3379 = vpop.f32.mrf.mxu0
        %v3380 = vadd.f32 %v3214, %v3379
        %v3381 = vpop.f32.mrf.mxu0
        %v3382 = vadd.f32 %v3218, %v3381
        %3383 = vmatmul.bf16.gmra.mxu0 %v3302
        %v3384 = vpop.f32.mrf.mxu0
        %v3385 = vadd.f32 %v3222, %v3384
        %v3386 = vpop.f32.mrf.mxu0
        %v3387 = vadd.f32 %v3226, %v3386
        %3388 = vmatmul.bf16.gmra.mxu0 %v3303
        %v3389 = vpop.f32.mrf.mxu0
        %v3390 = vadd.f32 %v3230, %v3389
        %v3391 = vpop.f32.mrf.mxu0
        %v3392 = vadd.f32 %v3234, %v3391
        %3393 = vmatmul.bf16.gmra.mxu0 %v3304
        %v3394 = vpop.f32.mrf.mxu0
        %v3395 = vadd.f32 %v3238, %v3394
        %v3396 = vpop.f32.mrf.mxu0
        %v3397 = vadd.f32 %v3242, %v3396
        %3398 = vmatmul.bf16.gmra.mxu0 %v3305
        %v3399 = vpop.f32.mrf.mxu0
        %v3400 = vadd.f32 %v3246, %v3399
        %v3401 = vpop.f32.mrf.mxu0
        %v3402 = vadd.f32 %v3250, %v3401
        %3403 = vmatmul.bf16.gmra.mxu0 %v3306
        %v3404 = vpop.f32.mrf.mxu0
        %v3405 = vadd.f32 %v3254, %v3404
        %v3406 = vpop.f32.mrf.mxu0
        %v3407 = vadd.f32 %v3258, %v3406
        %3408 = vmatmul.bf16.gmra.mxu0 %v3307
        %v3409 = vpop.f32.mrf.mxu0
        %v3410 = vadd.f32 %v3262, %v3409
        %v3411 = vpop.f32.mrf.mxu0
        %v3412 = vadd.f32 %v3266, %v3411
        %3413 = vdwg.mxu0
        %3414 = vmatpush.bf16.msra.mxu0 %v3202
        %3415 = vmatpush.bf16.msra.mxu0 %v3198
        %3416 = vmatpush.bf16.msra.mxu0 %v3194
        %3417 = vmatpush.bf16.msra.mxu0 %v3190
        %3418 = vmatpush.bf16.msra.mxu0 %v3186
        %3419 = vmatpush.bf16.msra.mxu0 %v3182
        %3420 = vmatpush.bf16.msra.mxu0 %v3178
        %3421 = vmatpush.bf16.msra.mxu0 %v3174
        %3422 = vmatmul.bf16.gmra.mxu0 %v3300
        %v3423 = vpop.f32.mrf.mxu0
        %v3424 = vadd.f32 %v3206, %v3423
        %v3425 = vpop.f32.mrf.mxu0
        %v3426 = vadd.f32 %v3210, %v3425
        %3427 = vmatmul.bf16.gmra.mxu0 %v3301
        %v3428 = vpop.f32.mrf.mxu0
        %v3429 = vadd.f32 %v3214, %v3428
        %v3430 = vpop.f32.mrf.mxu0
        %v3431 = vadd.f32 %v3218, %v3430
        %3432 = vmatmul.bf16.gmra.mxu0 %v3302
        %v3433 = vpop.f32.mrf.mxu0
        %v3434 = vadd.f32 %v3222, %v3433
        %v3435 = vpop.f32.mrf.mxu0
        %v3436 = vadd.f32 %v3226, %v3435
        %3437 = vmatmul.bf16.gmra.mxu0 %v3303
        %v3438 = vpop.f32.mrf.mxu0
        %v3439 = vadd.f32 %v3230, %v3438
        %v3440 = vpop.f32.mrf.mxu0
        %v3441 = vadd.f32 %v3234, %v3440
        %3442 = vmatmul.bf16.gmra.mxu0 %v3304
        %v3443 = vpop.f32.mrf.mxu0
        %v3444 = vadd.f32 %v3238, %v3443
        %v3445 = vpop.f32.mrf.mxu0
        %v3446 = vadd.f32 %v3242, %v3445
        %3447 = vmatmul.bf16.gmra.mxu0 %v3305
        %v3448 = vpop.f32.mrf.mxu0
        %v3449 = vadd.f32 %v3246, %v3448
        %v3450 = vpop.f32.mrf.mxu0
        %v3451 = vadd.f32 %v3250, %v3450
        %3452 = vmatmul.bf16.gmra.mxu0 %v3306
        %v3453 = vpop.f32.mrf.mxu0
        %v3454 = vadd.f32 %v3254, %v3453
        %v3455 = vpop.f32.mrf.mxu0
        %v3456 = vadd.f32 %v3258, %v3455
        %3457 = vmatmul.bf16.gmra.mxu0 %v3307
        %v3458 = vpop.f32.mrf.mxu0
        %v3459 = vadd.f32 %v3262, %v3458
        %v3460 = vpop.f32.mrf.mxu0
        %v3461 = vadd.f32 %v3266, %v3460
        %3462 = vdwg.mxu0
        %3463 = vmatpush.bf16.msra.mxu0 %v3203
        %3464 = vmatpush.bf16.msra.mxu0 %v3199
        %3465 = vmatpush.bf16.msra.mxu0 %v3195
        %3466 = vmatpush.bf16.msra.mxu0 %v3191
        %3467 = vmatpush.bf16.msra.mxu0 %v3187
        %3468 = vmatpush.bf16.msra.mxu0 %v3183
        %3469 = vmatpush.bf16.msra.mxu0 %v3179
        %3470 = vmatpush.bf16.msra.mxu0 %v3175
        %3471 = vmatmul.bf16.gmra.mxu0 %v3300
        %v3472 = vpop.f32.mrf.mxu0
        %v3473 = vadd.f32 %v3206, %v3472
        %v3474 = vpop.f32.mrf.mxu0
        %v3475 = vadd.f32 %v3210, %v3474
        %3476 = vmatmul.bf16.gmra.mxu0 %v3301
        %v3477 = vpop.f32.mrf.mxu0
        %v3478 = vadd.f32 %v3214, %v3477
        %v3479 = vpop.f32.mrf.mxu0
        %v3480 = vadd.f32 %v3218, %v3479
        %3481 = vmatmul.bf16.gmra.mxu0 %v3302
        %v3482 = vpop.f32.mrf.mxu0
        %v3483 = vadd.f32 %v3222, %v3482
        %v3484 = vpop.f32.mrf.mxu0
        %v3485 = vadd.f32 %v3226, %v3484
        %3486 = vmatmul.bf16.gmra.mxu0 %v3303
        %v3487 = vpop.f32.mrf.mxu0
        %v3488 = vadd.f32 %v3230, %v3487
        %v3489 = vpop.f32.mrf.mxu0
        %v3490 = vadd.f32 %v3234, %v3489
        %3491 = vmatmul.bf16.gmra.mxu0 %v3304
        %v3492 = vpop.f32.mrf.mxu0
        %v3493 = vadd.f32 %v3238, %v3492
        %v3494 = vpop.f32.mrf.mxu0
        %v3495 = vadd.f32 %v3242, %v3494
        %3496 = vmatmul.bf16.gmra.mxu0 %v3305
        %v3497 = vpop.f32.mrf.mxu0
        %v3498 = vadd.f32 %v3246, %v3497
        %v3499 = vpop.f32.mrf.mxu0
        %v3500 = vadd.f32 %v3250, %v3499
        %3501 = vmatmul.bf16.gmra.mxu0 %v3306
        %v3502 = vpop.f32.mrf.mxu0
        %v3503 = vadd.f32 %v3254, %v3502
        %v3504 = vpop.f32.mrf.mxu0
        %v3505 = vadd.f32 %v3258, %v3504
        %3506 = vmatmul.bf16.gmra.mxu0 %v3307
        %v3507 = vpop.f32.mrf.mxu0
        %v3508 = vadd.f32 %v3262, %v3507
        %v3509 = vpop.f32.mrf.mxu0
        %v3510 = vadd.f32 %v3266, %v3509
        %3511 = vdwg.mxu0
        %v3512 = vmax.f32 %v3326, 0.0
        %v3513 = vmax.f32 %v3375, 0.0
        %v3514 = vmax.f32 %v3424, 0.0
        %v3515 = vmax.f32 %v3473, 0.0
        %v3516 = vmax.f32 %v3328, 0.0
        %v3517 = vmax.f32 %v3377, 0.0
        %v3518 = vmax.f32 %v3426, 0.0
        %v3519 = vmax.f32 %v3475, 0.0
        %v3520 = vmax.f32 %v3331, 0.0
        %v3521 = vmax.f32 %v3380, 0.0
        %v3522 = vmax.f32 %v3429, 0.0
        %v3523 = vmax.f32 %v3478, 0.0
        %v3524 = vmax.f32 %v3333, 0.0
        %v3525 = vmax.f32 %v3382, 0.0
        %v3526 = vmax.f32 %v3431, 0.0
        %v3527 = vmax.f32 %v3480, 0.0
        %v3528 = vmax.f32 %v3336, 0.0
        %v3529 = vmax.f32 %v3385, 0.0
        %v3530 = vmax.f32 %v3434, 0.0
        %v3531 = vmax.f32 %v3483, 0.0
        %v3532 = vmax.f32 %v3338, 0.0
        %v3533 = vmax.f32 %v3387, 0.0
        %v3534 = vmax.f32 %v3436, 0.0
        %v3535 = vmax.f32 %v3485, 0.0
        %v3536 = vmax.f32 %v3341, 0.0
        %v3537 = vmax.f32 %v3390, 0.0
        %v3538 = vmax.f32 %v3439, 0.0
        %v3539 = vmax.f32 %v3488, 0.0
        %v3540 = vmax.f32 %v3343, 0.0
        %v3541 = vmax.f32 %v3392, 0.0
        %v3542 = vmax.f32 %v3441, 0.0
        %v3543 = vmax.f32 %v3490, 0.0
        %v3544 = vmax.f32 %v3346, 0.0
        %v3545 = vmax.f32 %v3395, 0.0
        %v3546 = vmax.f32 %v3444, 0.0
        %v3547 = vmax.f32 %v3493, 0.0
        %v3548 = vmax.f32 %v3348, 0.0
        %v3549 = vmax.f32 %v3397, 0.0
        %v3550 = vmax.f32 %v3446, 0.0
        %v3551 = vmax.f32 %v3495, 0.0
        %v3552 = vmax.f32 %v3351, 0.0
        %v3553 = vmax.f32 %v3400, 0.0
        %v3554 = vmax.f32 %v3449, 0.0
        %v3555 = vmax.f32 %v3498, 0.0
        %v3556 = vmax.f32 %v3353, 0.0
        %v3557 = vmax.f32 %v3402, 0.0
        %v3558 = vmax.f32 %v3451, 0.0
        %v3559 = vmax.f32 %v3500, 0.0
        %v3560 = vmax.f32 %v3356, 0.0
        %v3561 = vmax.f32 %v3405, 0.0
        %v3562 = vmax.f32 %v3454, 0.0
        %v3563 = vmax.f32 %v3503, 0.0
        %v3564 = vmax.f32 %v3358, 0.0
        %v3565 = vmax.f32 %v3407, 0.0
        %v3566 = vmax.f32 %v3456, 0.0
        %v3567 = vmax.f32 %v3505, 0.0
        %v3568 = vmax.f32 %v3361, 0.0
        %v3569 = vmax.f32 %v3410, 0.0
        %v3570 = vmax.f32 %v3459, 0.0
        %v3571 = vmax.f32 %v3508, 0.0
        %v3572 = vmax.f32 %v3363, 0.0
        %v3573 = vmax.f32 %v3412, 0.0
        %v3574 = vmax.f32 %v3461, 0.0
        %v3575 = vmax.f32 %v3510, 0.0
        %s3576 = scalar_lea.vmem [#allocation2], 384
        %v3577 = vld [vmem:[%s3576] sm:$0xf]
        %v3578 = vld [vmem:[%s3576 + $0x4] sm:$0xf]
        %v3579 = vld [vmem:[%s3576 + $0x8] sm:$0xf]
        %v3580 = vld [vmem:[%s3576 + $0xc] sm:$0xf]
        %v3581 = vld [vmem:[%s3576 + $0x10] sm:$0xf]
        %v3582 = vld [vmem:[%s3576 + $0x14] sm:$0xf]
        %v3583 = vld [vmem:[%s3576 + $0x18] sm:$0xf]
        %v3584 = vld [vmem:[%s3576 + $0x1c] sm:$0xf]
        %v3585 = vld [vmem:[%s3576 + $0x20] sm:$0xf]
        %v3586 = vld [vmem:[%s3576 + $0x24] sm:$0xf]
        %v3587 = vld [vmem:[%s3576 + $0x28] sm:$0xf]
        %v3588 = vld [vmem:[%s3576 + $0x2c] sm:$0xf]
        %v3589 = vld [vmem:[%s3576 + $0x30] sm:$0xf]
        %v3590 = vld [vmem:[%s3576 + $0x34] sm:$0xf]
        %v3591 = vld [vmem:[%s3576 + $0x38] sm:$0xf]
        %v3592 = vld [vmem:[%s3576 + $0x3c] sm:$0xf]
        %v3593 = vpack.c.bf16 %v3516, %v3512
        %v3594 = vpack.c.bf16 %v3517, %v3513
        %v3595 = vpack.c.bf16 %v3518, %v3514
        %v3596 = vpack.c.bf16 %v3519, %v3515
        %v3597 = vpack.c.bf16 %v3524, %v3520
        %v3598 = vpack.c.bf16 %v3525, %v3521
        %v3599 = vpack.c.bf16 %v3526, %v3522
        %v3600 = vpack.c.bf16 %v3527, %v3523
        %v3601 = vpack.c.bf16 %v3532, %v3528
        %v3602 = vpack.c.bf16 %v3533, %v3529
        %v3603 = vpack.c.bf16 %v3534, %v3530
        %v3604 = vpack.c.bf16 %v3535, %v3531
        %v3605 = vpack.c.bf16 %v3540, %v3536
        %v3606 = vpack.c.bf16 %v3541, %v3537
        %v3607 = vpack.c.bf16 %v3542, %v3538
        %v3608 = vpack.c.bf16 %v3543, %v3539
        %v3609 = vpack.c.bf16 %v3548, %v3544
        %v3610 = vpack.c.bf16 %v3549, %v3545
        %v3611 = vpack.c.bf16 %v3550, %v3546
        %v3612 = vpack.c.bf16 %v3551, %v3547
        %v3613 = vpack.c.bf16 %v3556, %v3552
        %v3614 = vpack.c.bf16 %v3557, %v3553
        %v3615 = vpack.c.bf16 %v3558, %v3554
        %v3616 = vpack.c.bf16 %v3559, %v3555
        %v3617 = vpack.c.bf16 %v3564, %v3560
        %v3618 = vpack.c.bf16 %v3565, %v3561
        %v3619 = vpack.c.bf16 %v3566, %v3562
        %v3620 = vpack.c.bf16 %v3567, %v3563
        %v3621 = vpack.c.bf16 %v3572, %v3568
        %v3622 = vpack.c.bf16 %v3573, %v3569
        %v3623 = vpack.c.bf16 %v3574, %v3570
        %v3624 = vpack.c.bf16 %v3575, %v3571
        %3625 = vset.pattern.permute.xlu0 7
        %3626 = vperm.xlu0 %3625, %v261
        %v3627 = vpop.permute.xlu0 %3626
        %3629 = vset.pattern.permute.xlu0 7
        %3630 = vperm.xlu0 %3629, %v262
        %v3631 = vpop.permute.xlu0 %3630
        %3633 = vset.pattern.permute.xlu0 7
        %3634 = vperm.xlu0 %3633, %v263
        %v3635 = vpop.permute.xlu0 %3634
        %3637 = vset.pattern.permute.xlu0 7
        %3638 = vperm.xlu0 %3637, %v264
        %v3639 = vpop.permute.xlu0 %3638
        %3641 = vset.pattern.permute.xlu0 7
        %3642 = vperm.xlu0 %3641, %v265
        %v3643 = vpop.permute.xlu0 %3642
        %3645 = vset.pattern.permute.xlu0 7
        %3646 = vperm.xlu0 %3645, %v266
        %v3647 = vpop.permute.xlu0 %3646
        %3649 = vset.pattern.permute.xlu0 7
        %3650 = vperm.xlu0 %3649, %v267
        %v3651 = vpop.permute.xlu0 %3650
        %3653 = vset.pattern.permute.xlu0 7
        %3654 = vperm.xlu0 %3653, %v268
        %v3655 = vpop.permute.xlu0 %3654
        %3657 = vset.pattern.permute.xlu0 7
        %3658 = vperm.xlu0 %3657, %v269
        %v3659 = vpop.permute.xlu0 %3658
        %3661 = vset.pattern.permute.xlu0 7
        %3662 = vperm.xlu0 %3661, %v270
        %v3663 = vpop.permute.xlu0 %3662
        %3665 = vset.pattern.permute.xlu0 7
        %3666 = vperm.xlu0 %3665, %v271
        %v3667 = vpop.permute.xlu0 %3666
        %3669 = vset.pattern.permute.xlu0 7
        %3670 = vperm.xlu0 %3669, %v272
        %v3671 = vpop.permute.xlu0 %3670
        %3673 = vset.pattern.permute.xlu0 7
        %3674 = vperm.xlu0 %3673, %v273
        %v3675 = vpop.permute.xlu0 %3674
        %3677 = vset.pattern.permute.xlu0 7
        %3678 = vperm.xlu0 %3677, %v274
        %v3679 = vpop.permute.xlu0 %3678
        %3681 = vset.pattern.permute.xlu0 7
        %3682 = vperm.xlu0 %3681, %v275
        %v3683 = vpop.permute.xlu0 %3682
        %3685 = vset.pattern.permute.xlu0 7
        %3686 = vperm.xlu0 %3685, %v276
        %v3687 = vpop.permute.xlu0 %3686
        %v3705 = vunpack.c.l.b16 %v3577
        %v3706 = vunpack.c.l.b16 %v3578
        %v3707 = vunpack.c.l.b16 %v3579
        %v3708 = vunpack.c.l.b16 %v3580
        %v3709 = vunpack.c.l.b16 %v3581
        %v3710 = vunpack.c.l.b16 %v3582
        %v3711 = vunpack.c.l.b16 %v3583
        %v3712 = vunpack.c.l.b16 %v3584
        %v3713 = vunpack.c.l.b16 %v3585
        %v3714 = vunpack.c.l.b16 %v3586
        %v3715 = vunpack.c.l.b16 %v3587
        %v3716 = vunpack.c.l.b16 %v3588
        %v3717 = vunpack.c.l.b16 %v3589
        %v3718 = vunpack.c.l.b16 %v3590
        %v3719 = vunpack.c.l.b16 %v3591
        %v3720 = vunpack.c.l.b16 %v3592
        %v3721 = vpack.c.b16 %v3706, %v3705
        %v3722 = vpack.c.b16 %v3708, %v3707
        %v3723 = vpack.c.b16 %v3710, %v3709
        %v3724 = vpack.c.b16 %v3712, %v3711
        %v3725 = vpack.c.b16 %v3714, %v3713
        %v3726 = vpack.c.b16 %v3716, %v3715
        %v3727 = vpack.c.b16 %v3718, %v3717
        %v3728 = vpack.c.b16 %v3720, %v3719
        %3737 = vmatpush.bf16.msra.mxu0 %v3621
        %3738 = vmatpush.bf16.msra.mxu0 %v3617
        %3739 = vmatpush.bf16.msra.mxu0 %v3613
        %3740 = vmatpush.bf16.msra.mxu0 %v3609
        %3741 = vmatpush.bf16.msra.mxu0 %v3605
        %3742 = vmatpush.bf16.msra.mxu0 %v3601
        %3743 = vmatpush.bf16.msra.mxu0 %v3597
        %3744 = vmatpush.bf16.msra.mxu0 %v3593
        %3745 = vmatmul.bf16.gmra.mxu0 %v3721
        %v3746 = vpop.f32.mrf.mxu0
        %v3747 = vadd.f32 %v3627, %v3746
        %v3748 = vpop.f32.mrf.mxu0
        %v3749 = vadd.f32 %v3631, %v3748
        %3750 = vmatmul.bf16.gmra.mxu0 %v3722
        %v3751 = vpop.f32.mrf.mxu0
        %v3752 = vadd.f32 %v3635, %v3751
        %v3753 = vpop.f32.mrf.mxu0
        %v3754 = vadd.f32 %v3639, %v3753
        %3755 = vmatmul.bf16.gmra.mxu0 %v3723
        %v3756 = vpop.f32.mrf.mxu0
        %v3757 = vadd.f32 %v3643, %v3756
        %v3758 = vpop.f32.mrf.mxu0
        %v3759 = vadd.f32 %v3647, %v3758
        %3760 = vmatmul.bf16.gmra.mxu0 %v3724
        %v3761 = vpop.f32.mrf.mxu0
        %v3762 = vadd.f32 %v3651, %v3761
        %v3763 = vpop.f32.mrf.mxu0
        %v3764 = vadd.f32 %v3655, %v3763
        %3765 = vmatmul.bf16.gmra.mxu0 %v3725
        %v3766 = vpop.f32.mrf.mxu0
        %v3767 = vadd.f32 %v3659, %v3766
        %v3768 = vpop.f32.mrf.mxu0
        %v3769 = vadd.f32 %v3663, %v3768
        %3770 = vmatmul.bf16.gmra.mxu0 %v3726
        %v3771 = vpop.f32.mrf.mxu0
        %v3772 = vadd.f32 %v3667, %v3771
        %v3773 = vpop.f32.mrf.mxu0
        %v3774 = vadd.f32 %v3671, %v3773
        %3775 = vmatmul.bf16.gmra.mxu0 %v3727
        %v3776 = vpop.f32.mrf.mxu0
        %v3777 = vadd.f32 %v3675, %v3776
        %v3778 = vpop.f32.mrf.mxu0
        %v3779 = vadd.f32 %v3679, %v3778
        %3780 = vmatmul.bf16.gmra.mxu0 %v3728
        %v3781 = vpop.f32.mrf.mxu0
        %v3782 = vadd.f32 %v3683, %v3781
        %v3783 = vpop.f32.mrf.mxu0
        %v3784 = vadd.f32 %v3687, %v3783
        %3785 = vdwg.mxu0
        %3786 = vmatpush.bf16.msra.mxu0 %v3622
        %3787 = vmatpush.bf16.msra.mxu0 %v3618
        %3788 = vmatpush.bf16.msra.mxu0 %v3614
        %3789 = vmatpush.bf16.msra.mxu0 %v3610
        %3790 = vmatpush.bf16.msra.mxu0 %v3606
        %3791 = vmatpush.bf16.msra.mxu0 %v3602
        %3792 = vmatpush.bf16.msra.mxu0 %v3598
        %3793 = vmatpush.bf16.msra.mxu0 %v3594
        %3794 = vmatmul.bf16.gmra.mxu0 %v3721
        %v3795 = vpop.f32.mrf.mxu0
        %v3796 = vadd.f32 %v3627, %v3795
        %v3797 = vpop.f32.mrf.mxu0
        %v3798 = vadd.f32 %v3631, %v3797
        %3799 = vmatmul.bf16.gmra.mxu0 %v3722
        %v3800 = vpop.f32.mrf.mxu0
        %v3801 = vadd.f32 %v3635, %v3800
        %v3802 = vpop.f32.mrf.mxu0
        %v3803 = vadd.f32 %v3639, %v3802
        %3804 = vmatmul.bf16.gmra.mxu0 %v3723
        %v3805 = vpop.f32.mrf.mxu0
        %v3806 = vadd.f32 %v3643, %v3805
        %v3807 = vpop.f32.mrf.mxu0
        %v3808 = vadd.f32 %v3647, %v3807
        %3809 = vmatmul.bf16.gmra.mxu0 %v3724
        %v3810 = vpop.f32.mrf.mxu0
        %v3811 = vadd.f32 %v3651, %v3810
        %v3812 = vpop.f32.mrf.mxu0
        %v3813 = vadd.f32 %v3655, %v3812
        %3814 = vmatmul.bf16.gmra.mxu0 %v3725
        %v3815 = vpop.f32.mrf.mxu0
        %v3816 = vadd.f32 %v3659, %v3815
        %v3817 = vpop.f32.mrf.mxu0
        %v3818 = vadd.f32 %v3663, %v3817
        %3819 = vmatmul.bf16.gmra.mxu0 %v3726
        %v3820 = vpop.f32.mrf.mxu0
        %v3821 = vadd.f32 %v3667, %v3820
        %v3822 = vpop.f32.mrf.mxu0
        %v3823 = vadd.f32 %v3671, %v3822
        %3824 = vmatmul.bf16.gmra.mxu0 %v3727
        %v3825 = vpop.f32.mrf.mxu0
        %v3826 = vadd.f32 %v3675, %v3825
        %v3827 = vpop.f32.mrf.mxu0
        %v3828 = vadd.f32 %v3679, %v3827
        %3829 = vmatmul.bf16.gmra.mxu0 %v3728
        %v3830 = vpop.f32.mrf.mxu0
        %v3831 = vadd.f32 %v3683, %v3830
        %v3832 = vpop.f32.mrf.mxu0
        %v3833 = vadd.f32 %v3687, %v3832
        %3834 = vdwg.mxu0
        %3835 = vmatpush.bf16.msra.mxu0 %v3623
        %3836 = vmatpush.bf16.msra.mxu0 %v3619
        %3837 = vmatpush.bf16.msra.mxu0 %v3615
        %3838 = vmatpush.bf16.msra.mxu0 %v3611
        %3839 = vmatpush.bf16.msra.mxu0 %v3607
        %3840 = vmatpush.bf16.msra.mxu0 %v3603
        %3841 = vmatpush.bf16.msra.mxu0 %v3599
        %3842 = vmatpush.bf16.msra.mxu0 %v3595
        %3843 = vmatmul.bf16.gmra.mxu0 %v3721
        %v3844 = vpop.f32.mrf.mxu0
        %v3845 = vadd.f32 %v3627, %v3844
        %v3846 = vpop.f32.mrf.mxu0
        %v3847 = vadd.f32 %v3631, %v3846
        %3848 = vmatmul.bf16.gmra.mxu0 %v3722
        %v3849 = vpop.f32.mrf.mxu0
        %v3850 = vadd.f32 %v3635, %v3849
        %v3851 = vpop.f32.mrf.mxu0
        %v3852 = vadd.f32 %v3639, %v3851
        %3853 = vmatmul.bf16.gmra.mxu0 %v3723
        %v3854 = vpop.f32.mrf.mxu0
        %v3855 = vadd.f32 %v3643, %v3854
        %v3856 = vpop.f32.mrf.mxu0
        %v3857 = vadd.f32 %v3647, %v3856
        %3858 = vmatmul.bf16.gmra.mxu0 %v3724
        %v3859 = vpop.f32.mrf.mxu0
        %v3860 = vadd.f32 %v3651, %v3859
        %v3861 = vpop.f32.mrf.mxu0
        %v3862 = vadd.f32 %v3655, %v3861
        %3863 = vmatmul.bf16.gmra.mxu0 %v3725
        %v3864 = vpop.f32.mrf.mxu0
        %v3865 = vadd.f32 %v3659, %v3864
        %v3866 = vpop.f32.mrf.mxu0
        %v3867 = vadd.f32 %v3663, %v3866
        %3868 = vmatmul.bf16.gmra.mxu0 %v3726
        %v3869 = vpop.f32.mrf.mxu0
        %v3870 = vadd.f32 %v3667, %v3869
        %v3871 = vpop.f32.mrf.mxu0
        %v3872 = vadd.f32 %v3671, %v3871
        %3873 = vmatmul.bf16.gmra.mxu0 %v3727
        %v3874 = vpop.f32.mrf.mxu0
        %v3875 = vadd.f32 %v3675, %v3874
        %v3876 = vpop.f32.mrf.mxu0
        %v3877 = vadd.f32 %v3679, %v3876
        %3878 = vmatmul.bf16.gmra.mxu0 %v3728
        %v3879 = vpop.f32.mrf.mxu0
        %v3880 = vadd.f32 %v3683, %v3879
        %v3881 = vpop.f32.mrf.mxu0
        %v3882 = vadd.f32 %v3687, %v3881
        %3883 = vdwg.mxu0
        %3884 = vmatpush.bf16.msra.mxu0 %v3624
        %3885 = vmatpush.bf16.msra.mxu0 %v3620
        %3886 = vmatpush.bf16.msra.mxu0 %v3616
        %3887 = vmatpush.bf16.msra.mxu0 %v3612
        %3888 = vmatpush.bf16.msra.mxu0 %v3608
        %3889 = vmatpush.bf16.msra.mxu0 %v3604
        %3890 = vmatpush.bf16.msra.mxu0 %v3600
        %3891 = vmatpush.bf16.msra.mxu0 %v3596
        %3892 = vmatmul.bf16.gmra.mxu0 %v3721
        %v3893 = vpop.f32.mrf.mxu0
        %v3894 = vadd.f32 %v3627, %v3893
        %v3895 = vpop.f32.mrf.mxu0
        %v3896 = vadd.f32 %v3631, %v3895
        %3897 = vmatmul.bf16.gmra.mxu0 %v3722
        %v3898 = vpop.f32.mrf.mxu0
        %v3899 = vadd.f32 %v3635, %v3898
        %v3900 = vpop.f32.mrf.mxu0
        %v3901 = vadd.f32 %v3639, %v3900
        %3902 = vmatmul.bf16.gmra.mxu0 %v3723
        %v3903 = vpop.f32.mrf.mxu0
        %v3904 = vadd.f32 %v3643, %v3903
        %v3905 = vpop.f32.mrf.mxu0
        %v3906 = vadd.f32 %v3647, %v3905
        %3907 = vmatmul.bf16.gmra.mxu0 %v3724
        %v3908 = vpop.f32.mrf.mxu0
        %v3909 = vadd.f32 %v3651, %v3908
        %v3910 = vpop.f32.mrf.mxu0
        %v3911 = vadd.f32 %v3655, %v3910
        %3912 = vmatmul.bf16.gmra.mxu0 %v3725
        %v3913 = vpop.f32.mrf.mxu0
        %v3914 = vadd.f32 %v3659, %v3913
        %v3915 = vpop.f32.mrf.mxu0
        %v3916 = vadd.f32 %v3663, %v3915
        %3917 = vmatmul.bf16.gmra.mxu0 %v3726
        %v3918 = vpop.f32.mrf.mxu0
        %v3919 = vadd.f32 %v3667, %v3918
        %v3920 = vpop.f32.mrf.mxu0
        %v3921 = vadd.f32 %v3671, %v3920
        %3922 = vmatmul.bf16.gmra.mxu0 %v3727
        %v3923 = vpop.f32.mrf.mxu0
        %v3924 = vadd.f32 %v3675, %v3923
        %v3925 = vpop.f32.mrf.mxu0
        %v3926 = vadd.f32 %v3679, %v3925
        %3927 = vmatmul.bf16.gmra.mxu0 %v3728
        %v3928 = vpop.f32.mrf.mxu0
        %v3929 = vadd.f32 %v3683, %v3928
        %v3930 = vpop.f32.mrf.mxu0
        %v3931 = vadd.f32 %v3687, %v3930
        %3932 = vdwg.mxu0
        %v3933 = vmax.f32 %v3747, 0.0
        %v3934 = vmax.f32 %v3796, 0.0
        %v3935 = vmax.f32 %v3845, 0.0
        %v3936 = vmax.f32 %v3894, 0.0
        %v3937 = vmax.f32 %v3749, 0.0
        %v3938 = vmax.f32 %v3798, 0.0
        %v3939 = vmax.f32 %v3847, 0.0
        %v3940 = vmax.f32 %v3896, 0.0
        %v3941 = vmax.f32 %v3752, 0.0
        %v3942 = vmax.f32 %v3801, 0.0
        %v3943 = vmax.f32 %v3850, 0.0
        %v3944 = vmax.f32 %v3899, 0.0
        %v3945 = vmax.f32 %v3754, 0.0
        %v3946 = vmax.f32 %v3803, 0.0
        %v3947 = vmax.f32 %v3852, 0.0
        %v3948 = vmax.f32 %v3901, 0.0
        %v3949 = vmax.f32 %v3757, 0.0
        %v3950 = vmax.f32 %v3806, 0.0
        %v3951 = vmax.f32 %v3855, 0.0
        %v3952 = vmax.f32 %v3904, 0.0
        %v3953 = vmax.f32 %v3759, 0.0
        %v3954 = vmax.f32 %v3808, 0.0
        %v3955 = vmax.f32 %v3857, 0.0
        %v3956 = vmax.f32 %v3906, 0.0
        %v3957 = vmax.f32 %v3762, 0.0
        %v3958 = vmax.f32 %v3811, 0.0
        %v3959 = vmax.f32 %v3860, 0.0
        %v3960 = vmax.f32 %v3909, 0.0
        %v3961 = vmax.f32 %v3764, 0.0
        %v3962 = vmax.f32 %v3813, 0.0
        %v3963 = vmax.f32 %v3862, 0.0
        %v3964 = vmax.f32 %v3911, 0.0
        %v3965 = vmax.f32 %v3767, 0.0
        %v3966 = vmax.f32 %v3816, 0.0
        %v3967 = vmax.f32 %v3865, 0.0
        %v3968 = vmax.f32 %v3914, 0.0
        %v3969 = vmax.f32 %v3769, 0.0
        %v3970 = vmax.f32 %v3818, 0.0
        %v3971 = vmax.f32 %v3867, 0.0
        %v3972 = vmax.f32 %v3916, 0.0
        %v3973 = vmax.f32 %v3772, 0.0
        %v3974 = vmax.f32 %v3821, 0.0
        %v3975 = vmax.f32 %v3870, 0.0
        %v3976 = vmax.f32 %v3919, 0.0
        %v3977 = vmax.f32 %v3774, 0.0
        %v3978 = vmax.f32 %v3823, 0.0
        %v3979 = vmax.f32 %v3872, 0.0
        %v3980 = vmax.f32 %v3921, 0.0
        %v3981 = vmax.f32 %v3777, 0.0
        %v3982 = vmax.f32 %v3826, 0.0
        %v3983 = vmax.f32 %v3875, 0.0
        %v3984 = vmax.f32 %v3924, 0.0
        %v3985 = vmax.f32 %v3779, 0.0
        %v3986 = vmax.f32 %v3828, 0.0
        %v3987 = vmax.f32 %v3877, 0.0
        %v3988 = vmax.f32 %v3926, 0.0
        %v3989 = vmax.f32 %v3782, 0.0
        %v3990 = vmax.f32 %v3831, 0.0
        %v3991 = vmax.f32 %v3880, 0.0
        %v3992 = vmax.f32 %v3929, 0.0
        %v3993 = vmax.f32 %v3784, 0.0
        %v3994 = vmax.f32 %v3833, 0.0
        %v3995 = vmax.f32 %v3882, 0.0
        %v3996 = vmax.f32 %v3931, 0.0
        %v3997 = vld [vmem:[%s3] sm:$0xf]
        %v3998 = vpack.c.bf16 %v3937, %v3933
        %v3999 = vpack.c.bf16 %v3938, %v3934
        %v4000 = vpack.c.bf16 %v3939, %v3935
        %v4001 = vpack.c.bf16 %v3940, %v3936
        %v4002 = vpack.c.bf16 %v3945, %v3941
        %v4003 = vpack.c.bf16 %v3946, %v3942
        %v4004 = vpack.c.bf16 %v3947, %v3943
        %v4005 = vpack.c.bf16 %v3948, %v3944
        %v4006 = vpack.c.bf16 %v3953, %v3949
        %v4007 = vpack.c.bf16 %v3954, %v3950
        %v4008 = vpack.c.bf16 %v3955, %v3951
        %v4009 = vpack.c.bf16 %v3956, %v3952
        %v4010 = vpack.c.bf16 %v3961, %v3957
        %v4011 = vpack.c.bf16 %v3962, %v3958
        %v4012 = vpack.c.bf16 %v3963, %v3959
        %v4013 = vpack.c.bf16 %v3964, %v3960
        %v4014 = vpack.c.bf16 %v3969, %v3965
        %v4015 = vpack.c.bf16 %v3970, %v3966
        %v4016 = vpack.c.bf16 %v3971, %v3967
        %v4017 = vpack.c.bf16 %v3972, %v3968
        %v4018 = vpack.c.bf16 %v3977, %v3973
        %v4019 = vpack.c.bf16 %v3978, %v3974
        %v4020 = vpack.c.bf16 %v3979, %v3975
        %v4021 = vpack.c.bf16 %v3980, %v3976
        %v4022 = vpack.c.bf16 %v3985, %v3981
        %v4023 = vpack.c.bf16 %v3986, %v3982
        %v4024 = vpack.c.bf16 %v3987, %v3983
        %v4025 = vpack.c.bf16 %v3988, %v3984
        %v4026 = vpack.c.bf16 %v3993, %v3989
        %v4027 = vpack.c.bf16 %v3994, %v3990
        %v4028 = vpack.c.bf16 %v3995, %v3991
        %v4029 = vpack.c.bf16 %v3996, %v3992
        %v4030 = vld [vmem:[%s4] sm:$0xff]
        %4032 = vset.pattern.permute.xlu0 8
        %4033 = vperm.xlu0 %4032, %v4030
        %v4034 = vpop.permute.xlu0 %4033
        %4036 = vmatpush.bf16.msra.mxu0 %v4026
        %4037 = vmatpush.bf16.msra.mxu0 %v4022
        %4038 = vmatpush.bf16.msra.mxu0 %v4018
        %4039 = vmatpush.bf16.msra.mxu0 %v4014
        %4040 = vmatpush.bf16.msra.mxu0 %v4010
        %4041 = vmatpush.bf16.msra.mxu0 %v4006
        %4042 = vmatpush.bf16.msra.mxu0 %v4002
        %4043 = vmatpush.bf16.msra.mxu0 %v3998
        %4044 = vmatmul.bf16.gmra.mxu0 %v3997
        %v4045 = vpop.f32.mrf.mxu0
        %v4046 = vadd.f32 %v4034, %v4045
        %v4047 = vpop.f32.mrf.mxu0
        %4048 = vdwg.mxu0
        %4049 = vmatpush.bf16.msra.mxu0 %v4027
        %4050 = vmatpush.bf16.msra.mxu0 %v4023
        %4051 = vmatpush.bf16.msra.mxu0 %v4019
        %4052 = vmatpush.bf16.msra.mxu0 %v4015
        %4053 = vmatpush.bf16.msra.mxu0 %v4011
        %4054 = vmatpush.bf16.msra.mxu0 %v4007
        %4055 = vmatpush.bf16.msra.mxu0 %v4003
        %4056 = vmatpush.bf16.msra.mxu0 %v3999
        %4057 = vmatmul.bf16.gmra.mxu0 %v3997
        %v4058 = vpop.f32.mrf.mxu0
        %v4059 = vadd.f32 %v4034, %v4058
        %v4060 = vpop.f32.mrf.mxu0
        %4061 = vdwg.mxu0
        %4062 = vmatpush.bf16.msra.mxu0 %v4028
        %4063 = vmatpush.bf16.msra.mxu0 %v4024
        %4064 = vmatpush.bf16.msra.mxu0 %v4020
        %4065 = vmatpush.bf16.msra.mxu0 %v4016
        %4066 = vmatpush.bf16.msra.mxu0 %v4012
        %4067 = vmatpush.bf16.msra.mxu0 %v4008
        %4068 = vmatpush.bf16.msra.mxu0 %v4004
        %4069 = vmatpush.bf16.msra.mxu0 %v4000
        %4070 = vmatmul.bf16.gmra.mxu0 %v3997
        %v4071 = vpop.f32.mrf.mxu0
        %v4072 = vadd.f32 %v4034, %v4071
        %v4073 = vpop.f32.mrf.mxu0
        %4074 = vdwg.mxu0
        %4075 = vmatpush.bf16.msra.mxu0 %v4029
        %4076 = vmatpush.bf16.msra.mxu0 %v4025
        %4077 = vmatpush.bf16.msra.mxu0 %v4021
        %4078 = vmatpush.bf16.msra.mxu0 %v4017
        %4079 = vmatpush.bf16.msra.mxu0 %v4013
        %4080 = vmatpush.bf16.msra.mxu0 %v4009
        %4081 = vmatpush.bf16.msra.mxu0 %v4005
        %4082 = vmatpush.bf16.msra.mxu0 %v4001
        %4083 = vmatmul.bf16.gmra.mxu0 %v3997
        %v4084 = vpop.f32.mrf.mxu0
        %v4085 = vadd.f32 %v4034, %v4084
        %v4086 = vpop.f32.mrf.mxu0
        %4087 = vdwg.mxu0
        %v4092 = vrot.slane %v4059, 4
        %v4093 = vrot.slane %v4085, 4
        %vm4094 = vcmask 1043456
        %v4095 = vsel %vm4094, %v4046, %v4092
        %v4096 = vsel %vm4094, %v4072, %v4093
        %4099 = vst [vmem:[%s235] sm:$0x77] %v4095
        %4100 = vst [vmem:[%s235 + $0x8] sm:$0x77] %v4096
        %s4101 = sand.u32 %s138, 1
        %s4102 = scalar_lea.sflag [#allocation4], %s4101
        %s4103 = sand.u32 %s138, 1
        %s4104 = smul.addr %s4103, 16
        %s4105 = scalar_lea.vmem [#allocation5], %s4104
        // Predicated region
        $region45: #{tpu_custom_call.1} parent=39 // pred_check
          %p4106 = pneg %p148
        $region46: #{tpu_custom_call.1} parent=39 // pred_check_branch
          %4108 = sbr.rel (%p4106) target = $region48
        $region47: #{tpu_custom_call.1} parent=39 // pred_region
          %s4109 = smul.u32 4, %s20
          %4111 = vsyncadd %s4102, 0
          %s4112 = smul.addr %s4109, 4
          %s4113 = scalar_lea.hbm %s5, %s4112
          %s4115 = sshll.u32 %s4105, 4
          %s4116 = int_to_ptr.vmem [resolvable:$true] %s4115
          %s4117 = sshll.u32 %s4113, 4
          %s4118 = int_to_ptr.hbm [resolvable:$true] %s4117
          %4120 = dma.vmem_to_hbm [thread:$0]  %s4116, 256, %s4118, %s4102
        $region48: #{tpu_custom_call.1} parent=39 // pred_fallthru
          _
      $region40: #{tpu_custom_call.1} parent=5 // pred_fallthru
        _
      %p4121 = scmp.le.s32.totalorder 2, %s15
      // Predicated region
      $region49: #{tpu_custom_call.1} parent=5 // pred_check
        %p4122 = pneg %p4121
      $region50: #{tpu_custom_call.1} parent=5 // pred_check_branch
        %4124 = sbr.rel (%p4122) target = $region52
      $region51: #{tpu_custom_call.1} parent=5 // pred_region
        %s4125 = ssub.s32 %s15, 2
        // Predicated region
        $region53: #{tpu_custom_call.1} parent=51 // pred_check
          %p4126 = pneg %p154
        $region54: #{tpu_custom_call.1} parent=51 // pred_check_branch
          %4128 = sbr.rel (%p4126) target = $region56
        $region55: #{tpu_custom_call.1} parent=51 // pred_region
          %s4129 = sand.u32 %s139, 1
          %s4130 = scalar_lea.sflag [#allocation4], %s4129
          %s4131 = sand.u32 %s139, 1
          %s4132 = smul.addr %s4131, 16
          %s4133 = scalar_lea.vmem [#allocation5], %s4132
          %4135 = dma.done %s4130, 256
        $region56: #{tpu_custom_call.1} parent=51 // pred_fallthru
          _
      $region52: #{tpu_custom_call.1} parent=5 // pred_fallthru
        _
    $region6: #{tpu_custom_call.1} parent=1 // loop_footer
      %s19 = sadd.s32 1, %s15
    $region7: #{tpu_custom_call.1} parent=1 // loop_footer_branch
      %14 = sbr.rel target = $region3
    $region8: #{tpu_custom_call.1} parent=1 // loop_exit
      _
    %4136 = vsyncpa [#allocation3], 1
    %s4137 = scalar_lea.sflag [#allocation3], 1
    %4138 = vsyncpa %s4137, 1
    %4139 = vsyncpa [#allocation4], 1
    %s4140 = scalar_lea.sflag [#allocation4], 1
    %4141 = vsyncpa %s4140, 1

</llo_original>
